<compile_context>
chip_gen: v7x
topology: tpu7x:2x2x1
jax: 0.10.0
libtpu: 0.0.40
codegen_flags: <defaults>
</compile_context>

<pallas_src>
import jax
import jax.numpy as jnp
from jax.experimental import pallas as pl
from jax.experimental.pallas import tpu as pltpu

FEAT_DIM = 512
OUT_PAD = 128          # lane-dense output slab width (logits lanes 0..A-1, value lane A)
MAX_BATCH_TILE = 512   # amortizes per-grid-step overhead; ~6-8 MiB VMEM at CHW=1024


def ppo_agent_kernel(
    obs_ref,                 # [TB, CHW]       f32  (cast to bf16 in-kernel)
    w_vit_ref, b_vit_ref,    # [CHW, 512] bf16, [1, 512]  f32
    w_pv1_ref, b_pv1_ref,    # [512, 2H]  bf16, [1, 2H]   f32
    w_pv2_ref, b_pv2_ref,    # [2H, 128]  bf16 (block-diag p2/v2), [1, 128] f32
    feat_ref,                # [TB, 512]  bf16
    out_ref,                 # [TB, 128]  f32
):
    # In-kernel cast rides in VPU slack; avoids a separate XLA astype pass.
    x = obs_ref[...].astype(jnp.bfloat16)

    # "ViT" feature extraction (linear stand-in), 512-d features, f32 accum.
    feat_f32 = (
        jnp.dot(x, w_vit_ref[...], preferred_element_type=jnp.float32)
        + b_vit_ref[...]
    )
    feat_bf16 = feat_f32.astype(jnp.bfloat16)
    feat_ref[...] = feat_bf16            # bf16 writeback: half the HBM traffic

    # Fused policy+value hidden layer: one [TB,512]x[512,2H] matmul.
    # Bias add + ReLU kept in f32 (v5e VPU has no bf16 VALU).
    h = jnp.maximum(
        jnp.dot(feat_bf16, w_pv1_ref[...], preferred_element_type=jnp.float32)
        + b_pv1_ref[...],
        0.0,
    )

    # Fused output layer (block-diagonal weights) -> lane-dense [TB, 128] slab.
    out_ref[...] = (
        jnp.dot(h.astype(jnp.bfloat16), w_pv2_ref[...],
                preferred_element_type=jnp.float32)
        + b_pv2_ref[...]
    )


def fuse_params(params, action_dim, out_pad=OUT_PAD):
    """Concatenate the two hidden layers and block-diagonalize the two heads."""
    (w_vit, b_vit, w_p1, b_p1, w_p2, b_p2, w_v1, b_v1, w_v2, b_v2) = params
    hidden = w_p1.shape[1]
    assert action_dim < out_pad, "action logits + value must fit the 128-lane slab"

    w_pv1 = jnp.concatenate([w_p1, w_v1], axis=1)          # [512, 2H]
    b_pv1 = jnp.concatenate([b_p1, b_v1], axis=1)          # [1, 2H]

    w_pv2 = jnp.zeros((2 * hidden, out_pad), jnp.float32)  # [2H, 128] block-diag
    w_pv2 = w_pv2.at[:hidden, :action_dim].set(w_p2)
    w_pv2 = w_pv2.at[hidden:, action_dim].set(w_v2[:, 0])
    b_pv2 = jnp.zeros((1, out_pad), jnp.float32)
    b_pv2 = b_pv2.at[:, :action_dim].set(b_p2)
    b_pv2 = b_pv2.at[:, action_dim].set(b_v2[:, 0])

    return (
        w_vit.astype(jnp.bfloat16), b_vit,
        w_pv1.astype(jnp.bfloat16), b_pv1,
        w_pv2.astype(jnp.bfloat16), b_pv2,
    )


def _pick_batch_tile(batch):
    """Right-size the batch tile: multiple of 16, <= MAX_BATCH_TILE, and
    (when the batch is big enough) small enough for >= 2 grid steps so both
    v7x TensorCores get work via the "parallel" batch axis."""
    tile = min(MAX_BATCH_TILE, 16 * pl.cdiv(batch, 16))
    if batch > 32:
        tile = min(tile, 16 * pl.cdiv(pl.cdiv(batch, 2), 16))
    return max(16, tile)


def ppo_agent_forward(obs, fused_params, action_dim, *, batch_tile=None):
    """obs: [B, C, H, W] float32 (NCHW). Returns (logits, value, feat[bf16])."""
    B = obs.shape[0]
    obs_flat = obs.reshape(B, -1)                # torch-style flatten, stays f32
    chw = obs_flat.shape[1]

    tile = batch_tile if batch_tile is not None else _pick_batch_tile(B)
    grid_b = pl.cdiv(B, tile)
    b_pad = tile * grid_b
    if b_pad != B:
        # Tiny tail pad only (zeros flow row-independently and are sliced off).
        obs_flat = jnp.pad(obs_flat, ((0, b_pad - B), (0, 0)))

    (w_vit, b_vit, w_pv1, b_pv1, w_pv2, b_pv2) = fused_params
    two_h = w_pv1.shape[1]

    batch_map = lambda i: (i, 0)   # tiles over the batch axis
    const_map = lambda i: (0, 0)   # weights stay resident across grid steps

    cost = pl.CostEstimate(
        flops=2 * b_pad * (chw * FEAT_DIM + FEAT_DIM * two_h + two_h * OUT_PAD),
        transcendentals=0,
        bytes_accessed=int(
            b_pad * chw * 4                       # obs read (f32)
            + b_pad * FEAT_DIM * 2                # feat write (bf16)
            + b_pad * OUT_PAD * 4                 # logits/value slab write (f32)
            + (w_vit.size + w_pv1.size + w_pv2.size) * 2
            + (b_vit.size + b_pv1.size + b_pv2.size) * 4
        ),
    )

    def _call(single_buffer_weights):
        def w_spec(shape):
            if single_buffer_weights:
                # Constant-index weights don't need double buffers -> VMEM headroom.
                return pl.BlockSpec(shape, const_map, pipeline_mode=pl.Buffered(1))
            return pl.BlockSpec(shape, const_map)

        return pl.pallas_call(
            ppo_agent_kernel,
            out_shape=(
                jax.ShapeDtypeStruct((b_pad, FEAT_DIM), jnp.bfloat16),
                jax.ShapeDtypeStruct((b_pad, OUT_PAD), jnp.float32),
            ),
            grid=(grid_b,),
            in_specs=[
                pl.BlockSpec((tile, chw), batch_map),
                w_spec((chw, FEAT_DIM)),
                w_spec((1, FEAT_DIM)),
                w_spec((FEAT_DIM, two_h)),
                w_spec((1, two_h)),
                w_spec((two_h, OUT_PAD)),
                w_spec((1, OUT_PAD)),
            ],
            out_specs=(
                pl.BlockSpec((tile, FEAT_DIM), batch_map),
                pl.BlockSpec((tile, OUT_PAD), batch_map),
            ),
            compiler_params=pltpu.CompilerParams(
                dimension_semantics=("parallel",),
            ),
            cost_estimate=cost,
        )(obs_flat, w_vit, b_vit, w_pv1, b_pv1, w_pv2, b_pv2)

    try:
        feat, out = _call(True)
    except Exception:
        # Fallback if single-buffered pipeline_mode is unsupported by this JAX.
        feat, out = _call(False)

    logits = out[:B, :action_dim]
    value = out[:B, action_dim]       # matches torch's value.squeeze(-1)
    feat = feat[:B]
    return logits, value, feat


def init_params(key, in_dim, feat_dim=FEAT_DIM, hidden_dim=256, action_dim=7):
    ks = jax.random.split(key, 5)

    def lin(k, fan_in, fan_out):
        # Deterministic small-scale init (synthetic weights, not a checkpoint).
        bound = 1.0 / jnp.sqrt(fan_in)
        kw, kb = jax.random.split(k)
        w = jax.random.uniform(kw, (fan_in, fan_out), jnp.float32, -bound, bound)
        b = jax.random.uniform(kb, (1, fan_out), jnp.float32, -bound, bound)
        return w, b

    w_vit, b_vit = lin(ks[0], in_dim, feat_dim)
    w_p1, b_p1 = lin(ks[1], feat_dim, hidden_dim)
    w_p2, b_p2 = lin(ks[2], hidden_dim, action_dim)
    w_v1, b_v1 = lin(ks[3], feat_dim, hidden_dim)
    w_v2, b_v2 = lin(ks[4], hidden_dim, 1)
    return (w_vit, b_vit, w_p1, b_p1, w_p2, b_p2, w_v1, b_v1, w_v2, b_v2)


def ppo_agent_ref(obs, params):
    """Pure-JAX f32 reference for tolerance checking."""
    (w_vit, b_vit, w_p1, b_p1, w_p2, b_p2, w_v1, b_v1, w_v2, b_v2) = params
    x = obs.reshape(obs.shape[0], -1)
    feat = x @ w_vit + b_vit
    h_p = jnp.maximum(feat @ w_p1 + b_p1, 0.0)
    logits = h_p @ w_p2 + b_p2
    h_v = jnp.maximum(feat @ w_v1 + b_v1, 0.0)
    value = (h_v @ w_v2 + b_v2)[:, 0]
    return logits, value, feat


if __name__ == "__main__":
    key = jax.random.PRNGKey(0)
    k_obs, k_params = jax.random.split(key)

    B, C, H, W = 2, 4, 16, 16          # small NCHW observation
    hidden_dim = 256                   # module default
    action_dim = 7                     # ViZDoom deadly-corridor action count

    obs = jax.random.normal(k_obs, (B, C, H, W), dtype=jnp.float32)
    params = init_params(k_params, in_dim=C * H * W,
                         hidden_dim=hidden_dim, action_dim=action_dim)
    fused = fuse_params(params, action_dim)

    logits, value, feat = ppo_agent_forward(obs, fused, action_dim)
    jax.block_until_ready((logits, value, feat))

    assert logits.shape == (B, action_dim)
    assert value.shape == (B,)
    assert feat.shape == (B, FEAT_DIM)
    assert bool(jnp.all(jnp.isfinite(logits))) and bool(jnp.all(jnp.isfinite(value)))

    # Tolerance check vs. pure-JAX f32 reference (bf16 MXU operands, f32 accum).
    ref_logits, ref_value, ref_feat = ppo_agent_ref(obs, params)
    assert float(jnp.max(jnp.abs(logits - ref_logits))) < 0.1
    assert float(jnp.max(jnp.abs(value - ref_value))) < 0.1
    assert float(jnp.max(jnp.abs(feat.astype(jnp.float32) - ref_feat))) < 0.1

    print("KERNEL_OK")
</pallas_src>

<mosaic_0001>
module attributes {stable_mosaic.version = 11 : i64} {
  func.func @ppo_agent_kernel(%arg0: i32, %arg1: memref<16x1024xf32, #tpu.memory_space<vmem>>, %arg2: memref<1024x512xbf16, #tpu.memory_space<vmem>>, %arg3: memref<1x512xf32, #tpu.memory_space<vmem>>, %arg4: memref<512x512xbf16, #tpu.memory_space<vmem>>, %arg5: memref<1x512xf32, #tpu.memory_space<vmem>>, %arg6: memref<512x128xbf16, #tpu.memory_space<vmem>>, %arg7: memref<1x128xf32, #tpu.memory_space<vmem>>, %arg8: memref<16x512xbf16, #tpu.memory_space<vmem>>, %arg9: memref<16x128xf32, #tpu.memory_space<vmem>>) attributes {dimension_semantics = [#tpu.dimension_semantics<parallel>], iteration_bounds = array<i64: 1>, scalar_prefetch = 0 : i64, scratch_operands = 0 : i64, tpu.core_type = #tpu.core_type<tc>, window_params = [{transform_indices = @transform_0, window_bounds = array<i64: 16, 1024>}, {pipeline_mode = #tpu.pipeline_mode<synchronous>, transform_indices = @transform_1, window_bounds = array<i64: 1024, 512>}, {pipeline_mode = #tpu.pipeline_mode<synchronous>, transform_indices = @transform_2, window_bounds = array<i64: 1, 512>}, {pipeline_mode = #tpu.pipeline_mode<synchronous>, transform_indices = @transform_3, window_bounds = array<i64: 512, 512>}, {pipeline_mode = #tpu.pipeline_mode<synchronous>, transform_indices = @transform_4, window_bounds = array<i64: 1, 512>}, {pipeline_mode = #tpu.pipeline_mode<synchronous>, transform_indices = @transform_5, window_bounds = array<i64: 512, 128>}, {pipeline_mode = #tpu.pipeline_mode<synchronous>, transform_indices = @transform_6, window_bounds = array<i64: 1, 128>}, {transform_indices = @transform_7, window_bounds = array<i64: 16, 512>}, {transform_indices = @transform_8, window_bounds = array<i64: 16, 128>}]} {
    %c0 = arith.constant 0 : index
    %c0_0 = arith.constant 0 : index
    %0 = vector.load %arg1[%c0, %c0_0] : memref<16x1024xf32, #tpu.memory_space<vmem>>, vector<16x1024xf32>
    %1 = arith.truncf %0 : vector<16x1024xf32> to vector<16x1024xbf16>
    %c0_1 = arith.constant 0 : index
    %c0_2 = arith.constant 0 : index
    %2 = vector.load %arg2[%c0_1, %c0_2] : memref<1024x512xbf16, #tpu.memory_space<vmem>>, vector<1024x512xbf16>
    %cst = arith.constant dense<0.000000e+00> : vector<16x512xf32>
    %3 = tpu.matmul %1, %2, %cst {dimension_numbers = #tpu.dot_dimension_numbers<[1], [0], [0], [1], [0, 0, 1, 1], [], []>} : vector<16x1024xbf16>, vector<1024x512xbf16>, vector<16x512xf32> -> vector<16x512xf32>
    %c0_3 = arith.constant 0 : index
    %c0_4 = arith.constant 0 : index
    %4 = vector.load %arg3[%c0_3, %c0_4] : memref<1x512xf32, #tpu.memory_space<vmem>>, vector<1x512xf32>
    %5 = vector.broadcast %4 : vector<1x512xf32> to vector<16x512xf32>
    %6 = arith.addf %3, %5 : vector<16x512xf32>
    %7 = arith.truncf %6 : vector<16x512xf32> to vector<16x512xbf16>
    %c0_5 = arith.constant 0 : index
    %c0_6 = arith.constant 0 : index
    %8 = vector.load %arg8[%c0_5, %c0_6] : memref<16x512xbf16, #tpu.memory_space<vmem>>, vector<16x512xbf16>
    tpu.vector_store %arg8[%c0_5, %c0_6], %7 {strides = array<i32>} : memref<16x512xbf16, #tpu.memory_space<vmem>>, vector<16x512xbf16>,
    %c0_7 = arith.constant 0 : index
    %c0_8 = arith.constant 0 : index
    %9 = vector.load %arg4[%c0_7, %c0_8] : memref<512x512xbf16, #tpu.memory_space<vmem>>, vector<512x512xbf16>
    %cst_9 = arith.constant dense<0.000000e+00> : vector<16x512xf32>
    %10 = tpu.matmul %7, %9, %cst_9 {dimension_numbers = #tpu.dot_dimension_numbers<[1], [0], [0], [1], [0, 0, 1, 1], [], []>} : vector<16x512xbf16>, vector<512x512xbf16>, vector<16x512xf32> -> vector<16x512xf32>
    %c0_10 = arith.constant 0 : index
    %c0_11 = arith.constant 0 : index
    %11 = vector.load %arg5[%c0_10, %c0_11] : memref<1x512xf32, #tpu.memory_space<vmem>>, vector<1x512xf32>
    %12 = vector.broadcast %11 : vector<1x512xf32> to vector<16x512xf32>
    %13 = arith.addf %10, %12 : vector<16x512xf32>
    %cst_12 = arith.constant 0.000000e+00 : f32
    %14 = vector.broadcast %cst_12 : f32 to vector<16x512xf32>
    %15 = arith.maximumf %13, %14 : vector<16x512xf32>
    %16 = arith.truncf %15 : vector<16x512xf32> to vector<16x512xbf16>
    %c0_13 = arith.constant 0 : index
    %c0_14 = arith.constant 0 : index
    %17 = vector.load %arg6[%c0_13, %c0_14] : memref<512x128xbf16, #tpu.memory_space<vmem>>, vector<512x128xbf16>
    %cst_15 = arith.constant dense<0.000000e+00> : vector<16x128xf32>
    %18 = tpu.matmul %16, %17, %cst_15 {dimension_numbers = #tpu.dot_dimension_numbers<[1], [0], [0], [1], [0, 0, 1, 1], [], []>} : vector<16x512xbf16>, vector<512x128xbf16>, vector<16x128xf32> -> vector<16x128xf32>
    %c0_16 = arith.constant 0 : index
    %c0_17 = arith.constant 0 : index
    %19 = vector.load %arg7[%c0_16, %c0_17] : memref<1x128xf32, #tpu.memory_space<vmem>>, vector<1x128xf32>
    %20 = vector.broadcast %19 : vector<1x128xf32> to vector<16x128xf32>
    %21 = arith.addf %18, %20 : vector<16x128xf32>
    %c0_18 = arith.constant 0 : index
    %c0_19 = arith.constant 0 : index
    %22 = vector.load %arg9[%c0_18, %c0_19] : memref<16x128xf32, #tpu.memory_space<vmem>>, vector<16x128xf32>
    tpu.vector_store %arg9[%c0_18, %c0_19], %21 {strides = array<i32>} : memref<16x128xf32, #tpu.memory_space<vmem>>, vector<16x128xf32>,
    return
  }
  func.func @transform_0(%arg0: i32) -> (i32, i32) {
    %c0_i32 = arith.constant 0 : i32
    %c0_i32_0 = arith.constant 0 : i32
    return %arg0, %c0_i32 : i32, i32
  }
  func.func @transform_1(%arg0: i32) -> (i32, i32) {
    %c0_i32 = arith.constant 0 : i32
    %c0_i32_0 = arith.constant 0 : i32
    %c0_i32_1 = arith.constant 0 : i32
    return %c0_i32, %c0_i32_0 : i32, i32
  }
  func.func @transform_2(%arg0: i32) -> (i32, i32) {
    %c0_i32 = arith.constant 0 : i32
    %c0_i32_0 = arith.constant 0 : i32
    %c0_i32_1 = arith.constant 0 : i32
    return %c0_i32, %c0_i32_0 : i32, i32
  }
  func.func @transform_3(%arg0: i32) -> (i32, i32) {
    %c0_i32 = arith.constant 0 : i32
    %c0_i32_0 = arith.constant 0 : i32
    %c0_i32_1 = arith.constant 0 : i32
    return %c0_i32, %c0_i32_0 : i32, i32
  }
  func.func @transform_4(%arg0: i32) -> (i32, i32) {
    %c0_i32 = arith.constant 0 : i32
    %c0_i32_0 = arith.constant 0 : i32
    %c0_i32_1 = arith.constant 0 : i32
    return %c0_i32, %c0_i32_0 : i32, i32
  }
  func.func @transform_5(%arg0: i32) -> (i32, i32) {
    %c0_i32 = arith.constant 0 : i32
    %c0_i32_0 = arith.constant 0 : i32
    %c0_i32_1 = arith.constant 0 : i32
    return %c0_i32, %c0_i32_0 : i32, i32
  }
  func.func @transform_6(%arg0: i32) -> (i32, i32) {
    %c0_i32 = arith.constant 0 : i32
    %c0_i32_0 = arith.constant 0 : i32
    %c0_i32_1 = arith.constant 0 : i32
    return %c0_i32, %c0_i32_0 : i32, i32
  }
  func.func @transform_7(%arg0: i32) -> (i32, i32) {
    %c0_i32 = arith.constant 0 : i32
    %c0_i32_0 = arith.constant 0 : i32
    return %arg0, %c0_i32 : i32, i32
  }
  func.func @transform_8(%arg0: i32) -> (i32, i32) {
    %c0_i32 = arith.constant 0 : i32
    %c0_i32_0 = arith.constant 0 : i32
    return %arg0, %c0_i32 : i32, i32
  }
}

module attributes {stable_mosaic.version = 11 : i64} {
  func.func @ppo_agent_kernel(%arg0: i32, %arg1: memref<16x1024xf32, #tpu.memory_space<vmem>>, %arg2: memref<1024x512xbf16, #tpu.memory_space<vmem>>, %arg3: memref<1x512xf32, #tpu.memory_space<vmem>>, %arg4: memref<512x512xbf16, #tpu.memory_space<vmem>>, %arg5: memref<1x512xf32, #tpu.memory_space<vmem>>, %arg6: memref<512x128xbf16, #tpu.memory_space<vmem>>, %arg7: memref<1x128xf32, #tpu.memory_space<vmem>>, %arg8: memref<16x512xbf16, #tpu.memory_space<vmem>>, %arg9: memref<16x128xf32, #tpu.memory_space<vmem>>) attributes {dimension_semantics = [#tpu.dimension_semantics<parallel>], iteration_bounds = array<i64: 1>, scalar_prefetch = 0 : i64, scratch_operands = 0 : i64, tpu.core_type = #tpu.core_type<tc>, window_params = [{transform_indices = @transform_0, window_bounds = array<i64: 16, 1024>}, {pipeline_mode = #tpu.pipeline_mode<synchronous>, transform_indices = @transform_1, window_bounds = array<i64: 1024, 512>}, {pipeline_mode = #tpu.pipeline_mode<synchronous>, transform_indices = @transform_2, window_bounds = array<i64: 1, 512>}, {pipeline_mode = #tpu.pipeline_mode<synchronous>, transform_indices = @transform_3, window_bounds = array<i64: 512, 512>}, {pipeline_mode = #tpu.pipeline_mode<synchronous>, transform_indices = @transform_4, window_bounds = array<i64: 1, 512>}, {pipeline_mode = #tpu.pipeline_mode<synchronous>, transform_indices = @transform_5, window_bounds = array<i64: 512, 128>}, {pipeline_mode = #tpu.pipeline_mode<synchronous>, transform_indices = @transform_6, window_bounds = array<i64: 1, 128>}, {transform_indices = @transform_7, window_bounds = array<i64: 16, 512>}, {transform_indices = @transform_8, window_bounds = array<i64: 16, 128>}]} {
    %c0 = arith.constant 0 : index
    %c0_0 = arith.constant 0 : index
    %0 = vector.load %arg1[%c0, %c0_0] : memref<16x1024xf32, #tpu.memory_space<vmem>>, vector<16x1024xf32>
    %1 = arith.truncf %0 : vector<16x1024xf32> to vector<16x1024xbf16>
    %c0_1 = arith.constant 0 : index
    %c0_2 = arith.constant 0 : index
    %2 = vector.load %arg2[%c0_1, %c0_2] : memref<1024x512xbf16, #tpu.memory_space<vmem>>, vector<1024x512xbf16>
    %cst = arith.constant dense<0.000000e+00> : vector<16x512xf32>
    %3 = tpu.matmul %1, %2, %cst {dimension_numbers = #tpu.dot_dimension_numbers<[1], [0], [0], [1], [0, 0, 1, 1], [], []>} : vector<16x1024xbf16>, vector<1024x512xbf16>, vector<16x512xf32> -> vector<16x512xf32>
    %c0_3 = arith.constant 0 : index
    %c0_4 = arith.constant 0 : index
    %4 = vector.load %arg3[%c0_3, %c0_4] : memref<1x512xf32, #tpu.memory_space<vmem>>, vector<1x512xf32>
    %5 = vector.broadcast %4 : vector<1x512xf32> to vector<16x512xf32>
    %6 = arith.addf %3, %5 : vector<16x512xf32>
    %7 = arith.truncf %6 : vector<16x512xf32> to vector<16x512xbf16>
    %c0_5 = arith.constant 0 : index
    %c0_6 = arith.constant 0 : index
    %8 = vector.load %arg8[%c0_5, %c0_6] : memref<16x512xbf16, #tpu.memory_space<vmem>>, vector<16x512xbf16>
    tpu.vector_store %arg8[%c0_5, %c0_6], %7 {strides = array<i32>} : memref<16x512xbf16, #tpu.memory_space<vmem>>, vector<16x512xbf16>,
    %c0_7 = arith.constant 0 : index
    %c0_8 = arith.constant 0 : index
    %9 = vector.load %arg4[%c0_7, %c0_8] : memref<512x512xbf16, #tpu.memory_space<vmem>>, vector<512x512xbf16>
    %cst_9 = arith.constant dense<0.000000e+00> : vector<16x512xf32>
    %10 = tpu.matmul %7, %9, %cst_9 {dimension_numbers = #tpu.dot_dimension_numbers<[1], [0], [0], [1], [0, 0, 1, 1], [], []>} : vector<16x512xbf16>, vector<512x512xbf16>, vector<16x512xf32> -> vector<16x512xf32>
    %c0_10 = arith.constant 0 : index
    %c0_11 = arith.constant 0 : index
    %11 = vector.load %arg5[%c0_10, %c0_11] : memref<1x512xf32, #tpu.memory_space<vmem>>, vector<1x512xf32>
    %12 = vector.broadcast %11 : vector<1x512xf32> to vector<16x512xf32>
    %13 = arith.addf %10, %12 : vector<16x512xf32>
    %cst_12 = arith.constant 0.000000e+00 : f32
    %14 = vector.broadcast %cst_12 : f32 to vector<16x512xf32>
    %15 = arith.maximumf %13, %14 : vector<16x512xf32>
    %16 = arith.truncf %15 : vector<16x512xf32> to vector<16x512xbf16>
    %c0_13 = arith.constant 0 : index
    %c0_14 = arith.constant 0 : index
    %17 = vector.load %arg6[%c0_13, %c0_14] : memref<512x128xbf16, #tpu.memory_space<vmem>>, vector<512x128xbf16>
    %cst_15 = arith.constant dense<0.000000e+00> : vector<16x128xf32>
    %18 = tpu.matmul %16, %17, %cst_15 {dimension_numbers = #tpu.dot_dimension_numbers<[1], [0], [0], [1], [0, 0, 1, 1], [], []>} : vector<16x512xbf16>, vector<512x128xbf16>, vector<16x128xf32> -> vector<16x128xf32>
    %c0_16 = arith.constant 0 : index
    %c0_17 = arith.constant 0 : index
    %19 = vector.load %arg7[%c0_16, %c0_17] : memref<1x128xf32, #tpu.memory_space<vmem>>, vector<1x128xf32>
    %20 = vector.broadcast %19 : vector<1x128xf32> to vector<16x128xf32>
    %21 = arith.addf %18, %20 : vector<16x128xf32>
    %c0_18 = arith.constant 0 : index
    %c0_19 = arith.constant 0 : index
    %22 = vector.load %arg9[%c0_18, %c0_19] : memref<16x128xf32, #tpu.memory_space<vmem>>, vector<16x128xf32>
    tpu.vector_store %arg9[%c0_18, %c0_19], %21 {strides = array<i32>} : memref<16x128xf32, #tpu.memory_space<vmem>>, vector<16x128xf32>,
    return
  }
  func.func @transform_0(%arg0: i32) -> (i32, i32) {
    %c0_i32 = arith.constant 0 : i32
    %c0_i32_0 = arith.constant 0 : i32
    return %arg0, %c0_i32 : i32, i32
  }
  func.func @transform_1(%arg0: i32) -> (i32, i32) {
    %c0_i32 = arith.constant 0 : i32
    %c0_i32_0 = arith.constant 0 : i32
    %c0_i32_1 = arith.constant 0 : i32
    return %c0_i32, %c0_i32_0 : i32, i32
  }
  func.func @transform_2(%arg0: i32) -> (i32, i32) {
    %c0_i32 = arith.constant 0 : i32
    %c0_i32_0 = arith.constant 0 : i32
    %c0_i32_1 = arith.constant 0 : i32
    return %c0_i32, %c0_i32_0 : i32, i32
  }
  func.func @transform_3(%arg0: i32) -> (i32, i32) {
    %c0_i32 = arith.constant 0 : i32
    %c0_i32_0 = arith.constant 0 : i32
    %c0_i32_1 = arith.constant 0 : i32
    return %c0_i32, %c0_i32_0 : i32, i32
  }
  func.func @transform_4(%arg0: i32) -> (i32, i32) {
    %c0_i32 = arith.constant 0 : i32
    %c0_i32_0 = arith.constant 0 : i32
    %c0_i32_1 = arith.constant 0 : i32
    return %c0_i32, %c0_i32_0 : i32, i32
  }
  func.func @transform_5(%arg0: i32) -> (i32, i32) {
    %c0_i32 = arith.constant 0 : i32
    %c0_i32_0 = arith.constant 0 : i32
    %c0_i32_1 = arith.constant 0 : i32
    return %c0_i32, %c0_i32_0 : i32, i32
  }
  func.func @transform_6(%arg0: i32) -> (i32, i32) {
    %c0_i32 = arith.constant 0 : i32
    %c0_i32_0 = arith.constant 0 : i32
    %c0_i32_1 = arith.constant 0 : i32
    return %c0_i32, %c0_i32_0 : i32, i32
  }
  func.func @transform_7(%arg0: i32) -> (i32, i32) {
    %c0_i32 = arith.constant 0 : i32
    %c0_i32_0 = arith.constant 0 : i32
    return %arg0, %c0_i32 : i32, i32
  }
  func.func @transform_8(%arg0: i32) -> (i32, i32) {
    %c0_i32 = arith.constant 0 : i32
    %c0_i32_0 = arith.constant 0 : i32
    return %arg0, %c0_i32 : i32, i32
  }
}

</mosaic_0001>

<llo_original>
// kernel: tpu_custom_call.1
$region0: #{tpu_custom_call.1}
  #allocation0 [shape = 'u32[]', space=smem, size = 0x4, offset = 0x4, fixed_abs, tag = 'smem constant byte address 0x4 - core index']
  #allocation1 [shape = 'u32[144,128]{1,0:T(1,128)}', space=vmem, size = 0x12000, scoped, tag = 'internal scratch']
  %s0 = inlined_call_operand.hbm [shape: f32[16,1024], index: 0, kind: input, shape index: {}]
  %s1 = inlined_call_operand.hbm [shape: bf16[1024,512], index: 1, kind: input, shape index: {}]
  %s2 = inlined_call_operand.vmem [shape: f32[1,512], index: 2, kind: input, shape index: {}]
  %s3 = inlined_call_operand.hbm [shape: bf16[512,512], index: 3, kind: input, shape index: {}]
  %s4 = inlined_call_operand.vmem [shape: f32[1,512], index: 4, kind: input, shape index: {}]
  %s5 = inlined_call_operand.hbm [shape: bf16[512,128], index: 5, kind: input, shape index: {}]
  %s6 = inlined_call_operand.vmem [shape: f32[1,128], index: 6, kind: input, shape index: {}]
  %s7 = inlined_call_operand.hbm [shape: bf16[16,512], index: 7, kind: output, shape index: {0}]
  %s8 = inlined_call_operand.hbm [shape: f32[16,128], index: 8, kind: output, shape index: {1}]
  %9 = xla_tuple %s7, %s8
  %s10 = sld [smem:[#allocation0]]
  $region62: #{tpu_custom_call.1} parent=0
    _
  %s12 = ssub.s32 1, %s10
  %s13 = scalar_select 0, %s12, %s10
  $region1: #{tpu_custom_call.1} parent=0
    #allocation2 [shape = 'u8[65536]{0}', space=vmem, size = 0x10000, scoped, tag = 'input window, operand 0, single buffered']
    #allocation3 [shape = 's32[1]{0}', space=sflag, size = 0x4, scoped, tag = 'scoped memory for tpu_custom_call.1']
    #allocation4 [shape = 's32[1]{0}', space=sflag, size = 0x4, scoped, tag = 'scoped memory for tpu_custom_call.1']
    #allocation5 [shape = 'u8[1048576]{0}', space=vmem, size = 0x100000, scoped, tag = 'input window, operand 1, single buffered']
    #allocation6 [shape = 's32[1]{0}', space=sflag, size = 0x4, scoped, tag = 'scoped memory for tpu_custom_call.1']
    #allocation7 [shape = 'u8[524288]{0}', space=vmem, size = 0x80000, scoped, tag = 'input window, operand 3, single buffered']
    #allocation8 [shape = 'u8[131072]{0}', space=vmem, size = 0x20000, scoped, tag = 'input window, operand 5, single buffered']
    #allocation9 [shape = 's32[1]{0}', space=sflag, size = 0x4, scoped, tag = 'scoped memory for tpu_custom_call.1']
    #allocation10 [shape = 'u8[16384]{0}', space=vmem, size = 0x4000, scoped, tag = 'output window, operand 0, single buffered']
    #allocation11 [shape = 'u8[8192]{0}', space=vmem, size = 0x2000, scoped, tag = 'output window, operand 1, single buffered']
    #allocation12 [shape = 's32[1]{0}', space=sflag, size = 0x4, scoped, tag = 'scoped memory for tpu_custom_call.1']
    %14 = vsyncpa [#allocation3], 0
    %15 = vsyncpa [#allocation6], 0
    %16 = vsyncpa [#allocation9], 0
    %17 = vsyncpa [#allocation4], 0
    %18 = vsyncpa [#allocation12], 0
    // Predicated region
    $region2: #{tpu_custom_call.1} parent=1 // pred_check
      _
    $region3: #{tpu_custom_call.1} parent=1 // pred_check_branch
      %20 = sbr.rel (0) target = $region5
    $region4: #{tpu_custom_call.1} parent=1 // pred_region
      %s22 = ssub.s32 2048, 2048
      %23 = vsyncadd [#allocation3], %s22
      %s24 = sshll.u32 [#allocation2], 4
      %s25 = int_to_ptr.vmem [resolvable:$true] %s24
      %30 = dma.hbm_to_vmem [thread:$0]  %s0, 2048, %s25, [#allocation3], 1024, 1024, 64
    $region5: #{tpu_custom_call.1} parent=1 // pred_fallthru
      _
    // Predicated region
    $region6: #{tpu_custom_call.1} parent=1 // pred_check
      _
    $region7: #{tpu_custom_call.1} parent=1 // pred_check_branch
      %32 = sbr.rel (0) target = $region9
    $region8: #{tpu_custom_call.1} parent=1 // pred_region
      %s34 = ssub.s32 32768, 32768
      %35 = vsyncadd [#allocation6], %s34
      %s36 = sshll.u32 [#allocation5], 4
      %s37 = int_to_ptr.vmem [resolvable:$true] %s36
      %42 = dma.hbm_to_vmem [thread:$0]  %s1, 32768, %s37, [#allocation6], 256, 256, 16
    $region9: #{tpu_custom_call.1} parent=1 // pred_fallthru
      _
    // Predicated region
    $region10: #{tpu_custom_call.1} parent=1 // pred_check
      _
    $region11: #{tpu_custom_call.1} parent=1 // pred_check_branch
      %44 = sbr.rel (0) target = $region13
    $region12: #{tpu_custom_call.1} parent=1 // pred_region
      _
    $region13: #{tpu_custom_call.1} parent=1 // pred_fallthru
      _
    // Predicated region
    $region14: #{tpu_custom_call.1} parent=1 // pred_check
      _
    $region15: #{tpu_custom_call.1} parent=1 // pred_check_branch
      %46 = sbr.rel (0) target = $region17
    $region16: #{tpu_custom_call.1} parent=1 // pred_region
      %s48 = ssub.s32 16384, 16384
      %49 = vsyncadd [#allocation6], %s48
      %s50 = sshll.u32 [#allocation7], 4
      %s51 = int_to_ptr.vmem [resolvable:$true] %s50
      %56 = dma.hbm_to_vmem [thread:$0]  %s3, 16384, %s51, [#allocation6], 256, 256, 16
    $region17: #{tpu_custom_call.1} parent=1 // pred_fallthru
      _
    // Predicated region
    $region18: #{tpu_custom_call.1} parent=1 // pred_check
      _
    $region19: #{tpu_custom_call.1} parent=1 // pred_check_branch
      %58 = sbr.rel (0) target = $region21
    $region20: #{tpu_custom_call.1} parent=1 // pred_region
      _
    $region21: #{tpu_custom_call.1} parent=1 // pred_fallthru
      _
    // Predicated region
    $region22: #{tpu_custom_call.1} parent=1 // pred_check
      _
    $region23: #{tpu_custom_call.1} parent=1 // pred_check_branch
      %60 = sbr.rel (0) target = $region25
    $region24: #{tpu_custom_call.1} parent=1 // pred_region
      %s62 = ssub.s32 4096, 4096
      %63 = vsyncadd [#allocation9], %s62
      %s64 = sshll.u32 [#allocation8], 4
      %s65 = int_to_ptr.vmem [resolvable:$true] %s64
      %70 = dma.hbm_to_vmem [thread:$0]  %s5, 4096, %s65, [#allocation9], 64, 64, 4
    $region25: #{tpu_custom_call.1} parent=1 // pred_fallthru
      _
    // Predicated region
    $region26: #{tpu_custom_call.1} parent=1 // pred_check
      _
    $region27: #{tpu_custom_call.1} parent=1 // pred_check_branch
      %72 = sbr.rel (0) target = $region29
    $region28: #{tpu_custom_call.1} parent=1 // pred_region
      _
    $region29: #{tpu_custom_call.1} parent=1 // pred_fallthru
      _
    // Predicated region
    $region30: #{tpu_custom_call.1} parent=1 // pred_check
      _
    $region31: #{tpu_custom_call.1} parent=1 // pred_check_branch
      %74 = sbr.rel (0) target = $region33
    $region32: #{tpu_custom_call.1} parent=1 // pred_region
      %75 = dma.done [#allocation3], 2048
    $region33: #{tpu_custom_call.1} parent=1 // pred_fallthru
      _
    // Predicated region
    $region34: #{tpu_custom_call.1} parent=1 // pred_check
      _
    $region35: #{tpu_custom_call.1} parent=1 // pred_check_branch
      %77 = sbr.rel (0) target = $region37
    $region36: #{tpu_custom_call.1} parent=1 // pred_region
      %78 = dma.done [#allocation6], 32768
    $region37: #{tpu_custom_call.1} parent=1 // pred_fallthru
      _
    // Predicated region
    $region38: #{tpu_custom_call.1} parent=1 // pred_check
      _
    $region39: #{tpu_custom_call.1} parent=1 // pred_check_branch
      %80 = sbr.rel (0) target = $region41
    $region40: #{tpu_custom_call.1} parent=1 // pred_region
      %81 = dma.done [#allocation6], 16384
    $region41: #{tpu_custom_call.1} parent=1 // pred_fallthru
      _
    // Predicated region
    $region42: #{tpu_custom_call.1} parent=1 // pred_check
      _
    $region43: #{tpu_custom_call.1} parent=1 // pred_check_branch
      %83 = sbr.rel (0) target = $region45
    $region44: #{tpu_custom_call.1} parent=1 // pred_region
      %84 = dma.done [#allocation9], 4096
    $region45: #{tpu_custom_call.1} parent=1 // pred_fallthru
      _
    %v86 = vld [vmem:[#allocation2] sm:$0xff]
    %v87 = vld [vmem:[#allocation2 + $0x8] sm:$0xff]
    %v88 = vld [vmem:[#allocation2 + $0x10] sm:$0xff]
    %v89 = vld [vmem:[#allocation2 + $0x18] sm:$0xff]
    %v90 = vld [vmem:[#allocation2 + $0x20] sm:$0xff]
    %v91 = vld [vmem:[#allocation2 + $0x28] sm:$0xff]
    %v92 = vld [vmem:[#allocation2 + $0x30] sm:$0xff]
    %v93 = vld [vmem:[#allocation2 + $0x38] sm:$0xff]
    %v94 = vld [vmem:[#allocation2 + $0x40] sm:$0xff]
    %v95 = vld [vmem:[#allocation2 + $0x48] sm:$0xff]
    %v96 = vld [vmem:[#allocation2 + $0x50] sm:$0xff]
    %v97 = vld [vmem:[#allocation2 + $0x58] sm:$0xff]
    %v98 = vld [vmem:[#allocation2 + $0x60] sm:$0xff]
    %v99 = vld [vmem:[#allocation2 + $0x68] sm:$0xff]
    %v100 = vld [vmem:[#allocation2 + $0x70] sm:$0xff]
    %v101 = vld [vmem:[#allocation2 + $0x78] sm:$0xff]
    %v102 = vpack.c.bf16 %v94, %v86
    %v103 = vpack.c.bf16 %v95, %v87
    %v104 = vpack.c.bf16 %v96, %v88
    %v105 = vpack.c.bf16 %v97, %v89
    %v106 = vpack.c.bf16 %v98, %v90
    %v107 = vpack.c.bf16 %v99, %v91
    %v108 = vpack.c.bf16 %v100, %v92
    %v109 = vpack.c.bf16 %v101, %v93
    %v110 = vld [vmem:[#allocation5] sm:$0xff]
    %v111 = vld [vmem:[#allocation5 + $0x8] sm:$0xff]
    %v112 = vld [vmem:[#allocation5 + $0x10] sm:$0xff]
    %v113 = vld [vmem:[#allocation5 + $0x18] sm:$0xff]
    %v114 = vld [vmem:[#allocation5 + $0x20] sm:$0xff]
    %v115 = vld [vmem:[#allocation5 + $0x28] sm:$0xff]
    %v116 = vld [vmem:[#allocation5 + $0x30] sm:$0xff]
    %v117 = vld [vmem:[#allocation5 + $0x38] sm:$0xff]
    %v118 = vld [vmem:[#allocation5 + $0x40] sm:$0xff]
    %v119 = vld [vmem:[#allocation5 + $0x48] sm:$0xff]
    %v120 = vld [vmem:[#allocation5 + $0x50] sm:$0xff]
    %v121 = vld [vmem:[#allocation5 + $0x58] sm:$0xff]
    %v122 = vld [vmem:[#allocation5 + $0x60] sm:$0xff]
    %v123 = vld [vmem:[#allocation5 + $0x68] sm:$0xff]
    %v124 = vld [vmem:[#allocation5 + $0x70] sm:$0xff]
    %v125 = vld [vmem:[#allocation5 + $0x78] sm:$0xff]
    %v126 = vld [vmem:[#allocation5 + $0x80] sm:$0xff]
    %v127 = vld [vmem:[#allocation5 + $0x88] sm:$0xff]
    %v128 = vld [vmem:[#allocation5 + $0x90] sm:$0xff]
    %v129 = vld [vmem:[#allocation5 + $0x98] sm:$0xff]
    %v130 = vld [vmem:[#allocation5 + $0xa0] sm:$0xff]
    %v131 = vld [vmem:[#allocation5 + $0xa8] sm:$0xff]
    %v132 = vld [vmem:[#allocation5 + $0xb0] sm:$0xff]
    %v133 = vld [vmem:[#allocation5 + $0xb8] sm:$0xff]
    %v134 = vld [vmem:[#allocation5 + $0xc0] sm:$0xff]
    %v135 = vld [vmem:[#allocation5 + $0xc8] sm:$0xff]
    %v136 = vld [vmem:[#allocation5 + $0xd0] sm:$0xff]
    %v137 = vld [vmem:[#allocation5 + $0xd8] sm:$0xff]
    %v138 = vld [vmem:[#allocation5 + $0xe0] sm:$0xff]
    %v139 = vld [vmem:[#allocation5 + $0xe8] sm:$0xff]
    %v140 = vld [vmem:[#allocation5 + $0xf0] sm:$0xff]
    %v141 = vld [vmem:[#allocation5 + $0xf8] sm:$0xff]
    %v142 = vld [vmem:[#allocation5 + $0x100] sm:$0xff]
    %v143 = vld [vmem:[#allocation5 + $0x108] sm:$0xff]
    %v144 = vld [vmem:[#allocation5 + $0x110] sm:$0xff]
    %v145 = vld [vmem:[#allocation5 + $0x118] sm:$0xff]
    %v146 = vld [vmem:[#allocation5 + $0x120] sm:$0xff]
    %v147 = vld [vmem:[#allocation5 + $0x128] sm:$0xff]
    %v148 = vld [vmem:[#allocation5 + $0x130] sm:$0xff]
    %v149 = vld [vmem:[#allocation5 + $0x138] sm:$0xff]
    %v150 = vld [vmem:[#allocation5 + $0x140] sm:$0xff]
    %v151 = vld [vmem:[#allocation5 + $0x148] sm:$0xff]
    %v152 = vld [vmem:[#allocation5 + $0x150] sm:$0xff]
    %v153 = vld [vmem:[#allocation5 + $0x158] sm:$0xff]
    %v154 = vld [vmem:[#allocation5 + $0x160] sm:$0xff]
    %v155 = vld [vmem:[#allocation5 + $0x168] sm:$0xff]
    %v156 = vld [vmem:[#allocation5 + $0x170] sm:$0xff]
    %v157 = vld [vmem:[#allocation5 + $0x178] sm:$0xff]
    %v158 = vld [vmem:[#allocation5 + $0x180] sm:$0xff]
    %v159 = vld [vmem:[#allocation5 + $0x188] sm:$0xff]
    %v160 = vld [vmem:[#allocation5 + $0x190] sm:$0xff]
    %v161 = vld [vmem:[#allocation5 + $0x198] sm:$0xff]
    %v162 = vld [vmem:[#allocation5 + $0x1a0] sm:$0xff]
    %v163 = vld [vmem:[#allocation5 + $0x1a8] sm:$0xff]
    %v164 = vld [vmem:[#allocation5 + $0x1b0] sm:$0xff]
    %v165 = vld [vmem:[#allocation5 + $0x1b8] sm:$0xff]
    %v166 = vld [vmem:[#allocation5 + $0x1c0] sm:$0xff]
    %v167 = vld [vmem:[#allocation5 + $0x1c8] sm:$0xff]
    %v168 = vld [vmem:[#allocation5 + $0x1d0] sm:$0xff]
    %v169 = vld [vmem:[#allocation5 + $0x1d8] sm:$0xff]
    %v170 = vld [vmem:[#allocation5 + $0x1e0] sm:$0xff]
    %v171 = vld [vmem:[#allocation5 + $0x1e8] sm:$0xff]
    %v172 = vld [vmem:[#allocation5 + $0x1f0] sm:$0xff]
    %v173 = vld [vmem:[#allocation5 + $0x1f8] sm:$0xff]
    %v174 = vld [vmem:[#allocation5 + $0x200] sm:$0xff]
    %v175 = vld [vmem:[#allocation5 + $0x208] sm:$0xff]
    %v176 = vld [vmem:[#allocation5 + $0x210] sm:$0xff]
    %v177 = vld [vmem:[#allocation5 + $0x218] sm:$0xff]
    %v178 = vld [vmem:[#allocation5 + $0x220] sm:$0xff]
    %v179 = vld [vmem:[#allocation5 + $0x228] sm:$0xff]
    %v180 = vld [vmem:[#allocation5 + $0x230] sm:$0xff]
    %v181 = vld [vmem:[#allocation5 + $0x238] sm:$0xff]
    %v182 = vld [vmem:[#allocation5 + $0x240] sm:$0xff]
    %v183 = vld [vmem:[#allocation5 + $0x248] sm:$0xff]
    %v184 = vld [vmem:[#allocation5 + $0x250] sm:$0xff]
    %v185 = vld [vmem:[#allocation5 + $0x258] sm:$0xff]
    %v186 = vld [vmem:[#allocation5 + $0x260] sm:$0xff]
    %v187 = vld [vmem:[#allocation5 + $0x268] sm:$0xff]
    %v188 = vld [vmem:[#allocation5 + $0x270] sm:$0xff]
    %v189 = vld [vmem:[#allocation5 + $0x278] sm:$0xff]
    %v190 = vld [vmem:[#allocation5 + $0x280] sm:$0xff]
    %v191 = vld [vmem:[#allocation5 + $0x288] sm:$0xff]
    %v192 = vld [vmem:[#allocation5 + $0x290] sm:$0xff]
    %v193 = vld [vmem:[#allocation5 + $0x298] sm:$0xff]
    %v194 = vld [vmem:[#allocation5 + $0x2a0] sm:$0xff]
    %v195 = vld [vmem:[#allocation5 + $0x2a8] sm:$0xff]
    %v196 = vld [vmem:[#allocation5 + $0x2b0] sm:$0xff]
    %v197 = vld [vmem:[#allocation5 + $0x2b8] sm:$0xff]
    %v198 = vld [vmem:[#allocation5 + $0x2c0] sm:$0xff]
    %v199 = vld [vmem:[#allocation5 + $0x2c8] sm:$0xff]
    %v200 = vld [vmem:[#allocation5 + $0x2d0] sm:$0xff]
    %v201 = vld [vmem:[#allocation5 + $0x2d8] sm:$0xff]
    %v202 = vld [vmem:[#allocation5 + $0x2e0] sm:$0xff]
    %v203 = vld [vmem:[#allocation5 + $0x2e8] sm:$0xff]
    %v204 = vld [vmem:[#allocation5 + $0x2f0] sm:$0xff]
    %v205 = vld [vmem:[#allocation5 + $0x2f8] sm:$0xff]
    %v206 = vld [vmem:[#allocation5 + $0x300] sm:$0xff]
    %v207 = vld [vmem:[#allocation5 + $0x308] sm:$0xff]
    %v208 = vld [vmem:[#allocation5 + $0x310] sm:$0xff]
    %v209 = vld [vmem:[#allocation5 + $0x318] sm:$0xff]
    %v210 = vld [vmem:[#allocation5 + $0x320] sm:$0xff]
    %v211 = vld [vmem:[#allocation5 + $0x328] sm:$0xff]
    %v212 = vld [vmem:[#allocation5 + $0x330] sm:$0xff]
    %v213 = vld [vmem:[#allocation5 + $0x338] sm:$0xff]
    %v214 = vld [vmem:[#allocation5 + $0x340] sm:$0xff]
    %v215 = vld [vmem:[#allocation5 + $0x348] sm:$0xff]
    %v216 = vld [vmem:[#allocation5 + $0x350] sm:$0xff]
    %v217 = vld [vmem:[#allocation5 + $0x358] sm:$0xff]
    %v218 = vld [vmem:[#allocation5 + $0x360] sm:$0xff]
    %v219 = vld [vmem:[#allocation5 + $0x368] sm:$0xff]
    %v220 = vld [vmem:[#allocation5 + $0x370] sm:$0xff]
    %v221 = vld [vmem:[#allocation5 + $0x378] sm:$0xff]
    %v222 = vld [vmem:[#allocation5 + $0x380] sm:$0xff]
    %v223 = vld [vmem:[#allocation5 + $0x388] sm:$0xff]
    %v224 = vld [vmem:[#allocation5 + $0x390] sm:$0xff]
    %v225 = vld [vmem:[#allocation5 + $0x398] sm:$0xff]
    %v226 = vld [vmem:[#allocation5 + $0x3a0] sm:$0xff]
    %v227 = vld [vmem:[#allocation5 + $0x3a8] sm:$0xff]
    %v228 = vld [vmem:[#allocation5 + $0x3b0] sm:$0xff]
    %v229 = vld [vmem:[#allocation5 + $0x3b8] sm:$0xff]
    %v230 = vld [vmem:[#allocation5 + $0x3c0] sm:$0xff]
    %v231 = vld [vmem:[#allocation5 + $0x3c8] sm:$0xff]
    %v232 = vld [vmem:[#allocation5 + $0x3d0] sm:$0xff]
    %v233 = vld [vmem:[#allocation5 + $0x3d8] sm:$0xff]
    %v234 = vld [vmem:[#allocation5 + $0x3e0] sm:$0xff]
    %v235 = vld [vmem:[#allocation5 + $0x3e8] sm:$0xff]
    %v236 = vld [vmem:[#allocation5 + $0x3f0] sm:$0xff]
    %v237 = vld [vmem:[#allocation5 + $0x3f8] sm:$0xff]
    %v238 = vld [vmem:[#allocation5 + $0x400] sm:$0xff]
    %v239 = vld [vmem:[#allocation5 + $0x408] sm:$0xff]
    %v240 = vld [vmem:[#allocation5 + $0x410] sm:$0xff]
    %v241 = vld [vmem:[#allocation5 + $0x418] sm:$0xff]
    %v242 = vld [vmem:[#allocation5 + $0x420] sm:$0xff]
    %v243 = vld [vmem:[#allocation5 + $0x428] sm:$0xff]
    %v244 = vld [vmem:[#allocation5 + $0x430] sm:$0xff]
    %v245 = vld [vmem:[#allocation5 + $0x438] sm:$0xff]
    %v246 = vld [vmem:[#allocation5 + $0x440] sm:$0xff]
    %v247 = vld [vmem:[#allocation5 + $0x448] sm:$0xff]
    %v248 = vld [vmem:[#allocation5 + $0x450] sm:$0xff]
    %v249 = vld [vmem:[#allocation5 + $0x458] sm:$0xff]
    %v250 = vld [vmem:[#allocation5 + $0x460] sm:$0xff]
    %v251 = vld [vmem:[#allocation5 + $0x468] sm:$0xff]
    %v252 = vld [vmem:[#allocation5 + $0x470] sm:$0xff]
    %v253 = vld [vmem:[#allocation5 + $0x478] sm:$0xff]
    %v254 = vld [vmem:[#allocation5 + $0x480] sm:$0xff]
    %v255 = vld [vmem:[#allocation5 + $0x488] sm:$0xff]
    %v256 = vld [vmem:[#allocation5 + $0x490] sm:$0xff]
    %v257 = vld [vmem:[#allocation5 + $0x498] sm:$0xff]
    %v258 = vld [vmem:[#allocation5 + $0x4a0] sm:$0xff]
    %v259 = vld [vmem:[#allocation5 + $0x4a8] sm:$0xff]
    %v260 = vld [vmem:[#allocation5 + $0x4b0] sm:$0xff]
    %v261 = vld [vmem:[#allocation5 + $0x4b8] sm:$0xff]
    %v262 = vld [vmem:[#allocation5 + $0x4c0] sm:$0xff]
    %v263 = vld [vmem:[#allocation5 + $0x4c8] sm:$0xff]
    %v264 = vld [vmem:[#allocation5 + $0x4d0] sm:$0xff]
    %v265 = vld [vmem:[#allocation5 + $0x4d8] sm:$0xff]
    %v266 = vld [vmem:[#allocation5 + $0x4e0] sm:$0xff]
    %v267 = vld [vmem:[#allocation5 + $0x4e8] sm:$0xff]
    %v268 = vld [vmem:[#allocation5 + $0x4f0] sm:$0xff]
    %v269 = vld [vmem:[#allocation5 + $0x4f8] sm:$0xff]
    %v270 = vld [vmem:[#allocation5 + $0x500] sm:$0xff]
    %v271 = vld [vmem:[#allocation5 + $0x508] sm:$0xff]
    %v272 = vld [vmem:[#allocation5 + $0x510] sm:$0xff]
    %v273 = vld [vmem:[#allocation5 + $0x518] sm:$0xff]
    %v274 = vld [vmem:[#allocation5 + $0x520] sm:$0xff]
    %v275 = vld [vmem:[#allocation5 + $0x528] sm:$0xff]
    %v276 = vld [vmem:[#allocation5 + $0x530] sm:$0xff]
    %v277 = vld [vmem:[#allocation5 + $0x538] sm:$0xff]
    %v278 = vld [vmem:[#allocation5 + $0x540] sm:$0xff]
    %v279 = vld [vmem:[#allocation5 + $0x548] sm:$0xff]
    %v280 = vld [vmem:[#allocation5 + $0x550] sm:$0xff]
    %v281 = vld [vmem:[#allocation5 + $0x558] sm:$0xff]
    %v282 = vld [vmem:[#allocation5 + $0x560] sm:$0xff]
    %v283 = vld [vmem:[#allocation5 + $0x568] sm:$0xff]
    %v284 = vld [vmem:[#allocation5 + $0x570] sm:$0xff]
    %v285 = vld [vmem:[#allocation5 + $0x578] sm:$0xff]
    %v286 = vld [vmem:[#allocation5 + $0x580] sm:$0xff]
    %v287 = vld [vmem:[#allocation5 + $0x588] sm:$0xff]
    %v288 = vld [vmem:[#allocation5 + $0x590] sm:$0xff]
    %v289 = vld [vmem:[#allocation5 + $0x598] sm:$0xff]
    %v290 = vld [vmem:[#allocation5 + $0x5a0] sm:$0xff]
    %v291 = vld [vmem:[#allocation5 + $0x5a8] sm:$0xff]
    %v292 = vld [vmem:[#allocation5 + $0x5b0] sm:$0xff]
    %v293 = vld [vmem:[#allocation5 + $0x5b8] sm:$0xff]
    %v294 = vld [vmem:[#allocation5 + $0x5c0] sm:$0xff]
    %v295 = vld [vmem:[#allocation5 + $0x5c8] sm:$0xff]
    %v296 = vld [vmem:[#allocation5 + $0x5d0] sm:$0xff]
    %v297 = vld [vmem:[#allocation5 + $0x5d8] sm:$0xff]
    %v298 = vld [vmem:[#allocation5 + $0x5e0] sm:$0xff]
    %v299 = vld [vmem:[#allocation5 + $0x5e8] sm:$0xff]
    %v300 = vld [vmem:[#allocation5 + $0x5f0] sm:$0xff]
    %v301 = vld [vmem:[#allocation5 + $0x5f8] sm:$0xff]
    %v302 = vld [vmem:[#allocation5 + $0x600] sm:$0xff]
    %v303 = vld [vmem:[#allocation5 + $0x608] sm:$0xff]
    %v304 = vld [vmem:[#allocation5 + $0x610] sm:$0xff]
    %v305 = vld [vmem:[#allocation5 + $0x618] sm:$0xff]
    %v306 = vld [vmem:[#allocation5 + $0x620] sm:$0xff]
    %v307 = vld [vmem:[#allocation5 + $0x628] sm:$0xff]
    %v308 = vld [vmem:[#allocation5 + $0x630] sm:$0xff]
    %v309 = vld [vmem:[#allocation5 + $0x638] sm:$0xff]
    %v310 = vld [vmem:[#allocation5 + $0x640] sm:$0xff]
    %v311 = vld [vmem:[#allocation5 + $0x648] sm:$0xff]
    %v312 = vld [vmem:[#allocation5 + $0x650] sm:$0xff]
    %v313 = vld [vmem:[#allocation5 + $0x658] sm:$0xff]
    %v314 = vld [vmem:[#allocation5 + $0x660] sm:$0xff]
    %v315 = vld [vmem:[#allocation5 + $0x668] sm:$0xff]
    %v316 = vld [vmem:[#allocation5 + $0x670] sm:$0xff]
    %v317 = vld [vmem:[#allocation5 + $0x678] sm:$0xff]
    %v318 = vld [vmem:[#allocation5 + $0x680] sm:$0xff]
    %v319 = vld [vmem:[#allocation5 + $0x688] sm:$0xff]
    %v320 = vld [vmem:[#allocation5 + $0x690] sm:$0xff]
    %v321 = vld [vmem:[#allocation5 + $0x698] sm:$0xff]
    %v322 = vld [vmem:[#allocation5 + $0x6a0] sm:$0xff]
    %v323 = vld [vmem:[#allocation5 + $0x6a8] sm:$0xff]
    %v324 = vld [vmem:[#allocation5 + $0x6b0] sm:$0xff]
    %v325 = vld [vmem:[#allocation5 + $0x6b8] sm:$0xff]
    %v326 = vld [vmem:[#allocation5 + $0x6c0] sm:$0xff]
    %v327 = vld [vmem:[#allocation5 + $0x6c8] sm:$0xff]
    %v328 = vld [vmem:[#allocation5 + $0x6d0] sm:$0xff]
    %v329 = vld [vmem:[#allocation5 + $0x6d8] sm:$0xff]
    %v330 = vld [vmem:[#allocation5 + $0x6e0] sm:$0xff]
    %v331 = vld [vmem:[#allocation5 + $0x6e8] sm:$0xff]
    %v332 = vld [vmem:[#allocation5 + $0x6f0] sm:$0xff]
    %v333 = vld [vmem:[#allocation5 + $0x6f8] sm:$0xff]
    %v334 = vld [vmem:[#allocation5 + $0x700] sm:$0xff]
    %v335 = vld [vmem:[#allocation5 + $0x708] sm:$0xff]
    %v336 = vld [vmem:[#allocation5 + $0x710] sm:$0xff]
    %v337 = vld [vmem:[#allocation5 + $0x718] sm:$0xff]
    %v338 = vld [vmem:[#allocation5 + $0x720] sm:$0xff]
    %v339 = vld [vmem:[#allocation5 + $0x728] sm:$0xff]
    %v340 = vld [vmem:[#allocation5 + $0x730] sm:$0xff]
    %v341 = vld [vmem:[#allocation5 + $0x738] sm:$0xff]
    %v342 = vld [vmem:[#allocation5 + $0x740] sm:$0xff]
    %v343 = vld [vmem:[#allocation5 + $0x748] sm:$0xff]
    %v344 = vld [vmem:[#allocation5 + $0x750] sm:$0xff]
    %v345 = vld [vmem:[#allocation5 + $0x758] sm:$0xff]
    %v346 = vld [vmem:[#allocation5 + $0x760] sm:$0xff]
    %v347 = vld [vmem:[#allocation5 + $0x768] sm:$0xff]
    %v348 = vld [vmem:[#allocation5 + $0x770] sm:$0xff]
    %v349 = vld [vmem:[#allocation5 + $0x778] sm:$0xff]
    %v350 = vld [vmem:[#allocation5 + $0x780] sm:$0xff]
    %v351 = vld [vmem:[#allocation5 + $0x788] sm:$0xff]
    %v352 = vld [vmem:[#allocation5 + $0x790] sm:$0xff]
    %v353 = vld [vmem:[#allocation5 + $0x798] sm:$0xff]
    %v354 = vld [vmem:[#allocation5 + $0x7a0] sm:$0xff]
    %v355 = vld [vmem:[#allocation5 + $0x7a8] sm:$0xff]
    %v356 = vld [vmem:[#allocation5 + $0x7b0] sm:$0xff]
    %v357 = vld [vmem:[#allocation5 + $0x7b8] sm:$0xff]
    %v358 = vld [vmem:[#allocation5 + $0x7c0] sm:$0xff]
    %v359 = vld [vmem:[#allocation5 + $0x7c8] sm:$0xff]
    %v360 = vld [vmem:[#allocation5 + $0x7d0] sm:$0xff]
    %v361 = vld [vmem:[#allocation5 + $0x7d8] sm:$0xff]
    %v362 = vld [vmem:[#allocation5 + $0x7e0] sm:$0xff]
    %v363 = vld [vmem:[#allocation5 + $0x7e8] sm:$0xff]
    %v364 = vld [vmem:[#allocation5 + $0x7f0] sm:$0xff]
    %v365 = vld [vmem:[#allocation5 + $0x7f8] sm:$0xff]
    %v366 = vld [vmem:[%s2] sm:$0xf]
    %v368 = vlaneseq
    %v369 = vshrl.u32 %v368, 7
    %v370 = vsub.s32 0, %v369
    %v371 = vrot.slane %v366, %v370
    %v372 = vlaneseq
    %v373 = vshrl.u32 %v372, 7
    %v374 = vsub.s32 1, %v373
    %v375 = vrot.slane %v366, %v374
    %v376 = vlaneseq
    %v377 = vshrl.u32 %v376, 7
    %v378 = vsub.s32 2, %v377
    %v379 = vrot.slane %v366, %v378
    %v380 = vlaneseq
    %v381 = vshrl.u32 %v380, 7
    %v382 = vsub.s32 3, %v381
    %v383 = vrot.slane %v366, %v382
    %v644 = vunpack.c.l.b16 %v110
    %v645 = vunpack.c.h.b16 %v110
    %v646 = vunpack.c.l.b16 %v111
    %v647 = vunpack.c.h.b16 %v111
    %v648 = vunpack.c.l.b16 %v112
    %v649 = vunpack.c.h.b16 %v112
    %v650 = vunpack.c.l.b16 %v113
    %v651 = vunpack.c.h.b16 %v113
    %v652 = vunpack.c.l.b16 %v114
    %v653 = vunpack.c.h.b16 %v114
    %v654 = vunpack.c.l.b16 %v115
    %v655 = vunpack.c.h.b16 %v115
    %v656 = vunpack.c.l.b16 %v116
    %v657 = vunpack.c.h.b16 %v116
    %v658 = vunpack.c.l.b16 %v117
    %v659 = vunpack.c.h.b16 %v117
    %v660 = vunpack.c.l.b16 %v118
    %v661 = vunpack.c.h.b16 %v118
    %v662 = vunpack.c.l.b16 %v119
    %v663 = vunpack.c.h.b16 %v119
    %v664 = vunpack.c.l.b16 %v120
    %v665 = vunpack.c.h.b16 %v120
    %v666 = vunpack.c.l.b16 %v121
    %v667 = vunpack.c.h.b16 %v121
    %v668 = vunpack.c.l.b16 %v122
    %v669 = vunpack.c.h.b16 %v122
    %v670 = vunpack.c.l.b16 %v123
    %v671 = vunpack.c.h.b16 %v123
    %v672 = vunpack.c.l.b16 %v124
    %v673 = vunpack.c.h.b16 %v124
    %v674 = vunpack.c.l.b16 %v125
    %v675 = vunpack.c.h.b16 %v125
    %v676 = vunpack.c.l.b16 %v126
    %v677 = vunpack.c.h.b16 %v126
    %v678 = vunpack.c.l.b16 %v127
    %v679 = vunpack.c.h.b16 %v127
    %v680 = vunpack.c.l.b16 %v128
    %v681 = vunpack.c.h.b16 %v128
    %v682 = vunpack.c.l.b16 %v129
    %v683 = vunpack.c.h.b16 %v129
    %v684 = vunpack.c.l.b16 %v130
    %v685 = vunpack.c.h.b16 %v130
    %v686 = vunpack.c.l.b16 %v131
    %v687 = vunpack.c.h.b16 %v131
    %v688 = vunpack.c.l.b16 %v132
    %v689 = vunpack.c.h.b16 %v132
    %v690 = vunpack.c.l.b16 %v133
    %v691 = vunpack.c.h.b16 %v133
    %v692 = vunpack.c.l.b16 %v134
    %v693 = vunpack.c.h.b16 %v134
    %v694 = vunpack.c.l.b16 %v135
    %v695 = vunpack.c.h.b16 %v135
    %v696 = vunpack.c.l.b16 %v136
    %v697 = vunpack.c.h.b16 %v136
    %v698 = vunpack.c.l.b16 %v137
    %v699 = vunpack.c.h.b16 %v137
    %v700 = vunpack.c.l.b16 %v138
    %v701 = vunpack.c.h.b16 %v138
    %v702 = vunpack.c.l.b16 %v139
    %v703 = vunpack.c.h.b16 %v139
    %v704 = vunpack.c.l.b16 %v140
    %v705 = vunpack.c.h.b16 %v140
    %v706 = vunpack.c.l.b16 %v141
    %v707 = vunpack.c.h.b16 %v141
    %v708 = vunpack.c.l.b16 %v142
    %v709 = vunpack.c.h.b16 %v142
    %v710 = vunpack.c.l.b16 %v143
    %v711 = vunpack.c.h.b16 %v143
    %v712 = vunpack.c.l.b16 %v144
    %v713 = vunpack.c.h.b16 %v144
    %v714 = vunpack.c.l.b16 %v145
    %v715 = vunpack.c.h.b16 %v145
    %v716 = vunpack.c.l.b16 %v146
    %v717 = vunpack.c.h.b16 %v146
    %v718 = vunpack.c.l.b16 %v147
    %v719 = vunpack.c.h.b16 %v147
    %v720 = vunpack.c.l.b16 %v148
    %v721 = vunpack.c.h.b16 %v148
    %v722 = vunpack.c.l.b16 %v149
    %v723 = vunpack.c.h.b16 %v149
    %v724 = vunpack.c.l.b16 %v150
    %v725 = vunpack.c.h.b16 %v150
    %v726 = vunpack.c.l.b16 %v151
    %v727 = vunpack.c.h.b16 %v151
    %v728 = vunpack.c.l.b16 %v152
    %v729 = vunpack.c.h.b16 %v152
    %v730 = vunpack.c.l.b16 %v153
    %v731 = vunpack.c.h.b16 %v153
    %v732 = vunpack.c.l.b16 %v154
    %v733 = vunpack.c.h.b16 %v154
    %v734 = vunpack.c.l.b16 %v155
    %v735 = vunpack.c.h.b16 %v155
    %v736 = vunpack.c.l.b16 %v156
    %v737 = vunpack.c.h.b16 %v156
    %v738 = vunpack.c.l.b16 %v157
    %v739 = vunpack.c.h.b16 %v157
    %v740 = vunpack.c.l.b16 %v158
    %v741 = vunpack.c.h.b16 %v158
    %v742 = vunpack.c.l.b16 %v159
    %v743 = vunpack.c.h.b16 %v159
    %v744 = vunpack.c.l.b16 %v160
    %v745 = vunpack.c.h.b16 %v160
    %v746 = vunpack.c.l.b16 %v161
    %v747 = vunpack.c.h.b16 %v161
    %v748 = vunpack.c.l.b16 %v162
    %v749 = vunpack.c.h.b16 %v162
    %v750 = vunpack.c.l.b16 %v163
    %v751 = vunpack.c.h.b16 %v163
    %v752 = vunpack.c.l.b16 %v164
    %v753 = vunpack.c.h.b16 %v164
    %v754 = vunpack.c.l.b16 %v165
    %v755 = vunpack.c.h.b16 %v165
    %v756 = vunpack.c.l.b16 %v166
    %v757 = vunpack.c.h.b16 %v166
    %v758 = vunpack.c.l.b16 %v167
    %v759 = vunpack.c.h.b16 %v167
    %v760 = vunpack.c.l.b16 %v168
    %v761 = vunpack.c.h.b16 %v168
    %v762 = vunpack.c.l.b16 %v169
    %v763 = vunpack.c.h.b16 %v169
    %v764 = vunpack.c.l.b16 %v170
    %v765 = vunpack.c.h.b16 %v170
    %v766 = vunpack.c.l.b16 %v171
    %v767 = vunpack.c.h.b16 %v171
    %v768 = vunpack.c.l.b16 %v172
    %v769 = vunpack.c.h.b16 %v172
    %v770 = vunpack.c.l.b16 %v173
    %v771 = vunpack.c.h.b16 %v173
    %v772 = vunpack.c.l.b16 %v174
    %v773 = vunpack.c.h.b16 %v174
    %v774 = vunpack.c.l.b16 %v175
    %v775 = vunpack.c.h.b16 %v175
    %v776 = vunpack.c.l.b16 %v176
    %v777 = vunpack.c.h.b16 %v176
    %v778 = vunpack.c.l.b16 %v177
    %v779 = vunpack.c.h.b16 %v177
    %v780 = vunpack.c.l.b16 %v178
    %v781 = vunpack.c.h.b16 %v178
    %v782 = vunpack.c.l.b16 %v179
    %v783 = vunpack.c.h.b16 %v179
    %v784 = vunpack.c.l.b16 %v180
    %v785 = vunpack.c.h.b16 %v180
    %v786 = vunpack.c.l.b16 %v181
    %v787 = vunpack.c.h.b16 %v181
    %v788 = vunpack.c.l.b16 %v182
    %v789 = vunpack.c.h.b16 %v182
    %v790 = vunpack.c.l.b16 %v183
    %v791 = vunpack.c.h.b16 %v183
    %v792 = vunpack.c.l.b16 %v184
    %v793 = vunpack.c.h.b16 %v184
    %v794 = vunpack.c.l.b16 %v185
    %v795 = vunpack.c.h.b16 %v185
    %v796 = vunpack.c.l.b16 %v186
    %v797 = vunpack.c.h.b16 %v186
    %v798 = vunpack.c.l.b16 %v187
    %v799 = vunpack.c.h.b16 %v187
    %v800 = vunpack.c.l.b16 %v188
    %v801 = vunpack.c.h.b16 %v188
    %v802 = vunpack.c.l.b16 %v189
    %v803 = vunpack.c.h.b16 %v189
    %v804 = vunpack.c.l.b16 %v190
    %v805 = vunpack.c.h.b16 %v190
    %v806 = vunpack.c.l.b16 %v191
    %v807 = vunpack.c.h.b16 %v191
    %v808 = vunpack.c.l.b16 %v192
    %v809 = vunpack.c.h.b16 %v192
    %v810 = vunpack.c.l.b16 %v193
    %v811 = vunpack.c.h.b16 %v193
    %v812 = vunpack.c.l.b16 %v194
    %v813 = vunpack.c.h.b16 %v194
    %v814 = vunpack.c.l.b16 %v195
    %v815 = vunpack.c.h.b16 %v195
    %v816 = vunpack.c.l.b16 %v196
    %v817 = vunpack.c.h.b16 %v196
    %v818 = vunpack.c.l.b16 %v197
    %v819 = vunpack.c.h.b16 %v197
    %v820 = vunpack.c.l.b16 %v198
    %v821 = vunpack.c.h.b16 %v198
    %v822 = vunpack.c.l.b16 %v199
    %v823 = vunpack.c.h.b16 %v199
    %v824 = vunpack.c.l.b16 %v200
    %v825 = vunpack.c.h.b16 %v200
    %v826 = vunpack.c.l.b16 %v201
    %v827 = vunpack.c.h.b16 %v201
    %v828 = vunpack.c.l.b16 %v202
    %v829 = vunpack.c.h.b16 %v202
    %v830 = vunpack.c.l.b16 %v203
    %v831 = vunpack.c.h.b16 %v203
    %v832 = vunpack.c.l.b16 %v204
    %v833 = vunpack.c.h.b16 %v204
    %v834 = vunpack.c.l.b16 %v205
    %v835 = vunpack.c.h.b16 %v205
    %v836 = vunpack.c.l.b16 %v206
    %v837 = vunpack.c.h.b16 %v206
    %v838 = vunpack.c.l.b16 %v207
    %v839 = vunpack.c.h.b16 %v207
    %v840 = vunpack.c.l.b16 %v208
    %v841 = vunpack.c.h.b16 %v208
    %v842 = vunpack.c.l.b16 %v209
    %v843 = vunpack.c.h.b16 %v209
    %v844 = vunpack.c.l.b16 %v210
    %v845 = vunpack.c.h.b16 %v210
    %v846 = vunpack.c.l.b16 %v211
    %v847 = vunpack.c.h.b16 %v211
    %v848 = vunpack.c.l.b16 %v212
    %v849 = vunpack.c.h.b16 %v212
    %v850 = vunpack.c.l.b16 %v213
    %v851 = vunpack.c.h.b16 %v213
    %v852 = vunpack.c.l.b16 %v214
    %v853 = vunpack.c.h.b16 %v214
    %v854 = vunpack.c.l.b16 %v215
    %v855 = vunpack.c.h.b16 %v215
    %v856 = vunpack.c.l.b16 %v216
    %v857 = vunpack.c.h.b16 %v216
    %v858 = vunpack.c.l.b16 %v217
    %v859 = vunpack.c.h.b16 %v217
    %v860 = vunpack.c.l.b16 %v218
    %v861 = vunpack.c.h.b16 %v218
    %v862 = vunpack.c.l.b16 %v219
    %v863 = vunpack.c.h.b16 %v219
    %v864 = vunpack.c.l.b16 %v220
    %v865 = vunpack.c.h.b16 %v220
    %v866 = vunpack.c.l.b16 %v221
    %v867 = vunpack.c.h.b16 %v221
    %v868 = vunpack.c.l.b16 %v222
    %v869 = vunpack.c.h.b16 %v222
    %v870 = vunpack.c.l.b16 %v223
    %v871 = vunpack.c.h.b16 %v223
    %v872 = vunpack.c.l.b16 %v224
    %v873 = vunpack.c.h.b16 %v224
    %v874 = vunpack.c.l.b16 %v225
    %v875 = vunpack.c.h.b16 %v225
    %v876 = vunpack.c.l.b16 %v226
    %v877 = vunpack.c.h.b16 %v226
    %v878 = vunpack.c.l.b16 %v227
    %v879 = vunpack.c.h.b16 %v227
    %v880 = vunpack.c.l.b16 %v228
    %v881 = vunpack.c.h.b16 %v228
    %v882 = vunpack.c.l.b16 %v229
    %v883 = vunpack.c.h.b16 %v229
    %v884 = vunpack.c.l.b16 %v230
    %v885 = vunpack.c.h.b16 %v230
    %v886 = vunpack.c.l.b16 %v231
    %v887 = vunpack.c.h.b16 %v231
    %v888 = vunpack.c.l.b16 %v232
    %v889 = vunpack.c.h.b16 %v232
    %v890 = vunpack.c.l.b16 %v233
    %v891 = vunpack.c.h.b16 %v233
    %v892 = vunpack.c.l.b16 %v234
    %v893 = vunpack.c.h.b16 %v234
    %v894 = vunpack.c.l.b16 %v235
    %v895 = vunpack.c.h.b16 %v235
    %v896 = vunpack.c.l.b16 %v236
    %v897 = vunpack.c.h.b16 %v236
    %v898 = vunpack.c.l.b16 %v237
    %v899 = vunpack.c.h.b16 %v237
    %v900 = vunpack.c.l.b16 %v238
    %v901 = vunpack.c.h.b16 %v238
    %v902 = vunpack.c.l.b16 %v239
    %v903 = vunpack.c.h.b16 %v239
    %v904 = vunpack.c.l.b16 %v240
    %v905 = vunpack.c.h.b16 %v240
    %v906 = vunpack.c.l.b16 %v241
    %v907 = vunpack.c.h.b16 %v241
    %v908 = vunpack.c.l.b16 %v242
    %v909 = vunpack.c.h.b16 %v242
    %v910 = vunpack.c.l.b16 %v243
    %v911 = vunpack.c.h.b16 %v243
    %v912 = vunpack.c.l.b16 %v244
    %v913 = vunpack.c.h.b16 %v244
    %v914 = vunpack.c.l.b16 %v245
    %v915 = vunpack.c.h.b16 %v245
    %v916 = vunpack.c.l.b16 %v246
    %v917 = vunpack.c.h.b16 %v246
    %v918 = vunpack.c.l.b16 %v247
    %v919 = vunpack.c.h.b16 %v247
    %v920 = vunpack.c.l.b16 %v248
    %v921 = vunpack.c.h.b16 %v248
    %v922 = vunpack.c.l.b16 %v249
    %v923 = vunpack.c.h.b16 %v249
    %v924 = vunpack.c.l.b16 %v250
    %v925 = vunpack.c.h.b16 %v250
    %v926 = vunpack.c.l.b16 %v251
    %v927 = vunpack.c.h.b16 %v251
    %v928 = vunpack.c.l.b16 %v252
    %v929 = vunpack.c.h.b16 %v252
    %v930 = vunpack.c.l.b16 %v253
    %v931 = vunpack.c.h.b16 %v253
    %v932 = vunpack.c.l.b16 %v254
    %v933 = vunpack.c.h.b16 %v254
    %v934 = vunpack.c.l.b16 %v255
    %v935 = vunpack.c.h.b16 %v255
    %v936 = vunpack.c.l.b16 %v256
    %v937 = vunpack.c.h.b16 %v256
    %v938 = vunpack.c.l.b16 %v257
    %v939 = vunpack.c.h.b16 %v257
    %v940 = vunpack.c.l.b16 %v258
    %v941 = vunpack.c.h.b16 %v258
    %v942 = vunpack.c.l.b16 %v259
    %v943 = vunpack.c.h.b16 %v259
    %v944 = vunpack.c.l.b16 %v260
    %v945 = vunpack.c.h.b16 %v260
    %v946 = vunpack.c.l.b16 %v261
    %v947 = vunpack.c.h.b16 %v261
    %v948 = vunpack.c.l.b16 %v262
    %v949 = vunpack.c.h.b16 %v262
    %v950 = vunpack.c.l.b16 %v263
    %v951 = vunpack.c.h.b16 %v263
    %v952 = vunpack.c.l.b16 %v264
    %v953 = vunpack.c.h.b16 %v264
    %v954 = vunpack.c.l.b16 %v265
    %v955 = vunpack.c.h.b16 %v265
    %v956 = vunpack.c.l.b16 %v266
    %v957 = vunpack.c.h.b16 %v266
    %v958 = vunpack.c.l.b16 %v267
    %v959 = vunpack.c.h.b16 %v267
    %v960 = vunpack.c.l.b16 %v268
    %v961 = vunpack.c.h.b16 %v268
    %v962 = vunpack.c.l.b16 %v269
    %v963 = vunpack.c.h.b16 %v269
    %v964 = vunpack.c.l.b16 %v270
    %v965 = vunpack.c.h.b16 %v270
    %v966 = vunpack.c.l.b16 %v271
    %v967 = vunpack.c.h.b16 %v271
    %v968 = vunpack.c.l.b16 %v272
    %v969 = vunpack.c.h.b16 %v272
    %v970 = vunpack.c.l.b16 %v273
    %v971 = vunpack.c.h.b16 %v273
    %v972 = vunpack.c.l.b16 %v274
    %v973 = vunpack.c.h.b16 %v274
    %v974 = vunpack.c.l.b16 %v275
    %v975 = vunpack.c.h.b16 %v275
    %v976 = vunpack.c.l.b16 %v276
    %v977 = vunpack.c.h.b16 %v276
    %v978 = vunpack.c.l.b16 %v277
    %v979 = vunpack.c.h.b16 %v277
    %v980 = vunpack.c.l.b16 %v278
    %v981 = vunpack.c.h.b16 %v278
    %v982 = vunpack.c.l.b16 %v279
    %v983 = vunpack.c.h.b16 %v279
    %v984 = vunpack.c.l.b16 %v280
    %v985 = vunpack.c.h.b16 %v280
    %v986 = vunpack.c.l.b16 %v281
    %v987 = vunpack.c.h.b16 %v281
    %v988 = vunpack.c.l.b16 %v282
    %v989 = vunpack.c.h.b16 %v282
    %v990 = vunpack.c.l.b16 %v283
    %v991 = vunpack.c.h.b16 %v283
    %v992 = vunpack.c.l.b16 %v284
    %v993 = vunpack.c.h.b16 %v284
    %v994 = vunpack.c.l.b16 %v285
    %v995 = vunpack.c.h.b16 %v285
    %v996 = vunpack.c.l.b16 %v286
    %v997 = vunpack.c.h.b16 %v286
    %v998 = vunpack.c.l.b16 %v287
    %v999 = vunpack.c.h.b16 %v287
    %v1000 = vunpack.c.l.b16 %v288
    %v1001 = vunpack.c.h.b16 %v288
    %v1002 = vunpack.c.l.b16 %v289
    %v1003 = vunpack.c.h.b16 %v289
    %v1004 = vunpack.c.l.b16 %v290
    %v1005 = vunpack.c.h.b16 %v290
    %v1006 = vunpack.c.l.b16 %v291
    %v1007 = vunpack.c.h.b16 %v291
    %v1008 = vunpack.c.l.b16 %v292
    %v1009 = vunpack.c.h.b16 %v292
    %v1010 = vunpack.c.l.b16 %v293
    %v1011 = vunpack.c.h.b16 %v293
    %v1012 = vunpack.c.l.b16 %v294
    %v1013 = vunpack.c.h.b16 %v294
    %v1014 = vunpack.c.l.b16 %v295
    %v1015 = vunpack.c.h.b16 %v295
    %v1016 = vunpack.c.l.b16 %v296
    %v1017 = vunpack.c.h.b16 %v296
    %v1018 = vunpack.c.l.b16 %v297
    %v1019 = vunpack.c.h.b16 %v297
    %v1020 = vunpack.c.l.b16 %v298
    %v1021 = vunpack.c.h.b16 %v298
    %v1022 = vunpack.c.l.b16 %v299
    %v1023 = vunpack.c.h.b16 %v299
    %v1024 = vunpack.c.l.b16 %v300
    %v1025 = vunpack.c.h.b16 %v300
    %v1026 = vunpack.c.l.b16 %v301
    %v1027 = vunpack.c.h.b16 %v301
    %v1028 = vunpack.c.l.b16 %v302
    %v1029 = vunpack.c.h.b16 %v302
    %v1030 = vunpack.c.l.b16 %v303
    %v1031 = vunpack.c.h.b16 %v303
    %v1032 = vunpack.c.l.b16 %v304
    %v1033 = vunpack.c.h.b16 %v304
    %v1034 = vunpack.c.l.b16 %v305
    %v1035 = vunpack.c.h.b16 %v305
    %v1036 = vunpack.c.l.b16 %v306
    %v1037 = vunpack.c.h.b16 %v306
    %v1038 = vunpack.c.l.b16 %v307
    %v1039 = vunpack.c.h.b16 %v307
    %v1040 = vunpack.c.l.b16 %v308
    %v1041 = vunpack.c.h.b16 %v308
    %v1042 = vunpack.c.l.b16 %v309
    %v1043 = vunpack.c.h.b16 %v309
    %v1044 = vunpack.c.l.b16 %v310
    %v1045 = vunpack.c.h.b16 %v310
    %v1046 = vunpack.c.l.b16 %v311
    %v1047 = vunpack.c.h.b16 %v311
    %v1048 = vunpack.c.l.b16 %v312
    %v1049 = vunpack.c.h.b16 %v312
    %v1050 = vunpack.c.l.b16 %v313
    %v1051 = vunpack.c.h.b16 %v313
    %v1052 = vunpack.c.l.b16 %v314
    %v1053 = vunpack.c.h.b16 %v314
    %v1054 = vunpack.c.l.b16 %v315
    %v1055 = vunpack.c.h.b16 %v315
    %v1056 = vunpack.c.l.b16 %v316
    %v1057 = vunpack.c.h.b16 %v316
    %v1058 = vunpack.c.l.b16 %v317
    %v1059 = vunpack.c.h.b16 %v317
    %v1060 = vunpack.c.l.b16 %v318
    %v1061 = vunpack.c.h.b16 %v318
    %v1062 = vunpack.c.l.b16 %v319
    %v1063 = vunpack.c.h.b16 %v319
    %v1064 = vunpack.c.l.b16 %v320
    %v1065 = vunpack.c.h.b16 %v320
    %v1066 = vunpack.c.l.b16 %v321
    %v1067 = vunpack.c.h.b16 %v321
    %v1068 = vunpack.c.l.b16 %v322
    %v1069 = vunpack.c.h.b16 %v322
    %v1070 = vunpack.c.l.b16 %v323
    %v1071 = vunpack.c.h.b16 %v323
    %v1072 = vunpack.c.l.b16 %v324
    %v1073 = vunpack.c.h.b16 %v324
    %v1074 = vunpack.c.l.b16 %v325
    %v1075 = vunpack.c.h.b16 %v325
    %v1076 = vunpack.c.l.b16 %v326
    %v1077 = vunpack.c.h.b16 %v326
    %v1078 = vunpack.c.l.b16 %v327
    %v1079 = vunpack.c.h.b16 %v327
    %v1080 = vunpack.c.l.b16 %v328
    %v1081 = vunpack.c.h.b16 %v328
    %v1082 = vunpack.c.l.b16 %v329
    %v1083 = vunpack.c.h.b16 %v329
    %v1084 = vunpack.c.l.b16 %v330
    %v1085 = vunpack.c.h.b16 %v330
    %v1086 = vunpack.c.l.b16 %v331
    %v1087 = vunpack.c.h.b16 %v331
    %v1088 = vunpack.c.l.b16 %v332
    %v1089 = vunpack.c.h.b16 %v332
    %v1090 = vunpack.c.l.b16 %v333
    %v1091 = vunpack.c.h.b16 %v333
    %v1092 = vunpack.c.l.b16 %v334
    %v1093 = vunpack.c.h.b16 %v334
    %v1094 = vunpack.c.l.b16 %v335
    %v1095 = vunpack.c.h.b16 %v335
    %v1096 = vunpack.c.l.b16 %v336
    %v1097 = vunpack.c.h.b16 %v336
    %v1098 = vunpack.c.l.b16 %v337
    %v1099 = vunpack.c.h.b16 %v337
    %v1100 = vunpack.c.l.b16 %v338
    %v1101 = vunpack.c.h.b16 %v338
    %v1102 = vunpack.c.l.b16 %v339
    %v1103 = vunpack.c.h.b16 %v339
    %v1104 = vunpack.c.l.b16 %v340
    %v1105 = vunpack.c.h.b16 %v340
    %v1106 = vunpack.c.l.b16 %v341
    %v1107 = vunpack.c.h.b16 %v341
    %v1108 = vunpack.c.l.b16 %v342
    %v1109 = vunpack.c.h.b16 %v342
    %v1110 = vunpack.c.l.b16 %v343
    %v1111 = vunpack.c.h.b16 %v343
    %v1112 = vunpack.c.l.b16 %v344
    %v1113 = vunpack.c.h.b16 %v344
    %v1114 = vunpack.c.l.b16 %v345
    %v1115 = vunpack.c.h.b16 %v345
    %v1116 = vunpack.c.l.b16 %v346
    %v1117 = vunpack.c.h.b16 %v346
    %v1118 = vunpack.c.l.b16 %v347
    %v1119 = vunpack.c.h.b16 %v347
    %v1120 = vunpack.c.l.b16 %v348
    %v1121 = vunpack.c.h.b16 %v348
    %v1122 = vunpack.c.l.b16 %v349
    %v1123 = vunpack.c.h.b16 %v349
    %v1124 = vunpack.c.l.b16 %v350
    %v1125 = vunpack.c.h.b16 %v350
    %v1126 = vunpack.c.l.b16 %v351
    %v1127 = vunpack.c.h.b16 %v351
    %v1128 = vunpack.c.l.b16 %v352
    %v1129 = vunpack.c.h.b16 %v352
    %v1130 = vunpack.c.l.b16 %v353
    %v1131 = vunpack.c.h.b16 %v353
    %v1132 = vunpack.c.l.b16 %v354
    %v1133 = vunpack.c.h.b16 %v354
    %v1134 = vunpack.c.l.b16 %v355
    %v1135 = vunpack.c.h.b16 %v355
    %v1136 = vunpack.c.l.b16 %v356
    %v1137 = vunpack.c.h.b16 %v356
    %v1138 = vunpack.c.l.b16 %v357
    %v1139 = vunpack.c.h.b16 %v357
    %v1140 = vunpack.c.l.b16 %v358
    %v1141 = vunpack.c.h.b16 %v358
    %v1142 = vunpack.c.l.b16 %v359
    %v1143 = vunpack.c.h.b16 %v359
    %v1144 = vunpack.c.l.b16 %v360
    %v1145 = vunpack.c.h.b16 %v360
    %v1146 = vunpack.c.l.b16 %v361
    %v1147 = vunpack.c.h.b16 %v361
    %v1148 = vunpack.c.l.b16 %v362
    %v1149 = vunpack.c.h.b16 %v362
    %v1150 = vunpack.c.l.b16 %v363
    %v1151 = vunpack.c.h.b16 %v363
    %v1152 = vunpack.c.l.b16 %v364
    %v1153 = vunpack.c.h.b16 %v364
    %v1154 = vunpack.c.l.b16 %v365
    %v1155 = vunpack.c.h.b16 %v365
    %v1156 = vpack.c.b16 %v648, %v644
    %v1157 = vpack.c.b16 %v649, %v645
    %v1158 = vpack.c.b16 %v650, %v646
    %v1159 = vpack.c.b16 %v651, %v647
    %v1160 = vpack.c.b16 %v656, %v652
    %v1161 = vpack.c.b16 %v657, %v653
    %v1162 = vpack.c.b16 %v658, %v654
    %v1163 = vpack.c.b16 %v659, %v655
    %v1164 = vpack.c.b16 %v664, %v660
    %v1165 = vpack.c.b16 %v665, %v661
    %v1166 = vpack.c.b16 %v666, %v662
    %v1167 = vpack.c.b16 %v667, %v663
    %v1168 = vpack.c.b16 %v672, %v668
    %v1169 = vpack.c.b16 %v673, %v669
    %v1170 = vpack.c.b16 %v674, %v670
    %v1171 = vpack.c.b16 %v675, %v671
    %v1172 = vpack.c.b16 %v680, %v676
    %v1173 = vpack.c.b16 %v681, %v677
    %v1174 = vpack.c.b16 %v682, %v678
    %v1175 = vpack.c.b16 %v683, %v679
    %v1176 = vpack.c.b16 %v688, %v684
    %v1177 = vpack.c.b16 %v689, %v685
    %v1178 = vpack.c.b16 %v690, %v686
    %v1179 = vpack.c.b16 %v691, %v687
    %v1180 = vpack.c.b16 %v696, %v692
    %v1181 = vpack.c.b16 %v697, %v693
    %v1182 = vpack.c.b16 %v698, %v694
    %v1183 = vpack.c.b16 %v699, %v695
    %v1184 = vpack.c.b16 %v704, %v700
    %v1185 = vpack.c.b16 %v705, %v701
    %v1186 = vpack.c.b16 %v706, %v702
    %v1187 = vpack.c.b16 %v707, %v703
    %v1188 = vpack.c.b16 %v712, %v708
    %v1189 = vpack.c.b16 %v713, %v709
    %v1190 = vpack.c.b16 %v714, %v710
    %v1191 = vpack.c.b16 %v715, %v711
    %v1192 = vpack.c.b16 %v720, %v716
    %v1193 = vpack.c.b16 %v721, %v717
    %v1194 = vpack.c.b16 %v722, %v718
    %v1195 = vpack.c.b16 %v723, %v719
    %v1196 = vpack.c.b16 %v728, %v724
    %v1197 = vpack.c.b16 %v729, %v725
    %v1198 = vpack.c.b16 %v730, %v726
    %v1199 = vpack.c.b16 %v731, %v727
    %v1200 = vpack.c.b16 %v736, %v732
    %v1201 = vpack.c.b16 %v737, %v733
    %v1202 = vpack.c.b16 %v738, %v734
    %v1203 = vpack.c.b16 %v739, %v735
    %v1204 = vpack.c.b16 %v744, %v740
    %v1205 = vpack.c.b16 %v745, %v741
    %v1206 = vpack.c.b16 %v746, %v742
    %v1207 = vpack.c.b16 %v747, %v743
    %v1208 = vpack.c.b16 %v752, %v748
    %v1209 = vpack.c.b16 %v753, %v749
    %v1210 = vpack.c.b16 %v754, %v750
    %v1211 = vpack.c.b16 %v755, %v751
    %v1212 = vpack.c.b16 %v760, %v756
    %v1213 = vpack.c.b16 %v761, %v757
    %v1214 = vpack.c.b16 %v762, %v758
    %v1215 = vpack.c.b16 %v763, %v759
    %v1216 = vpack.c.b16 %v768, %v764
    %v1217 = vpack.c.b16 %v769, %v765
    %v1218 = vpack.c.b16 %v770, %v766
    %v1219 = vpack.c.b16 %v771, %v767
    %v1220 = vpack.c.b16 %v776, %v772
    %v1221 = vpack.c.b16 %v777, %v773
    %v1222 = vpack.c.b16 %v778, %v774
    %v1223 = vpack.c.b16 %v779, %v775
    %v1224 = vpack.c.b16 %v784, %v780
    %v1225 = vpack.c.b16 %v785, %v781
    %v1226 = vpack.c.b16 %v786, %v782
    %v1227 = vpack.c.b16 %v787, %v783
    %v1228 = vpack.c.b16 %v792, %v788
    %v1229 = vpack.c.b16 %v793, %v789
    %v1230 = vpack.c.b16 %v794, %v790
    %v1231 = vpack.c.b16 %v795, %v791
    %v1232 = vpack.c.b16 %v800, %v796
    %v1233 = vpack.c.b16 %v801, %v797
    %v1234 = vpack.c.b16 %v802, %v798
    %v1235 = vpack.c.b16 %v803, %v799
    %v1236 = vpack.c.b16 %v808, %v804
    %v1237 = vpack.c.b16 %v809, %v805
    %v1238 = vpack.c.b16 %v810, %v806
    %v1239 = vpack.c.b16 %v811, %v807
    %v1240 = vpack.c.b16 %v816, %v812
    %v1241 = vpack.c.b16 %v817, %v813
    %v1242 = vpack.c.b16 %v818, %v814
    %v1243 = vpack.c.b16 %v819, %v815
    %v1244 = vpack.c.b16 %v824, %v820
    %v1245 = vpack.c.b16 %v825, %v821
    %v1246 = vpack.c.b16 %v826, %v822
    %v1247 = vpack.c.b16 %v827, %v823
    %v1248 = vpack.c.b16 %v832, %v828
    %v1249 = vpack.c.b16 %v833, %v829
    %v1250 = vpack.c.b16 %v834, %v830
    %v1251 = vpack.c.b16 %v835, %v831
    %v1252 = vpack.c.b16 %v840, %v836
    %v1253 = vpack.c.b16 %v841, %v837
    %v1254 = vpack.c.b16 %v842, %v838
    %v1255 = vpack.c.b16 %v843, %v839
    %v1256 = vpack.c.b16 %v848, %v844
    %v1257 = vpack.c.b16 %v849, %v845
    %v1258 = vpack.c.b16 %v850, %v846
    %v1259 = vpack.c.b16 %v851, %v847
    %v1260 = vpack.c.b16 %v856, %v852
    %v1261 = vpack.c.b16 %v857, %v853
    %v1262 = vpack.c.b16 %v858, %v854
    %v1263 = vpack.c.b16 %v859, %v855
    %v1264 = vpack.c.b16 %v864, %v860
    %v1265 = vpack.c.b16 %v865, %v861
    %v1266 = vpack.c.b16 %v866, %v862
    %v1267 = vpack.c.b16 %v867, %v863
    %v1268 = vpack.c.b16 %v872, %v868
    %v1269 = vpack.c.b16 %v873, %v869
    %v1270 = vpack.c.b16 %v874, %v870
    %v1271 = vpack.c.b16 %v875, %v871
    %v1272 = vpack.c.b16 %v880, %v876
    %v1273 = vpack.c.b16 %v881, %v877
    %v1274 = vpack.c.b16 %v882, %v878
    %v1275 = vpack.c.b16 %v883, %v879
    %v1276 = vpack.c.b16 %v888, %v884
    %v1277 = vpack.c.b16 %v889, %v885
    %v1278 = vpack.c.b16 %v890, %v886
    %v1279 = vpack.c.b16 %v891, %v887
    %v1280 = vpack.c.b16 %v896, %v892
    %v1281 = vpack.c.b16 %v897, %v893
    %v1282 = vpack.c.b16 %v898, %v894
    %v1283 = vpack.c.b16 %v899, %v895
    %v1284 = vpack.c.b16 %v904, %v900
    %v1285 = vpack.c.b16 %v905, %v901
    %v1286 = vpack.c.b16 %v906, %v902
    %v1287 = vpack.c.b16 %v907, %v903
    %v1288 = vpack.c.b16 %v912, %v908
    %v1289 = vpack.c.b16 %v913, %v909
    %v1290 = vpack.c.b16 %v914, %v910
    %v1291 = vpack.c.b16 %v915, %v911
    %v1292 = vpack.c.b16 %v920, %v916
    %v1293 = vpack.c.b16 %v921, %v917
    %v1294 = vpack.c.b16 %v922, %v918
    %v1295 = vpack.c.b16 %v923, %v919
    %v1296 = vpack.c.b16 %v928, %v924
    %v1297 = vpack.c.b16 %v929, %v925
    %v1298 = vpack.c.b16 %v930, %v926
    %v1299 = vpack.c.b16 %v931, %v927
    %v1300 = vpack.c.b16 %v936, %v932
    %v1301 = vpack.c.b16 %v937, %v933
    %v1302 = vpack.c.b16 %v938, %v934
    %v1303 = vpack.c.b16 %v939, %v935
    %v1304 = vpack.c.b16 %v944, %v940
    %v1305 = vpack.c.b16 %v945, %v941
    %v1306 = vpack.c.b16 %v946, %v942
    %v1307 = vpack.c.b16 %v947, %v943
    %v1308 = vpack.c.b16 %v952, %v948
    %v1309 = vpack.c.b16 %v953, %v949
    %v1310 = vpack.c.b16 %v954, %v950
    %v1311 = vpack.c.b16 %v955, %v951
    %v1312 = vpack.c.b16 %v960, %v956
    %v1313 = vpack.c.b16 %v961, %v957
    %v1314 = vpack.c.b16 %v962, %v958
    %v1315 = vpack.c.b16 %v963, %v959
    %v1316 = vpack.c.b16 %v968, %v964
    %v1317 = vpack.c.b16 %v969, %v965
    %v1318 = vpack.c.b16 %v970, %v966
    %v1319 = vpack.c.b16 %v971, %v967
    %v1320 = vpack.c.b16 %v976, %v972
    %v1321 = vpack.c.b16 %v977, %v973
    %v1322 = vpack.c.b16 %v978, %v974
    %v1323 = vpack.c.b16 %v979, %v975
    %v1324 = vpack.c.b16 %v984, %v980
    %v1325 = vpack.c.b16 %v985, %v981
    %v1326 = vpack.c.b16 %v986, %v982
    %v1327 = vpack.c.b16 %v987, %v983
    %v1328 = vpack.c.b16 %v992, %v988
    %v1329 = vpack.c.b16 %v993, %v989
    %v1330 = vpack.c.b16 %v994, %v990
    %v1331 = vpack.c.b16 %v995, %v991
    %v1332 = vpack.c.b16 %v1000, %v996
    %v1333 = vpack.c.b16 %v1001, %v997
    %v1334 = vpack.c.b16 %v1002, %v998
    %v1335 = vpack.c.b16 %v1003, %v999
    %v1336 = vpack.c.b16 %v1008, %v1004
    %v1337 = vpack.c.b16 %v1009, %v1005
    %v1338 = vpack.c.b16 %v1010, %v1006
    %v1339 = vpack.c.b16 %v1011, %v1007
    %v1340 = vpack.c.b16 %v1016, %v1012
    %v1341 = vpack.c.b16 %v1017, %v1013
    %v1342 = vpack.c.b16 %v1018, %v1014
    %v1343 = vpack.c.b16 %v1019, %v1015
    %v1344 = vpack.c.b16 %v1024, %v1020
    %v1345 = vpack.c.b16 %v1025, %v1021
    %v1346 = vpack.c.b16 %v1026, %v1022
    %v1347 = vpack.c.b16 %v1027, %v1023
    %v1348 = vpack.c.b16 %v1032, %v1028
    %v1349 = vpack.c.b16 %v1033, %v1029
    %v1350 = vpack.c.b16 %v1034, %v1030
    %v1351 = vpack.c.b16 %v1035, %v1031
    %v1352 = vpack.c.b16 %v1040, %v1036
    %v1353 = vpack.c.b16 %v1041, %v1037
    %v1354 = vpack.c.b16 %v1042, %v1038
    %v1355 = vpack.c.b16 %v1043, %v1039
    %v1356 = vpack.c.b16 %v1048, %v1044
    %v1357 = vpack.c.b16 %v1049, %v1045
    %v1358 = vpack.c.b16 %v1050, %v1046
    %v1359 = vpack.c.b16 %v1051, %v1047
    %v1360 = vpack.c.b16 %v1056, %v1052
    %v1361 = vpack.c.b16 %v1057, %v1053
    %v1362 = vpack.c.b16 %v1058, %v1054
    %v1363 = vpack.c.b16 %v1059, %v1055
    %v1364 = vpack.c.b16 %v1064, %v1060
    %v1365 = vpack.c.b16 %v1065, %v1061
    %v1366 = vpack.c.b16 %v1066, %v1062
    %v1367 = vpack.c.b16 %v1067, %v1063
    %v1368 = vpack.c.b16 %v1072, %v1068
    %v1369 = vpack.c.b16 %v1073, %v1069
    %v1370 = vpack.c.b16 %v1074, %v1070
    %v1371 = vpack.c.b16 %v1075, %v1071
    %v1372 = vpack.c.b16 %v1080, %v1076
    %v1373 = vpack.c.b16 %v1081, %v1077
    %v1374 = vpack.c.b16 %v1082, %v1078
    %v1375 = vpack.c.b16 %v1083, %v1079
    %v1376 = vpack.c.b16 %v1088, %v1084
    %v1377 = vpack.c.b16 %v1089, %v1085
    %v1378 = vpack.c.b16 %v1090, %v1086
    %v1379 = vpack.c.b16 %v1091, %v1087
    %v1380 = vpack.c.b16 %v1096, %v1092
    %v1381 = vpack.c.b16 %v1097, %v1093
    %v1382 = vpack.c.b16 %v1098, %v1094
    %v1383 = vpack.c.b16 %v1099, %v1095
    %v1384 = vpack.c.b16 %v1104, %v1100
    %v1385 = vpack.c.b16 %v1105, %v1101
    %v1386 = vpack.c.b16 %v1106, %v1102
    %v1387 = vpack.c.b16 %v1107, %v1103
    %v1388 = vpack.c.b16 %v1112, %v1108
    %v1389 = vpack.c.b16 %v1113, %v1109
    %v1390 = vpack.c.b16 %v1114, %v1110
    %v1391 = vpack.c.b16 %v1115, %v1111
    %v1392 = vpack.c.b16 %v1120, %v1116
    %v1393 = vpack.c.b16 %v1121, %v1117
    %v1394 = vpack.c.b16 %v1122, %v1118
    %v1395 = vpack.c.b16 %v1123, %v1119
    %v1396 = vpack.c.b16 %v1128, %v1124
    %v1397 = vpack.c.b16 %v1129, %v1125
    %v1398 = vpack.c.b16 %v1130, %v1126
    %v1399 = vpack.c.b16 %v1131, %v1127
    %v1400 = vpack.c.b16 %v1136, %v1132
    %v1401 = vpack.c.b16 %v1137, %v1133
    %v1402 = vpack.c.b16 %v1138, %v1134
    %v1403 = vpack.c.b16 %v1139, %v1135
    %v1404 = vpack.c.b16 %v1144, %v1140
    %v1405 = vpack.c.b16 %v1145, %v1141
    %v1406 = vpack.c.b16 %v1146, %v1142
    %v1407 = vpack.c.b16 %v1147, %v1143
    %v1408 = vpack.c.b16 %v1152, %v1148
    %v1409 = vpack.c.b16 %v1153, %v1149
    %v1410 = vpack.c.b16 %v1154, %v1150
    %v1411 = vpack.c.b16 %v1155, %v1151
    %1668 = vmatprep.subr.bf16.mxu0 %v1157
    %1669 = vmatpush1.bf16.msra.mxu0 %v1156
    %1670 = vmatprep.subr.bf16.mxu0 %v1161
    %1671 = vmatpush1.bf16.msra.mxu0 %v1160
    %1672 = vmatprep.subr.bf16.mxu0 %v1165
    %1673 = vmatpush1.bf16.msra.mxu0 %v1164
    %1674 = vmatprep.subr.bf16.mxu0 %v1169
    %1675 = vmatpush1.bf16.msra.mxu0 %v1168
    %1676 = vmatprep.subr.bf16.mxu0 %v1173
    %1677 = vmatpush1.bf16.msra.mxu0 %v1172
    %1678 = vmatprep.subr.bf16.mxu0 %v1177
    %1679 = vmatpush1.bf16.msra.mxu0 %v1176
    %1680 = vmatprep.subr.bf16.mxu0 %v1181
    %1681 = vmatpush1.bf16.msra.mxu0 %v1180
    %1682 = vmatprep.subr.bf16.mxu0 %v1185
    %1683 = vmatpush1.bf16.msra.mxu0 %v1184
    %1684 = vmatprep.subr.bf16.mxu0 %v1189
    %1685 = vmatpush1.bf16.msra.mxu0 %v1188
    %1686 = vmatprep.subr.bf16.mxu0 %v1193
    %1687 = vmatpush1.bf16.msra.mxu0 %v1192
    %1688 = vmatprep.subr.bf16.mxu0 %v1197
    %1689 = vmatpush1.bf16.msra.mxu0 %v1196
    %1690 = vmatprep.subr.bf16.mxu0 %v1201
    %1691 = vmatpush1.bf16.msra.mxu0 %v1200
    %1692 = vmatprep.subr.bf16.mxu0 %v1205
    %1693 = vmatpush1.bf16.msra.mxu0 %v1204
    %1694 = vmatprep.subr.bf16.mxu0 %v1209
    %1695 = vmatpush1.bf16.msra.mxu0 %v1208
    %1696 = vmatprep.subr.bf16.mxu0 %v1213
    %1697 = vmatpush1.bf16.msra.mxu0 %v1212
    %1698 = vmatprep.subr.bf16.mxu0 %v1217
    %1699 = vmatpush1.bf16.msra.mxu0 %v1216
    %1700 = vmatprep.mubr.bf16.mxu0 %v103
    %1701 = vmatmul.mubr.bf16.gmra.mrb[0].mxu0 %v102
    %v1702 = vpop.f32.mrb[0].mxu0
    %v1703 = vadd.f32 %v371, %v1702
    %v1704 = vpop.f32.mrb[0].mxu0
    %v1705 = vadd.f32 %v375, %v1704
    %v1706 = vpop.f32.mrb[0].mxu0
    %v1707 = vadd.f32 %v371, %v1706
    %v1708 = vpop.f32.mrb[0].mxu0
    %v1709 = vadd.f32 %v375, %v1708
    %1710 = vdwg.mxu0
    %1711 = vmatprep.subr.bf16.mxu0 %v1221
    %1712 = vmatpush1.bf16.msra.mxu0 %v1220
    %1713 = vmatprep.subr.bf16.mxu0 %v1225
    %1714 = vmatpush1.bf16.msra.mxu0 %v1224
    %1715 = vmatprep.subr.bf16.mxu0 %v1229
    %1716 = vmatpush1.bf16.msra.mxu0 %v1228
    %1717 = vmatprep.subr.bf16.mxu0 %v1233
    %1718 = vmatpush1.bf16.msra.mxu0 %v1232
    %1719 = vmatprep.subr.bf16.mxu0 %v1237
    %1720 = vmatpush1.bf16.msra.mxu0 %v1236
    %1721 = vmatprep.subr.bf16.mxu0 %v1241
    %1722 = vmatpush1.bf16.msra.mxu0 %v1240
    %1723 = vmatprep.subr.bf16.mxu0 %v1245
    %1724 = vmatpush1.bf16.msra.mxu0 %v1244
    %1725 = vmatprep.subr.bf16.mxu0 %v1249
    %1726 = vmatpush1.bf16.msra.mxu0 %v1248
    %1727 = vmatprep.subr.bf16.mxu0 %v1253
    %1728 = vmatpush1.bf16.msra.mxu0 %v1252
    %1729 = vmatprep.subr.bf16.mxu0 %v1257
    %1730 = vmatpush1.bf16.msra.mxu0 %v1256
    %1731 = vmatprep.subr.bf16.mxu0 %v1261
    %1732 = vmatpush1.bf16.msra.mxu0 %v1260
    %1733 = vmatprep.subr.bf16.mxu0 %v1265
    %1734 = vmatpush1.bf16.msra.mxu0 %v1264
    %1735 = vmatprep.subr.bf16.mxu0 %v1269
    %1736 = vmatpush1.bf16.msra.mxu0 %v1268
    %1737 = vmatprep.subr.bf16.mxu0 %v1273
    %1738 = vmatpush1.bf16.msra.mxu0 %v1272
    %1739 = vmatprep.subr.bf16.mxu0 %v1277
    %1740 = vmatpush1.bf16.msra.mxu0 %v1276
    %1741 = vmatprep.subr.bf16.mxu0 %v1281
    %1742 = vmatpush1.bf16.msra.mxu0 %v1280
    %1743 = vmatprep.mubr.bf16.mxu0 %v105
    %1744 = vmatmul.mubr.bf16.gmra.mrb[0].mxu0 %v104
    %v1745 = vpop.f32.mrb[0].mxu0
    %v1746 = vadd.f32 %v1703, %v1745
    %v1747 = vpop.f32.mrb[0].mxu0
    %v1748 = vadd.f32 %v1705, %v1747
    %v1749 = vpop.f32.mrb[0].mxu0
    %v1750 = vadd.f32 %v1707, %v1749
    %v1751 = vpop.f32.mrb[0].mxu0
    %v1752 = vadd.f32 %v1709, %v1751
    %1753 = vdwg.mxu0
    %1754 = vmatprep.subr.bf16.mxu0 %v1285
    %1755 = vmatpush1.bf16.msra.mxu0 %v1284
    %1756 = vmatprep.subr.bf16.mxu0 %v1289
    %1757 = vmatpush1.bf16.msra.mxu0 %v1288
    %1758 = vmatprep.subr.bf16.mxu0 %v1293
    %1759 = vmatpush1.bf16.msra.mxu0 %v1292
    %1760 = vmatprep.subr.bf16.mxu0 %v1297
    %1761 = vmatpush1.bf16.msra.mxu0 %v1296
    %1762 = vmatprep.subr.bf16.mxu0 %v1301
    %1763 = vmatpush1.bf16.msra.mxu0 %v1300
    %1764 = vmatprep.subr.bf16.mxu0 %v1305
    %1765 = vmatpush1.bf16.msra.mxu0 %v1304
    %1766 = vmatprep.subr.bf16.mxu0 %v1309
    %1767 = vmatpush1.bf16.msra.mxu0 %v1308
    %1768 = vmatprep.subr.bf16.mxu0 %v1313
    %1769 = vmatpush1.bf16.msra.mxu0 %v1312
    %1770 = vmatprep.subr.bf16.mxu0 %v1317
    %1771 = vmatpush1.bf16.msra.mxu0 %v1316
    %1772 = vmatprep.subr.bf16.mxu0 %v1321
    %1773 = vmatpush1.bf16.msra.mxu0 %v1320
    %1774 = vmatprep.subr.bf16.mxu0 %v1325
    %1775 = vmatpush1.bf16.msra.mxu0 %v1324
    %1776 = vmatprep.subr.bf16.mxu0 %v1329
    %1777 = vmatpush1.bf16.msra.mxu0 %v1328
    %1778 = vmatprep.subr.bf16.mxu0 %v1333
    %1779 = vmatpush1.bf16.msra.mxu0 %v1332
    %1780 = vmatprep.subr.bf16.mxu0 %v1337
    %1781 = vmatpush1.bf16.msra.mxu0 %v1336
    %1782 = vmatprep.subr.bf16.mxu0 %v1341
    %1783 = vmatpush1.bf16.msra.mxu0 %v1340
    %1784 = vmatprep.subr.bf16.mxu0 %v1345
    %1785 = vmatpush1.bf16.msra.mxu0 %v1344
    %1786 = vmatprep.mubr.bf16.mxu0 %v107
    %1787 = vmatmul.mubr.bf16.gmra.mrb[0].mxu0 %v106
    %v1788 = vpop.f32.mrb[0].mxu0
    %v1789 = vadd.f32 %v1746, %v1788
    %v1790 = vpop.f32.mrb[0].mxu0
    %v1791 = vadd.f32 %v1748, %v1790
    %v1792 = vpop.f32.mrb[0].mxu0
    %v1793 = vadd.f32 %v1750, %v1792
    %v1794 = vpop.f32.mrb[0].mxu0
    %v1795 = vadd.f32 %v1752, %v1794
    %1796 = vdwg.mxu0
    %1797 = vmatprep.subr.bf16.mxu0 %v1349
    %1798 = vmatpush1.bf16.msra.mxu0 %v1348
    %1799 = vmatprep.subr.bf16.mxu0 %v1353
    %1800 = vmatpush1.bf16.msra.mxu0 %v1352
    %1801 = vmatprep.subr.bf16.mxu0 %v1357
    %1802 = vmatpush1.bf16.msra.mxu0 %v1356
    %1803 = vmatprep.subr.bf16.mxu0 %v1361
    %1804 = vmatpush1.bf16.msra.mxu0 %v1360
    %1805 = vmatprep.subr.bf16.mxu0 %v1365
    %1806 = vmatpush1.bf16.msra.mxu0 %v1364
    %1807 = vmatprep.subr.bf16.mxu0 %v1369
    %1808 = vmatpush1.bf16.msra.mxu0 %v1368
    %1809 = vmatprep.subr.bf16.mxu0 %v1373
    %1810 = vmatpush1.bf16.msra.mxu0 %v1372
    %1811 = vmatprep.subr.bf16.mxu0 %v1377
    %1812 = vmatpush1.bf16.msra.mxu0 %v1376
    %1813 = vmatprep.subr.bf16.mxu0 %v1381
    %1814 = vmatpush1.bf16.msra.mxu0 %v1380
    %1815 = vmatprep.subr.bf16.mxu0 %v1385
    %1816 = vmatpush1.bf16.msra.mxu0 %v1384
    %1817 = vmatprep.subr.bf16.mxu0 %v1389
    %1818 = vmatpush1.bf16.msra.mxu0 %v1388
    %1819 = vmatprep.subr.bf16.mxu0 %v1393
    %1820 = vmatpush1.bf16.msra.mxu0 %v1392
    %1821 = vmatprep.subr.bf16.mxu0 %v1397
    %1822 = vmatpush1.bf16.msra.mxu0 %v1396
    %1823 = vmatprep.subr.bf16.mxu0 %v1401
    %1824 = vmatpush1.bf16.msra.mxu0 %v1400
    %1825 = vmatprep.subr.bf16.mxu0 %v1405
    %1826 = vmatpush1.bf16.msra.mxu0 %v1404
    %1827 = vmatprep.subr.bf16.mxu0 %v1409
    %1828 = vmatpush1.bf16.msra.mxu0 %v1408
    %1829 = vmatprep.mubr.bf16.mxu0 %v109
    %1830 = vmatmul.mubr.bf16.gmra.mrb[0].mxu0 %v108
    %v1831 = vpop.f32.mrb[0].mxu0
    %v1832 = vadd.f32 %v1789, %v1831
    %v1833 = vpop.f32.mrb[0].mxu0
    %v1834 = vadd.f32 %v1791, %v1833
    %v1835 = vpop.f32.mrb[0].mxu0
    %v1836 = vadd.f32 %v1793, %v1835
    %v1837 = vpop.f32.mrb[0].mxu0
    %v1838 = vadd.f32 %v1795, %v1837
    %1839 = vdwg.mxu0
    %1840 = vmatprep.subr.bf16.mxu0 %v1159
    %1841 = vmatpush1.bf16.msra.mxu0 %v1158
    %1842 = vmatprep.subr.bf16.mxu0 %v1163
    %1843 = vmatpush1.bf16.msra.mxu0 %v1162
    %1844 = vmatprep.subr.bf16.mxu0 %v1167
    %1845 = vmatpush1.bf16.msra.mxu0 %v1166
    %1846 = vmatprep.subr.bf16.mxu0 %v1171
    %1847 = vmatpush1.bf16.msra.mxu0 %v1170
    %1848 = vmatprep.subr.bf16.mxu0 %v1175
    %1849 = vmatpush1.bf16.msra.mxu0 %v1174
    %1850 = vmatprep.subr.bf16.mxu0 %v1179
    %1851 = vmatpush1.bf16.msra.mxu0 %v1178
    %1852 = vmatprep.subr.bf16.mxu0 %v1183
    %1853 = vmatpush1.bf16.msra.mxu0 %v1182
    %1854 = vmatprep.subr.bf16.mxu0 %v1187
    %1855 = vmatpush1.bf16.msra.mxu0 %v1186
    %1856 = vmatprep.subr.bf16.mxu0 %v1191
    %1857 = vmatpush1.bf16.msra.mxu0 %v1190
    %1858 = vmatprep.subr.bf16.mxu0 %v1195
    %1859 = vmatpush1.bf16.msra.mxu0 %v1194
    %1860 = vmatprep.subr.bf16.mxu0 %v1199
    %1861 = vmatpush1.bf16.msra.mxu0 %v1198
    %1862 = vmatprep.subr.bf16.mxu0 %v1203
    %1863 = vmatpush1.bf16.msra.mxu0 %v1202
    %1864 = vmatprep.subr.bf16.mxu0 %v1207
    %1865 = vmatpush1.bf16.msra.mxu0 %v1206
    %1866 = vmatprep.subr.bf16.mxu0 %v1211
    %1867 = vmatpush1.bf16.msra.mxu0 %v1210
    %1868 = vmatprep.subr.bf16.mxu0 %v1215
    %1869 = vmatpush1.bf16.msra.mxu0 %v1214
    %1870 = vmatprep.subr.bf16.mxu0 %v1219
    %1871 = vmatpush1.bf16.msra.mxu0 %v1218
    %1872 = vmatprep.mubr.bf16.mxu0 %v103
    %1873 = vmatmul.mubr.bf16.gmra.mrb[0].mxu0 %v102
    %v1874 = vpop.f32.mrb[0].mxu0
    %v1875 = vadd.f32 %v379, %v1874
    %v1876 = vpop.f32.mrb[0].mxu0
    %v1877 = vadd.f32 %v383, %v1876
    %v1878 = vpop.f32.mrb[0].mxu0
    %v1879 = vadd.f32 %v379, %v1878
    %v1880 = vpop.f32.mrb[0].mxu0
    %v1881 = vadd.f32 %v383, %v1880
    %1882 = vdwg.mxu0
    %1883 = vmatprep.subr.bf16.mxu0 %v1223
    %1884 = vmatpush1.bf16.msra.mxu0 %v1222
    %1885 = vmatprep.subr.bf16.mxu0 %v1227
    %1886 = vmatpush1.bf16.msra.mxu0 %v1226
    %1887 = vmatprep.subr.bf16.mxu0 %v1231
    %1888 = vmatpush1.bf16.msra.mxu0 %v1230
    %1889 = vmatprep.subr.bf16.mxu0 %v1235
    %1890 = vmatpush1.bf16.msra.mxu0 %v1234
    %1891 = vmatprep.subr.bf16.mxu0 %v1239
    %1892 = vmatpush1.bf16.msra.mxu0 %v1238
    %1893 = vmatprep.subr.bf16.mxu0 %v1243
    %1894 = vmatpush1.bf16.msra.mxu0 %v1242
    %1895 = vmatprep.subr.bf16.mxu0 %v1247
    %1896 = vmatpush1.bf16.msra.mxu0 %v1246
    %1897 = vmatprep.subr.bf16.mxu0 %v1251
    %1898 = vmatpush1.bf16.msra.mxu0 %v1250
    %1899 = vmatprep.subr.bf16.mxu0 %v1255
    %1900 = vmatpush1.bf16.msra.mxu0 %v1254
    %1901 = vmatprep.subr.bf16.mxu0 %v1259
    %1902 = vmatpush1.bf16.msra.mxu0 %v1258
    %1903 = vmatprep.subr.bf16.mxu0 %v1263
    %1904 = vmatpush1.bf16.msra.mxu0 %v1262
    %1905 = vmatprep.subr.bf16.mxu0 %v1267
    %1906 = vmatpush1.bf16.msra.mxu0 %v1266
    %1907 = vmatprep.subr.bf16.mxu0 %v1271
    %1908 = vmatpush1.bf16.msra.mxu0 %v1270
    %1909 = vmatprep.subr.bf16.mxu0 %v1275
    %1910 = vmatpush1.bf16.msra.mxu0 %v1274
    %1911 = vmatprep.subr.bf16.mxu0 %v1279
    %1912 = vmatpush1.bf16.msra.mxu0 %v1278
    %1913 = vmatprep.subr.bf16.mxu0 %v1283
    %1914 = vmatpush1.bf16.msra.mxu0 %v1282
    %1915 = vmatprep.mubr.bf16.mxu0 %v105
    %1916 = vmatmul.mubr.bf16.gmra.mrb[0].mxu0 %v104
    %v1917 = vpop.f32.mrb[0].mxu0
    %v1918 = vadd.f32 %v1875, %v1917
    %v1919 = vpop.f32.mrb[0].mxu0
    %v1920 = vadd.f32 %v1877, %v1919
    %v1921 = vpop.f32.mrb[0].mxu0
    %v1922 = vadd.f32 %v1879, %v1921
    %v1923 = vpop.f32.mrb[0].mxu0
    %v1924 = vadd.f32 %v1881, %v1923
    %1925 = vdwg.mxu0
    %1926 = vmatprep.subr.bf16.mxu0 %v1287
    %1927 = vmatpush1.bf16.msra.mxu0 %v1286
    %1928 = vmatprep.subr.bf16.mxu0 %v1291
    %1929 = vmatpush1.bf16.msra.mxu0 %v1290
    %1930 = vmatprep.subr.bf16.mxu0 %v1295
    %1931 = vmatpush1.bf16.msra.mxu0 %v1294
    %1932 = vmatprep.subr.bf16.mxu0 %v1299
    %1933 = vmatpush1.bf16.msra.mxu0 %v1298
    %1934 = vmatprep.subr.bf16.mxu0 %v1303
    %1935 = vmatpush1.bf16.msra.mxu0 %v1302
    %1936 = vmatprep.subr.bf16.mxu0 %v1307
    %1937 = vmatpush1.bf16.msra.mxu0 %v1306
    %1938 = vmatprep.subr.bf16.mxu0 %v1311
    %1939 = vmatpush1.bf16.msra.mxu0 %v1310
    %1940 = vmatprep.subr.bf16.mxu0 %v1315
    %1941 = vmatpush1.bf16.msra.mxu0 %v1314
    %1942 = vmatprep.subr.bf16.mxu0 %v1319
    %1943 = vmatpush1.bf16.msra.mxu0 %v1318
    %1944 = vmatprep.subr.bf16.mxu0 %v1323
    %1945 = vmatpush1.bf16.msra.mxu0 %v1322
    %1946 = vmatprep.subr.bf16.mxu0 %v1327
    %1947 = vmatpush1.bf16.msra.mxu0 %v1326
    %1948 = vmatprep.subr.bf16.mxu0 %v1331
    %1949 = vmatpush1.bf16.msra.mxu0 %v1330
    %1950 = vmatprep.subr.bf16.mxu0 %v1335
    %1951 = vmatpush1.bf16.msra.mxu0 %v1334
    %1952 = vmatprep.subr.bf16.mxu0 %v1339
    %1953 = vmatpush1.bf16.msra.mxu0 %v1338
    %1954 = vmatprep.subr.bf16.mxu0 %v1343
    %1955 = vmatpush1.bf16.msra.mxu0 %v1342
    %1956 = vmatprep.subr.bf16.mxu0 %v1347
    %1957 = vmatpush1.bf16.msra.mxu0 %v1346
    %1958 = vmatprep.mubr.bf16.mxu0 %v107
    %1959 = vmatmul.mubr.bf16.gmra.mrb[0].mxu0 %v106
    %v1960 = vpop.f32.mrb[0].mxu0
    %v1961 = vadd.f32 %v1918, %v1960
    %v1962 = vpop.f32.mrb[0].mxu0
    %v1963 = vadd.f32 %v1920, %v1962
    %v1964 = vpop.f32.mrb[0].mxu0
    %v1965 = vadd.f32 %v1922, %v1964
    %v1966 = vpop.f32.mrb[0].mxu0
    %v1967 = vadd.f32 %v1924, %v1966
    %1968 = vdwg.mxu0
    %1969 = vmatprep.subr.bf16.mxu0 %v1351
    %1970 = vmatpush1.bf16.msra.mxu0 %v1350
    %1971 = vmatprep.subr.bf16.mxu0 %v1355
    %1972 = vmatpush1.bf16.msra.mxu0 %v1354
    %1973 = vmatprep.subr.bf16.mxu0 %v1359
    %1974 = vmatpush1.bf16.msra.mxu0 %v1358
    %1975 = vmatprep.subr.bf16.mxu0 %v1363
    %1976 = vmatpush1.bf16.msra.mxu0 %v1362
    %1977 = vmatprep.subr.bf16.mxu0 %v1367
    %1978 = vmatpush1.bf16.msra.mxu0 %v1366
    %1979 = vmatprep.subr.bf16.mxu0 %v1371
    %1980 = vmatpush1.bf16.msra.mxu0 %v1370
    %1981 = vmatprep.subr.bf16.mxu0 %v1375
    %1982 = vmatpush1.bf16.msra.mxu0 %v1374
    %1983 = vmatprep.subr.bf16.mxu0 %v1379
    %1984 = vmatpush1.bf16.msra.mxu0 %v1378
    %1985 = vmatprep.subr.bf16.mxu0 %v1383
    %1986 = vmatpush1.bf16.msra.mxu0 %v1382
    %1987 = vmatprep.subr.bf16.mxu0 %v1387
    %1988 = vmatpush1.bf16.msra.mxu0 %v1386
    %1989 = vmatprep.subr.bf16.mxu0 %v1391
    %1990 = vmatpush1.bf16.msra.mxu0 %v1390
    %1991 = vmatprep.subr.bf16.mxu0 %v1395
    %1992 = vmatpush1.bf16.msra.mxu0 %v1394
    %1993 = vmatprep.subr.bf16.mxu0 %v1399
    %1994 = vmatpush1.bf16.msra.mxu0 %v1398
    %1995 = vmatprep.subr.bf16.mxu0 %v1403
    %1996 = vmatpush1.bf16.msra.mxu0 %v1402
    %1997 = vmatprep.subr.bf16.mxu0 %v1407
    %1998 = vmatpush1.bf16.msra.mxu0 %v1406
    %1999 = vmatprep.subr.bf16.mxu0 %v1411
    %2000 = vmatpush1.bf16.msra.mxu0 %v1410
    %2001 = vmatprep.mubr.bf16.mxu0 %v109
    %2002 = vmatmul.mubr.bf16.gmra.mrb[0].mxu0 %v108
    %v2003 = vpop.f32.mrb[0].mxu0
    %v2004 = vadd.f32 %v1961, %v2003
    %v2005 = vpop.f32.mrb[0].mxu0
    %v2006 = vadd.f32 %v1963, %v2005
    %v2007 = vpop.f32.mrb[0].mxu0
    %v2008 = vadd.f32 %v1965, %v2007
    %v2009 = vpop.f32.mrb[0].mxu0
    %v2010 = vadd.f32 %v1967, %v2009
    %2011 = vdwg.mxu0
    %v2012 = vpack.c.bf16 %v1836, %v1832
    %v2013 = vpack.c.bf16 %v1838, %v1834
    %v2014 = vpack.c.bf16 %v2008, %v2004
    %v2015 = vpack.c.bf16 %v2010, %v2006
    %v2020 = vunpack.c.l.b16 %v2012
    %v2021 = vunpack.c.l.b16 %v2013
    %v2022 = vunpack.c.l.b16 %v2014
    %v2023 = vunpack.c.l.b16 %v2015
    %v2024 = vunpack.c.h.b16 %v2012
    %v2025 = vunpack.c.h.b16 %v2013
    %v2026 = vunpack.c.h.b16 %v2014
    %v2027 = vunpack.c.h.b16 %v2015
    %v2028 = vpack.c.b16 %v2021, %v2020
    %v2029 = vpack.c.b16 %v2023, %v2022
    %v2030 = vpack.c.b16 %v2025, %v2024
    %v2031 = vpack.c.b16 %v2027, %v2026
    %2036 = vst [vmem:[#allocation10] sm:$0xff] %v2028
    %2037 = vst [vmem:[#allocation10 + $0x8] sm:$0xff] %v2029
    %2038 = vst [vmem:[#allocation10 + $0x10] sm:$0xff] %v2030
    %2039 = vst [vmem:[#allocation10 + $0x18] sm:$0xff] %v2031
    %v2040 = vld [vmem:[#allocation7] sm:$0xff]
    %v2041 = vld [vmem:[#allocation7 + $0x8] sm:$0xff]
    %v2042 = vld [vmem:[#allocation7 + $0x10] sm:$0xff]
    %v2043 = vld [vmem:[#allocation7 + $0x18] sm:$0xff]
    %v2044 = vld [vmem:[#allocation7 + $0x20] sm:$0xff]
    %v2045 = vld [vmem:[#allocation7 + $0x28] sm:$0xff]
    %v2046 = vld [vmem:[#allocation7 + $0x30] sm:$0xff]
    %v2047 = vld [vmem:[#allocation7 + $0x38] sm:$0xff]
    %v2048 = vld [vmem:[#allocation7 + $0x40] sm:$0xff]
    %v2049 = vld [vmem:[#allocation7 + $0x48] sm:$0xff]
    %v2050 = vld [vmem:[#allocation7 + $0x50] sm:$0xff]
    %v2051 = vld [vmem:[#allocation7 + $0x58] sm:$0xff]
    %v2052 = vld [vmem:[#allocation7 + $0x60] sm:$0xff]
    %v2053 = vld [vmem:[#allocation7 + $0x68] sm:$0xff]
    %v2054 = vld [vmem:[#allocation7 + $0x70] sm:$0xff]
    %v2055 = vld [vmem:[#allocation7 + $0x78] sm:$0xff]
    %v2056 = vld [vmem:[#allocation7 + $0x80] sm:$0xff]
    %v2057 = vld [vmem:[#allocation7 + $0x88] sm:$0xff]
    %v2058 = vld [vmem:[#allocation7 + $0x90] sm:$0xff]
    %v2059 = vld [vmem:[#allocation7 + $0x98] sm:$0xff]
    %v2060 = vld [vmem:[#allocation7 + $0xa0] sm:$0xff]
    %v2061 = vld [vmem:[#allocation7 + $0xa8] sm:$0xff]
    %v2062 = vld [vmem:[#allocation7 + $0xb0] sm:$0xff]
    %v2063 = vld [vmem:[#allocation7 + $0xb8] sm:$0xff]
    %v2064 = vld [vmem:[#allocation7 + $0xc0] sm:$0xff]
    %v2065 = vld [vmem:[#allocation7 + $0xc8] sm:$0xff]
    %v2066 = vld [vmem:[#allocation7 + $0xd0] sm:$0xff]
    %v2067 = vld [vmem:[#allocation7 + $0xd8] sm:$0xff]
    %v2068 = vld [vmem:[#allocation7 + $0xe0] sm:$0xff]
    %v2069 = vld [vmem:[#allocation7 + $0xe8] sm:$0xff]
    %v2070 = vld [vmem:[#allocation7 + $0xf0] sm:$0xff]
    %v2071 = vld [vmem:[#allocation7 + $0xf8] sm:$0xff]
    %v2072 = vld [vmem:[#allocation7 + $0x100] sm:$0xff]
    %v2073 = vld [vmem:[#allocation7 + $0x108] sm:$0xff]
    %v2074 = vld [vmem:[#allocation7 + $0x110] sm:$0xff]
    %v2075 = vld [vmem:[#allocation7 + $0x118] sm:$0xff]
    %v2076 = vld [vmem:[#allocation7 + $0x120] sm:$0xff]
    %v2077 = vld [vmem:[#allocation7 + $0x128] sm:$0xff]
    %v2078 = vld [vmem:[#allocation7 + $0x130] sm:$0xff]
    %v2079 = vld [vmem:[#allocation7 + $0x138] sm:$0xff]
    %v2080 = vld [vmem:[#allocation7 + $0x140] sm:$0xff]
    %v2081 = vld [vmem:[#allocation7 + $0x148] sm:$0xff]
    %v2082 = vld [vmem:[#allocation7 + $0x150] sm:$0xff]
    %v2083 = vld [vmem:[#allocation7 + $0x158] sm:$0xff]
    %v2084 = vld [vmem:[#allocation7 + $0x160] sm:$0xff]
    %v2085 = vld [vmem:[#allocation7 + $0x168] sm:$0xff]
    %v2086 = vld [vmem:[#allocation7 + $0x170] sm:$0xff]
    %v2087 = vld [vmem:[#allocation7 + $0x178] sm:$0xff]
    %v2088 = vld [vmem:[#allocation7 + $0x180] sm:$0xff]
    %v2089 = vld [vmem:[#allocation7 + $0x188] sm:$0xff]
    %v2090 = vld [vmem:[#allocation7 + $0x190] sm:$0xff]
    %v2091 = vld [vmem:[#allocation7 + $0x198] sm:$0xff]
    %v2092 = vld [vmem:[#allocation7 + $0x1a0] sm:$0xff]
    %v2093 = vld [vmem:[#allocation7 + $0x1a8] sm:$0xff]
    %v2094 = vld [vmem:[#allocation7 + $0x1b0] sm:$0xff]
    %v2095 = vld [vmem:[#allocation7 + $0x1b8] sm:$0xff]
    %v2096 = vld [vmem:[#allocation7 + $0x1c0] sm:$0xff]
    %v2097 = vld [vmem:[#allocation7 + $0x1c8] sm:$0xff]
    %v2098 = vld [vmem:[#allocation7 + $0x1d0] sm:$0xff]
    %v2099 = vld [vmem:[#allocation7 + $0x1d8] sm:$0xff]
    %v2100 = vld [vmem:[#allocation7 + $0x1e0] sm:$0xff]
    %v2101 = vld [vmem:[#allocation7 + $0x1e8] sm:$0xff]
    %v2102 = vld [vmem:[#allocation7 + $0x1f0] sm:$0xff]
    %v2103 = vld [vmem:[#allocation7 + $0x1f8] sm:$0xff]
    %v2104 = vld [vmem:[#allocation7 + $0x200] sm:$0xff]
    %v2105 = vld [vmem:[#allocation7 + $0x208] sm:$0xff]
    %v2106 = vld [vmem:[#allocation7 + $0x210] sm:$0xff]
    %v2107 = vld [vmem:[#allocation7 + $0x218] sm:$0xff]
    %v2108 = vld [vmem:[#allocation7 + $0x220] sm:$0xff]
    %v2109 = vld [vmem:[#allocation7 + $0x228] sm:$0xff]
    %v2110 = vld [vmem:[#allocation7 + $0x230] sm:$0xff]
    %v2111 = vld [vmem:[#allocation7 + $0x238] sm:$0xff]
    %v2112 = vld [vmem:[#allocation7 + $0x240] sm:$0xff]
    %v2113 = vld [vmem:[#allocation7 + $0x248] sm:$0xff]
    %v2114 = vld [vmem:[#allocation7 + $0x250] sm:$0xff]
    %v2115 = vld [vmem:[#allocation7 + $0x258] sm:$0xff]
    %v2116 = vld [vmem:[#allocation7 + $0x260] sm:$0xff]
    %v2117 = vld [vmem:[#allocation7 + $0x268] sm:$0xff]
    %v2118 = vld [vmem:[#allocation7 + $0x270] sm:$0xff]
    %v2119 = vld [vmem:[#allocation7 + $0x278] sm:$0xff]
    %v2120 = vld [vmem:[#allocation7 + $0x280] sm:$0xff]
    %v2121 = vld [vmem:[#allocation7 + $0x288] sm:$0xff]
    %v2122 = vld [vmem:[#allocation7 + $0x290] sm:$0xff]
    %v2123 = vld [vmem:[#allocation7 + $0x298] sm:$0xff]
    %v2124 = vld [vmem:[#allocation7 + $0x2a0] sm:$0xff]
    %v2125 = vld [vmem:[#allocation7 + $0x2a8] sm:$0xff]
    %v2126 = vld [vmem:[#allocation7 + $0x2b0] sm:$0xff]
    %v2127 = vld [vmem:[#allocation7 + $0x2b8] sm:$0xff]
    %v2128 = vld [vmem:[#allocation7 + $0x2c0] sm:$0xff]
    %v2129 = vld [vmem:[#allocation7 + $0x2c8] sm:$0xff]
    %v2130 = vld [vmem:[#allocation7 + $0x2d0] sm:$0xff]
    %v2131 = vld [vmem:[#allocation7 + $0x2d8] sm:$0xff]
    %v2132 = vld [vmem:[#allocation7 + $0x2e0] sm:$0xff]
    %v2133 = vld [vmem:[#allocation7 + $0x2e8] sm:$0xff]
    %v2134 = vld [vmem:[#allocation7 + $0x2f0] sm:$0xff]
    %v2135 = vld [vmem:[#allocation7 + $0x2f8] sm:$0xff]
    %v2136 = vld [vmem:[#allocation7 + $0x300] sm:$0xff]
    %v2137 = vld [vmem:[#allocation7 + $0x308] sm:$0xff]
    %v2138 = vld [vmem:[#allocation7 + $0x310] sm:$0xff]
    %v2139 = vld [vmem:[#allocation7 + $0x318] sm:$0xff]
    %v2140 = vld [vmem:[#allocation7 + $0x320] sm:$0xff]
    %v2141 = vld [vmem:[#allocation7 + $0x328] sm:$0xff]
    %v2142 = vld [vmem:[#allocation7 + $0x330] sm:$0xff]
    %v2143 = vld [vmem:[#allocation7 + $0x338] sm:$0xff]
    %v2144 = vld [vmem:[#allocation7 + $0x340] sm:$0xff]
    %v2145 = vld [vmem:[#allocation7 + $0x348] sm:$0xff]
    %v2146 = vld [vmem:[#allocation7 + $0x350] sm:$0xff]
    %v2147 = vld [vmem:[#allocation7 + $0x358] sm:$0xff]
    %v2148 = vld [vmem:[#allocation7 + $0x360] sm:$0xff]
    %v2149 = vld [vmem:[#allocation7 + $0x368] sm:$0xff]
    %v2150 = vld [vmem:[#allocation7 + $0x370] sm:$0xff]
    %v2151 = vld [vmem:[#allocation7 + $0x378] sm:$0xff]
    %v2152 = vld [vmem:[#allocation7 + $0x380] sm:$0xff]
    %v2153 = vld [vmem:[#allocation7 + $0x388] sm:$0xff]
    %v2154 = vld [vmem:[#allocation7 + $0x390] sm:$0xff]
    %v2155 = vld [vmem:[#allocation7 + $0x398] sm:$0xff]
    %v2156 = vld [vmem:[#allocation7 + $0x3a0] sm:$0xff]
    %v2157 = vld [vmem:[#allocation7 + $0x3a8] sm:$0xff]
    %v2158 = vld [vmem:[#allocation7 + $0x3b0] sm:$0xff]
    %v2159 = vld [vmem:[#allocation7 + $0x3b8] sm:$0xff]
    %v2160 = vld [vmem:[#allocation7 + $0x3c0] sm:$0xff]
    %v2161 = vld [vmem:[#allocation7 + $0x3c8] sm:$0xff]
    %v2162 = vld [vmem:[#allocation7 + $0x3d0] sm:$0xff]
    %v2163 = vld [vmem:[#allocation7 + $0x3d8] sm:$0xff]
    %v2164 = vld [vmem:[#allocation7 + $0x3e0] sm:$0xff]
    %v2165 = vld [vmem:[#allocation7 + $0x3e8] sm:$0xff]
    %v2166 = vld [vmem:[#allocation7 + $0x3f0] sm:$0xff]
    %v2167 = vld [vmem:[#allocation7 + $0x3f8] sm:$0xff]
    %v2168 = vld [vmem:[%s4] sm:$0xf]
    %v2170 = vlaneseq
    %v2171 = vshrl.u32 %v2170, 7
    %v2172 = vsub.s32 0, %v2171
    %v2173 = vrot.slane %v2168, %v2172
    %v2174 = vlaneseq
    %v2175 = vshrl.u32 %v2174, 7
    %v2176 = vsub.s32 1, %v2175
    %v2177 = vrot.slane %v2168, %v2176
    %v2178 = vlaneseq
    %v2179 = vshrl.u32 %v2178, 7
    %v2180 = vsub.s32 2, %v2179
    %v2181 = vrot.slane %v2168, %v2180
    %v2182 = vlaneseq
    %v2183 = vshrl.u32 %v2182, 7
    %v2184 = vsub.s32 3, %v2183
    %v2185 = vrot.slane %v2168, %v2184
    %v2318 = vunpack.c.l.b16 %v2040
    %v2319 = vunpack.c.h.b16 %v2040
    %v2320 = vunpack.c.l.b16 %v2041
    %v2321 = vunpack.c.h.b16 %v2041
    %v2322 = vunpack.c.l.b16 %v2042
    %v2323 = vunpack.c.h.b16 %v2042
    %v2324 = vunpack.c.l.b16 %v2043
    %v2325 = vunpack.c.h.b16 %v2043
    %v2326 = vunpack.c.l.b16 %v2044
    %v2327 = vunpack.c.h.b16 %v2044
    %v2328 = vunpack.c.l.b16 %v2045
    %v2329 = vunpack.c.h.b16 %v2045
    %v2330 = vunpack.c.l.b16 %v2046
    %v2331 = vunpack.c.h.b16 %v2046
    %v2332 = vunpack.c.l.b16 %v2047
    %v2333 = vunpack.c.h.b16 %v2047
    %v2334 = vunpack.c.l.b16 %v2048
    %v2335 = vunpack.c.h.b16 %v2048
    %v2336 = vunpack.c.l.b16 %v2049
    %v2337 = vunpack.c.h.b16 %v2049
    %v2338 = vunpack.c.l.b16 %v2050
    %v2339 = vunpack.c.h.b16 %v2050
    %v2340 = vunpack.c.l.b16 %v2051
    %v2341 = vunpack.c.h.b16 %v2051
    %v2342 = vunpack.c.l.b16 %v2052
    %v2343 = vunpack.c.h.b16 %v2052
    %v2344 = vunpack.c.l.b16 %v2053
    %v2345 = vunpack.c.h.b16 %v2053
    %v2346 = vunpack.c.l.b16 %v2054
    %v2347 = vunpack.c.h.b16 %v2054
    %v2348 = vunpack.c.l.b16 %v2055
    %v2349 = vunpack.c.h.b16 %v2055
    %v2350 = vunpack.c.l.b16 %v2056
    %v2351 = vunpack.c.h.b16 %v2056
    %v2352 = vunpack.c.l.b16 %v2057
    %v2353 = vunpack.c.h.b16 %v2057
    %v2354 = vunpack.c.l.b16 %v2058
    %v2355 = vunpack.c.h.b16 %v2058
    %v2356 = vunpack.c.l.b16 %v2059
    %v2357 = vunpack.c.h.b16 %v2059
    %v2358 = vunpack.c.l.b16 %v2060
    %v2359 = vunpack.c.h.b16 %v2060
    %v2360 = vunpack.c.l.b16 %v2061
    %v2361 = vunpack.c.h.b16 %v2061
    %v2362 = vunpack.c.l.b16 %v2062
    %v2363 = vunpack.c.h.b16 %v2062
    %v2364 = vunpack.c.l.b16 %v2063
    %v2365 = vunpack.c.h.b16 %v2063
    %v2366 = vunpack.c.l.b16 %v2064
    %v2367 = vunpack.c.h.b16 %v2064
    %v2368 = vunpack.c.l.b16 %v2065
    %v2369 = vunpack.c.h.b16 %v2065
    %v2370 = vunpack.c.l.b16 %v2066
    %v2371 = vunpack.c.h.b16 %v2066
    %v2372 = vunpack.c.l.b16 %v2067
    %v2373 = vunpack.c.h.b16 %v2067
    %v2374 = vunpack.c.l.b16 %v2068
    %v2375 = vunpack.c.h.b16 %v2068
    %v2376 = vunpack.c.l.b16 %v2069
    %v2377 = vunpack.c.h.b16 %v2069
    %v2378 = vunpack.c.l.b16 %v2070
    %v2379 = vunpack.c.h.b16 %v2070
    %v2380 = vunpack.c.l.b16 %v2071
    %v2381 = vunpack.c.h.b16 %v2071
    %v2382 = vunpack.c.l.b16 %v2072
    %v2383 = vunpack.c.h.b16 %v2072
    %v2384 = vunpack.c.l.b16 %v2073
    %v2385 = vunpack.c.h.b16 %v2073
    %v2386 = vunpack.c.l.b16 %v2074
    %v2387 = vunpack.c.h.b16 %v2074
    %v2388 = vunpack.c.l.b16 %v2075
    %v2389 = vunpack.c.h.b16 %v2075
    %v2390 = vunpack.c.l.b16 %v2076
    %v2391 = vunpack.c.h.b16 %v2076
    %v2392 = vunpack.c.l.b16 %v2077
    %v2393 = vunpack.c.h.b16 %v2077
    %v2394 = vunpack.c.l.b16 %v2078
    %v2395 = vunpack.c.h.b16 %v2078
    %v2396 = vunpack.c.l.b16 %v2079
    %v2397 = vunpack.c.h.b16 %v2079
    %v2398 = vunpack.c.l.b16 %v2080
    %v2399 = vunpack.c.h.b16 %v2080
    %v2400 = vunpack.c.l.b16 %v2081
    %v2401 = vunpack.c.h.b16 %v2081
    %v2402 = vunpack.c.l.b16 %v2082
    %v2403 = vunpack.c.h.b16 %v2082
    %v2404 = vunpack.c.l.b16 %v2083
    %v2405 = vunpack.c.h.b16 %v2083
    %v2406 = vunpack.c.l.b16 %v2084
    %v2407 = vunpack.c.h.b16 %v2084
    %v2408 = vunpack.c.l.b16 %v2085
    %v2409 = vunpack.c.h.b16 %v2085
    %v2410 = vunpack.c.l.b16 %v2086
    %v2411 = vunpack.c.h.b16 %v2086
    %v2412 = vunpack.c.l.b16 %v2087
    %v2413 = vunpack.c.h.b16 %v2087
    %v2414 = vunpack.c.l.b16 %v2088
    %v2415 = vunpack.c.h.b16 %v2088
    %v2416 = vunpack.c.l.b16 %v2089
    %v2417 = vunpack.c.h.b16 %v2089
    %v2418 = vunpack.c.l.b16 %v2090
    %v2419 = vunpack.c.h.b16 %v2090
    %v2420 = vunpack.c.l.b16 %v2091
    %v2421 = vunpack.c.h.b16 %v2091
    %v2422 = vunpack.c.l.b16 %v2092
    %v2423 = vunpack.c.h.b16 %v2092
    %v2424 = vunpack.c.l.b16 %v2093
    %v2425 = vunpack.c.h.b16 %v2093
    %v2426 = vunpack.c.l.b16 %v2094
    %v2427 = vunpack.c.h.b16 %v2094
    %v2428 = vunpack.c.l.b16 %v2095
    %v2429 = vunpack.c.h.b16 %v2095
    %v2430 = vunpack.c.l.b16 %v2096
    %v2431 = vunpack.c.h.b16 %v2096
    %v2432 = vunpack.c.l.b16 %v2097
    %v2433 = vunpack.c.h.b16 %v2097
    %v2434 = vunpack.c.l.b16 %v2098
    %v2435 = vunpack.c.h.b16 %v2098
    %v2436 = vunpack.c.l.b16 %v2099
    %v2437 = vunpack.c.h.b16 %v2099
    %v2438 = vunpack.c.l.b16 %v2100
    %v2439 = vunpack.c.h.b16 %v2100
    %v2440 = vunpack.c.l.b16 %v2101
    %v2441 = vunpack.c.h.b16 %v2101
    %v2442 = vunpack.c.l.b16 %v2102
    %v2443 = vunpack.c.h.b16 %v2102
    %v2444 = vunpack.c.l.b16 %v2103
    %v2445 = vunpack.c.h.b16 %v2103
    %v2446 = vunpack.c.l.b16 %v2104
    %v2447 = vunpack.c.h.b16 %v2104
    %v2448 = vunpack.c.l.b16 %v2105
    %v2449 = vunpack.c.h.b16 %v2105
    %v2450 = vunpack.c.l.b16 %v2106
    %v2451 = vunpack.c.h.b16 %v2106
    %v2452 = vunpack.c.l.b16 %v2107
    %v2453 = vunpack.c.h.b16 %v2107
    %v2454 = vunpack.c.l.b16 %v2108
    %v2455 = vunpack.c.h.b16 %v2108
    %v2456 = vunpack.c.l.b16 %v2109
    %v2457 = vunpack.c.h.b16 %v2109
    %v2458 = vunpack.c.l.b16 %v2110
    %v2459 = vunpack.c.h.b16 %v2110
    %v2460 = vunpack.c.l.b16 %v2111
    %v2461 = vunpack.c.h.b16 %v2111
    %v2462 = vunpack.c.l.b16 %v2112
    %v2463 = vunpack.c.h.b16 %v2112
    %v2464 = vunpack.c.l.b16 %v2113
    %v2465 = vunpack.c.h.b16 %v2113
    %v2466 = vunpack.c.l.b16 %v2114
    %v2467 = vunpack.c.h.b16 %v2114
    %v2468 = vunpack.c.l.b16 %v2115
    %v2469 = vunpack.c.h.b16 %v2115
    %v2470 = vunpack.c.l.b16 %v2116
    %v2471 = vunpack.c.h.b16 %v2116
    %v2472 = vunpack.c.l.b16 %v2117
    %v2473 = vunpack.c.h.b16 %v2117
    %v2474 = vunpack.c.l.b16 %v2118
    %v2475 = vunpack.c.h.b16 %v2118
    %v2476 = vunpack.c.l.b16 %v2119
    %v2477 = vunpack.c.h.b16 %v2119
    %v2478 = vunpack.c.l.b16 %v2120
    %v2479 = vunpack.c.h.b16 %v2120
    %v2480 = vunpack.c.l.b16 %v2121
    %v2481 = vunpack.c.h.b16 %v2121
    %v2482 = vunpack.c.l.b16 %v2122
    %v2483 = vunpack.c.h.b16 %v2122
    %v2484 = vunpack.c.l.b16 %v2123
    %v2485 = vunpack.c.h.b16 %v2123
    %v2486 = vunpack.c.l.b16 %v2124
    %v2487 = vunpack.c.h.b16 %v2124
    %v2488 = vunpack.c.l.b16 %v2125
    %v2489 = vunpack.c.h.b16 %v2125
    %v2490 = vunpack.c.l.b16 %v2126
    %v2491 = vunpack.c.h.b16 %v2126
    %v2492 = vunpack.c.l.b16 %v2127
    %v2493 = vunpack.c.h.b16 %v2127
    %v2494 = vunpack.c.l.b16 %v2128
    %v2495 = vunpack.c.h.b16 %v2128
    %v2496 = vunpack.c.l.b16 %v2129
    %v2497 = vunpack.c.h.b16 %v2129
    %v2498 = vunpack.c.l.b16 %v2130
    %v2499 = vunpack.c.h.b16 %v2130
    %v2500 = vunpack.c.l.b16 %v2131
    %v2501 = vunpack.c.h.b16 %v2131
    %v2502 = vunpack.c.l.b16 %v2132
    %v2503 = vunpack.c.h.b16 %v2132
    %v2504 = vunpack.c.l.b16 %v2133
    %v2505 = vunpack.c.h.b16 %v2133
    %v2506 = vunpack.c.l.b16 %v2134
    %v2507 = vunpack.c.h.b16 %v2134
    %v2508 = vunpack.c.l.b16 %v2135
    %v2509 = vunpack.c.h.b16 %v2135
    %v2510 = vunpack.c.l.b16 %v2136
    %v2511 = vunpack.c.h.b16 %v2136
    %v2512 = vunpack.c.l.b16 %v2137
    %v2513 = vunpack.c.h.b16 %v2137
    %v2514 = vunpack.c.l.b16 %v2138
    %v2515 = vunpack.c.h.b16 %v2138
    %v2516 = vunpack.c.l.b16 %v2139
    %v2517 = vunpack.c.h.b16 %v2139
    %v2518 = vunpack.c.l.b16 %v2140
    %v2519 = vunpack.c.h.b16 %v2140
    %v2520 = vunpack.c.l.b16 %v2141
    %v2521 = vunpack.c.h.b16 %v2141
    %v2522 = vunpack.c.l.b16 %v2142
    %v2523 = vunpack.c.h.b16 %v2142
    %v2524 = vunpack.c.l.b16 %v2143
    %v2525 = vunpack.c.h.b16 %v2143
    %v2526 = vunpack.c.l.b16 %v2144
    %v2527 = vunpack.c.h.b16 %v2144
    %v2528 = vunpack.c.l.b16 %v2145
    %v2529 = vunpack.c.h.b16 %v2145
    %v2530 = vunpack.c.l.b16 %v2146
    %v2531 = vunpack.c.h.b16 %v2146
    %v2532 = vunpack.c.l.b16 %v2147
    %v2533 = vunpack.c.h.b16 %v2147
    %v2534 = vunpack.c.l.b16 %v2148
    %v2535 = vunpack.c.h.b16 %v2148
    %v2536 = vunpack.c.l.b16 %v2149
    %v2537 = vunpack.c.h.b16 %v2149
    %v2538 = vunpack.c.l.b16 %v2150
    %v2539 = vunpack.c.h.b16 %v2150
    %v2540 = vunpack.c.l.b16 %v2151
    %v2541 = vunpack.c.h.b16 %v2151
    %v2542 = vunpack.c.l.b16 %v2152
    %v2543 = vunpack.c.h.b16 %v2152
    %v2544 = vunpack.c.l.b16 %v2153
    %v2545 = vunpack.c.h.b16 %v2153
    %v2546 = vunpack.c.l.b16 %v2154
    %v2547 = vunpack.c.h.b16 %v2154
    %v2548 = vunpack.c.l.b16 %v2155
    %v2549 = vunpack.c.h.b16 %v2155
    %v2550 = vunpack.c.l.b16 %v2156
    %v2551 = vunpack.c.h.b16 %v2156
    %v2552 = vunpack.c.l.b16 %v2157
    %v2553 = vunpack.c.h.b16 %v2157
    %v2554 = vunpack.c.l.b16 %v2158
    %v2555 = vunpack.c.h.b16 %v2158
    %v2556 = vunpack.c.l.b16 %v2159
    %v2557 = vunpack.c.h.b16 %v2159
    %v2558 = vunpack.c.l.b16 %v2160
    %v2559 = vunpack.c.h.b16 %v2160
    %v2560 = vunpack.c.l.b16 %v2161
    %v2561 = vunpack.c.h.b16 %v2161
    %v2562 = vunpack.c.l.b16 %v2162
    %v2563 = vunpack.c.h.b16 %v2162
    %v2564 = vunpack.c.l.b16 %v2163
    %v2565 = vunpack.c.h.b16 %v2163
    %v2566 = vunpack.c.l.b16 %v2164
    %v2567 = vunpack.c.h.b16 %v2164
    %v2568 = vunpack.c.l.b16 %v2165
    %v2569 = vunpack.c.h.b16 %v2165
    %v2570 = vunpack.c.l.b16 %v2166
    %v2571 = vunpack.c.h.b16 %v2166
    %v2572 = vunpack.c.l.b16 %v2167
    %v2573 = vunpack.c.h.b16 %v2167
    %v2574 = vpack.c.b16 %v2322, %v2318
    %v2575 = vpack.c.b16 %v2323, %v2319
    %v2576 = vpack.c.b16 %v2324, %v2320
    %v2577 = vpack.c.b16 %v2325, %v2321
    %v2578 = vpack.c.b16 %v2330, %v2326
    %v2579 = vpack.c.b16 %v2331, %v2327
    %v2580 = vpack.c.b16 %v2332, %v2328
    %v2581 = vpack.c.b16 %v2333, %v2329
    %v2582 = vpack.c.b16 %v2338, %v2334
    %v2583 = vpack.c.b16 %v2339, %v2335
    %v2584 = vpack.c.b16 %v2340, %v2336
    %v2585 = vpack.c.b16 %v2341, %v2337
    %v2586 = vpack.c.b16 %v2346, %v2342
    %v2587 = vpack.c.b16 %v2347, %v2343
    %v2588 = vpack.c.b16 %v2348, %v2344
    %v2589 = vpack.c.b16 %v2349, %v2345
    %v2590 = vpack.c.b16 %v2354, %v2350
    %v2591 = vpack.c.b16 %v2355, %v2351
    %v2592 = vpack.c.b16 %v2356, %v2352
    %v2593 = vpack.c.b16 %v2357, %v2353
    %v2594 = vpack.c.b16 %v2362, %v2358
    %v2595 = vpack.c.b16 %v2363, %v2359
    %v2596 = vpack.c.b16 %v2364, %v2360
    %v2597 = vpack.c.b16 %v2365, %v2361
    %v2598 = vpack.c.b16 %v2370, %v2366
    %v2599 = vpack.c.b16 %v2371, %v2367
    %v2600 = vpack.c.b16 %v2372, %v2368
    %v2601 = vpack.c.b16 %v2373, %v2369
    %v2602 = vpack.c.b16 %v2378, %v2374
    %v2603 = vpack.c.b16 %v2379, %v2375
    %v2604 = vpack.c.b16 %v2380, %v2376
    %v2605 = vpack.c.b16 %v2381, %v2377
    %v2606 = vpack.c.b16 %v2386, %v2382
    %v2607 = vpack.c.b16 %v2387, %v2383
    %v2608 = vpack.c.b16 %v2388, %v2384
    %v2609 = vpack.c.b16 %v2389, %v2385
    %v2610 = vpack.c.b16 %v2394, %v2390
    %v2611 = vpack.c.b16 %v2395, %v2391
    %v2612 = vpack.c.b16 %v2396, %v2392
    %v2613 = vpack.c.b16 %v2397, %v2393
    %v2614 = vpack.c.b16 %v2402, %v2398
    %v2615 = vpack.c.b16 %v2403, %v2399
    %v2616 = vpack.c.b16 %v2404, %v2400
    %v2617 = vpack.c.b16 %v2405, %v2401
    %v2618 = vpack.c.b16 %v2410, %v2406
    %v2619 = vpack.c.b16 %v2411, %v2407
    %v2620 = vpack.c.b16 %v2412, %v2408
    %v2621 = vpack.c.b16 %v2413, %v2409
    %v2622 = vpack.c.b16 %v2418, %v2414
    %v2623 = vpack.c.b16 %v2419, %v2415
    %v2624 = vpack.c.b16 %v2420, %v2416
    %v2625 = vpack.c.b16 %v2421, %v2417
    %v2626 = vpack.c.b16 %v2426, %v2422
    %v2627 = vpack.c.b16 %v2427, %v2423
    %v2628 = vpack.c.b16 %v2428, %v2424
    %v2629 = vpack.c.b16 %v2429, %v2425
    %v2630 = vpack.c.b16 %v2434, %v2430
    %v2631 = vpack.c.b16 %v2435, %v2431
    %v2632 = vpack.c.b16 %v2436, %v2432
    %v2633 = vpack.c.b16 %v2437, %v2433
    %v2634 = vpack.c.b16 %v2442, %v2438
    %v2635 = vpack.c.b16 %v2443, %v2439
    %v2636 = vpack.c.b16 %v2444, %v2440
    %v2637 = vpack.c.b16 %v2445, %v2441
    %v2638 = vpack.c.b16 %v2450, %v2446
    %v2639 = vpack.c.b16 %v2451, %v2447
    %v2640 = vpack.c.b16 %v2452, %v2448
    %v2641 = vpack.c.b16 %v2453, %v2449
    %v2642 = vpack.c.b16 %v2458, %v2454
    %v2643 = vpack.c.b16 %v2459, %v2455
    %v2644 = vpack.c.b16 %v2460, %v2456
    %v2645 = vpack.c.b16 %v2461, %v2457
    %v2646 = vpack.c.b16 %v2466, %v2462
    %v2647 = vpack.c.b16 %v2467, %v2463
    %v2648 = vpack.c.b16 %v2468, %v2464
    %v2649 = vpack.c.b16 %v2469, %v2465
    %v2650 = vpack.c.b16 %v2474, %v2470
    %v2651 = vpack.c.b16 %v2475, %v2471
    %v2652 = vpack.c.b16 %v2476, %v2472
    %v2653 = vpack.c.b16 %v2477, %v2473
    %v2654 = vpack.c.b16 %v2482, %v2478
    %v2655 = vpack.c.b16 %v2483, %v2479
    %v2656 = vpack.c.b16 %v2484, %v2480
    %v2657 = vpack.c.b16 %v2485, %v2481
    %v2658 = vpack.c.b16 %v2490, %v2486
    %v2659 = vpack.c.b16 %v2491, %v2487
    %v2660 = vpack.c.b16 %v2492, %v2488
    %v2661 = vpack.c.b16 %v2493, %v2489
    %v2662 = vpack.c.b16 %v2498, %v2494
    %v2663 = vpack.c.b16 %v2499, %v2495
    %v2664 = vpack.c.b16 %v2500, %v2496
    %v2665 = vpack.c.b16 %v2501, %v2497
    %v2666 = vpack.c.b16 %v2506, %v2502
    %v2667 = vpack.c.b16 %v2507, %v2503
    %v2668 = vpack.c.b16 %v2508, %v2504
    %v2669 = vpack.c.b16 %v2509, %v2505
    %v2670 = vpack.c.b16 %v2514, %v2510
    %v2671 = vpack.c.b16 %v2515, %v2511
    %v2672 = vpack.c.b16 %v2516, %v2512
    %v2673 = vpack.c.b16 %v2517, %v2513
    %v2674 = vpack.c.b16 %v2522, %v2518
    %v2675 = vpack.c.b16 %v2523, %v2519
    %v2676 = vpack.c.b16 %v2524, %v2520
    %v2677 = vpack.c.b16 %v2525, %v2521
    %v2678 = vpack.c.b16 %v2530, %v2526
    %v2679 = vpack.c.b16 %v2531, %v2527
    %v2680 = vpack.c.b16 %v2532, %v2528
    %v2681 = vpack.c.b16 %v2533, %v2529
    %v2682 = vpack.c.b16 %v2538, %v2534
    %v2683 = vpack.c.b16 %v2539, %v2535
    %v2684 = vpack.c.b16 %v2540, %v2536
    %v2685 = vpack.c.b16 %v2541, %v2537
    %v2686 = vpack.c.b16 %v2546, %v2542
    %v2687 = vpack.c.b16 %v2547, %v2543
    %v2688 = vpack.c.b16 %v2548, %v2544
    %v2689 = vpack.c.b16 %v2549, %v2545
    %v2690 = vpack.c.b16 %v2554, %v2550
    %v2691 = vpack.c.b16 %v2555, %v2551
    %v2692 = vpack.c.b16 %v2556, %v2552
    %v2693 = vpack.c.b16 %v2557, %v2553
    %v2694 = vpack.c.b16 %v2562, %v2558
    %v2695 = vpack.c.b16 %v2563, %v2559
    %v2696 = vpack.c.b16 %v2564, %v2560
    %v2697 = vpack.c.b16 %v2565, %v2561
    %v2698 = vpack.c.b16 %v2570, %v2566
    %v2699 = vpack.c.b16 %v2571, %v2567
    %v2700 = vpack.c.b16 %v2572, %v2568
    %v2701 = vpack.c.b16 %v2573, %v2569
    %2830 = vmatprep.subr.bf16.mxu0 %v2575
    %2831 = vmatpush1.bf16.msra.mxu0 %v2574
    %2832 = vmatprep.subr.bf16.mxu0 %v2579
    %2833 = vmatpush1.bf16.msra.mxu0 %v2578
    %2834 = vmatprep.subr.bf16.mxu0 %v2583
    %2835 = vmatpush1.bf16.msra.mxu0 %v2582
    %2836 = vmatprep.subr.bf16.mxu0 %v2587
    %2837 = vmatpush1.bf16.msra.mxu0 %v2586
    %2838 = vmatprep.subr.bf16.mxu0 %v2591
    %2839 = vmatpush1.bf16.msra.mxu0 %v2590
    %2840 = vmatprep.subr.bf16.mxu0 %v2595
    %2841 = vmatpush1.bf16.msra.mxu0 %v2594
    %2842 = vmatprep.subr.bf16.mxu0 %v2599
    %2843 = vmatpush1.bf16.msra.mxu0 %v2598
    %2844 = vmatprep.subr.bf16.mxu0 %v2603
    %2845 = vmatpush1.bf16.msra.mxu0 %v2602
    %2846 = vmatprep.subr.bf16.mxu0 %v2607
    %2847 = vmatpush1.bf16.msra.mxu0 %v2606
    %2848 = vmatprep.subr.bf16.mxu0 %v2611
    %2849 = vmatpush1.bf16.msra.mxu0 %v2610
    %2850 = vmatprep.subr.bf16.mxu0 %v2615
    %2851 = vmatpush1.bf16.msra.mxu0 %v2614
    %2852 = vmatprep.subr.bf16.mxu0 %v2619
    %2853 = vmatpush1.bf16.msra.mxu0 %v2618
    %2854 = vmatprep.subr.bf16.mxu0 %v2623
    %2855 = vmatpush1.bf16.msra.mxu0 %v2622
    %2856 = vmatprep.subr.bf16.mxu0 %v2627
    %2857 = vmatpush1.bf16.msra.mxu0 %v2626
    %2858 = vmatprep.subr.bf16.mxu0 %v2631
    %2859 = vmatpush1.bf16.msra.mxu0 %v2630
    %2860 = vmatprep.subr.bf16.mxu0 %v2635
    %2861 = vmatpush1.bf16.msra.mxu0 %v2634
    %2862 = vmatprep.mubr.bf16.mxu0 %v2013
    %2863 = vmatmul.mubr.bf16.gmra.mrb[0].mxu0 %v2012
    %v2864 = vpop.f32.mrb[0].mxu0
    %v2865 = vadd.f32 %v2173, %v2864
    %v2866 = vpop.f32.mrb[0].mxu0
    %v2867 = vadd.f32 %v2177, %v2866
    %v2868 = vpop.f32.mrb[0].mxu0
    %v2869 = vadd.f32 %v2173, %v2868
    %v2870 = vpop.f32.mrb[0].mxu0
    %v2871 = vadd.f32 %v2177, %v2870
    %2872 = vdwg.mxu0
    %2873 = vmatprep.subr.bf16.mxu0 %v2639
    %2874 = vmatpush1.bf16.msra.mxu0 %v2638
    %2875 = vmatprep.subr.bf16.mxu0 %v2643
    %2876 = vmatpush1.bf16.msra.mxu0 %v2642
    %2877 = vmatprep.subr.bf16.mxu0 %v2647
    %2878 = vmatpush1.bf16.msra.mxu0 %v2646
    %2879 = vmatprep.subr.bf16.mxu0 %v2651
    %2880 = vmatpush1.bf16.msra.mxu0 %v2650
    %2881 = vmatprep.subr.bf16.mxu0 %v2655
    %2882 = vmatpush1.bf16.msra.mxu0 %v2654
    %2883 = vmatprep.subr.bf16.mxu0 %v2659
    %2884 = vmatpush1.bf16.msra.mxu0 %v2658
    %2885 = vmatprep.subr.bf16.mxu0 %v2663
    %2886 = vmatpush1.bf16.msra.mxu0 %v2662
    %2887 = vmatprep.subr.bf16.mxu0 %v2667
    %2888 = vmatpush1.bf16.msra.mxu0 %v2666
    %2889 = vmatprep.subr.bf16.mxu0 %v2671
    %2890 = vmatpush1.bf16.msra.mxu0 %v2670
    %2891 = vmatprep.subr.bf16.mxu0 %v2675
    %2892 = vmatpush1.bf16.msra.mxu0 %v2674
    %2893 = vmatprep.subr.bf16.mxu0 %v2679
    %2894 = vmatpush1.bf16.msra.mxu0 %v2678
    %2895 = vmatprep.subr.bf16.mxu0 %v2683
    %2896 = vmatpush1.bf16.msra.mxu0 %v2682
    %2897 = vmatprep.subr.bf16.mxu0 %v2687
    %2898 = vmatpush1.bf16.msra.mxu0 %v2686
    %2899 = vmatprep.subr.bf16.mxu0 %v2691
    %2900 = vmatpush1.bf16.msra.mxu0 %v2690
    %2901 = vmatprep.subr.bf16.mxu0 %v2695
    %2902 = vmatpush1.bf16.msra.mxu0 %v2694
    %2903 = vmatprep.subr.bf16.mxu0 %v2699
    %2904 = vmatpush1.bf16.msra.mxu0 %v2698
    %2905 = vmatprep.mubr.bf16.mxu0 %v2015
    %2906 = vmatmul.mubr.bf16.gmra.mrb[0].mxu0 %v2014
    %v2907 = vpop.f32.mrb[0].mxu0
    %v2908 = vadd.f32 %v2865, %v2907
    %v2909 = vpop.f32.mrb[0].mxu0
    %v2910 = vadd.f32 %v2867, %v2909
    %v2911 = vpop.f32.mrb[0].mxu0
    %v2912 = vadd.f32 %v2869, %v2911
    %v2913 = vpop.f32.mrb[0].mxu0
    %v2914 = vadd.f32 %v2871, %v2913
    %2915 = vdwg.mxu0
    %2916 = vmatprep.subr.bf16.mxu0 %v2577
    %2917 = vmatpush1.bf16.msra.mxu0 %v2576
    %2918 = vmatprep.subr.bf16.mxu0 %v2581
    %2919 = vmatpush1.bf16.msra.mxu0 %v2580
    %2920 = vmatprep.subr.bf16.mxu0 %v2585
    %2921 = vmatpush1.bf16.msra.mxu0 %v2584
    %2922 = vmatprep.subr.bf16.mxu0 %v2589
    %2923 = vmatpush1.bf16.msra.mxu0 %v2588
    %2924 = vmatprep.subr.bf16.mxu0 %v2593
    %2925 = vmatpush1.bf16.msra.mxu0 %v2592
    %2926 = vmatprep.subr.bf16.mxu0 %v2597
    %2927 = vmatpush1.bf16.msra.mxu0 %v2596
    %2928 = vmatprep.subr.bf16.mxu0 %v2601
    %2929 = vmatpush1.bf16.msra.mxu0 %v2600
    %2930 = vmatprep.subr.bf16.mxu0 %v2605
    %2931 = vmatpush1.bf16.msra.mxu0 %v2604
    %2932 = vmatprep.subr.bf16.mxu0 %v2609
    %2933 = vmatpush1.bf16.msra.mxu0 %v2608
    %2934 = vmatprep.subr.bf16.mxu0 %v2613
    %2935 = vmatpush1.bf16.msra.mxu0 %v2612
    %2936 = vmatprep.subr.bf16.mxu0 %v2617
    %2937 = vmatpush1.bf16.msra.mxu0 %v2616
    %2938 = vmatprep.subr.bf16.mxu0 %v2621
    %2939 = vmatpush1.bf16.msra.mxu0 %v2620
    %2940 = vmatprep.subr.bf16.mxu0 %v2625
    %2941 = vmatpush1.bf16.msra.mxu0 %v2624
    %2942 = vmatprep.subr.bf16.mxu0 %v2629
    %2943 = vmatpush1.bf16.msra.mxu0 %v2628
    %2944 = vmatprep.subr.bf16.mxu0 %v2633
    %2945 = vmatpush1.bf16.msra.mxu0 %v2632
    %2946 = vmatprep.subr.bf16.mxu0 %v2637
    %2947 = vmatpush1.bf16.msra.mxu0 %v2636
    %2948 = vmatprep.mubr.bf16.mxu0 %v2013
    %2949 = vmatmul.mubr.bf16.gmra.mrb[0].mxu0 %v2012
    %v2950 = vpop.f32.mrb[0].mxu0
    %v2951 = vadd.f32 %v2181, %v2950
    %v2952 = vpop.f32.mrb[0].mxu0
    %v2953 = vadd.f32 %v2185, %v2952
    %v2954 = vpop.f32.mrb[0].mxu0
    %v2955 = vadd.f32 %v2181, %v2954
    %v2956 = vpop.f32.mrb[0].mxu0
    %v2957 = vadd.f32 %v2185, %v2956
    %2958 = vdwg.mxu0
    %2959 = vmatprep.subr.bf16.mxu0 %v2641
    %2960 = vmatpush1.bf16.msra.mxu0 %v2640
    %2961 = vmatprep.subr.bf16.mxu0 %v2645
    %2962 = vmatpush1.bf16.msra.mxu0 %v2644
    %2963 = vmatprep.subr.bf16.mxu0 %v2649
    %2964 = vmatpush1.bf16.msra.mxu0 %v2648
    %2965 = vmatprep.subr.bf16.mxu0 %v2653
    %2966 = vmatpush1.bf16.msra.mxu0 %v2652
    %2967 = vmatprep.subr.bf16.mxu0 %v2657
    %2968 = vmatpush1.bf16.msra.mxu0 %v2656
    %2969 = vmatprep.subr.bf16.mxu0 %v2661
    %2970 = vmatpush1.bf16.msra.mxu0 %v2660
    %2971 = vmatprep.subr.bf16.mxu0 %v2665
    %2972 = vmatpush1.bf16.msra.mxu0 %v2664
    %2973 = vmatprep.subr.bf16.mxu0 %v2669
    %2974 = vmatpush1.bf16.msra.mxu0 %v2668
    %2975 = vmatprep.subr.bf16.mxu0 %v2673
    %2976 = vmatpush1.bf16.msra.mxu0 %v2672
    %2977 = vmatprep.subr.bf16.mxu0 %v2677
    %2978 = vmatpush1.bf16.msra.mxu0 %v2676
    %2979 = vmatprep.subr.bf16.mxu0 %v2681
    %2980 = vmatpush1.bf16.msra.mxu0 %v2680
    %2981 = vmatprep.subr.bf16.mxu0 %v2685
    %2982 = vmatpush1.bf16.msra.mxu0 %v2684
    %2983 = vmatprep.subr.bf16.mxu0 %v2689
    %2984 = vmatpush1.bf16.msra.mxu0 %v2688
    %2985 = vmatprep.subr.bf16.mxu0 %v2693
    %2986 = vmatpush1.bf16.msra.mxu0 %v2692
    %2987 = vmatprep.subr.bf16.mxu0 %v2697
    %2988 = vmatpush1.bf16.msra.mxu0 %v2696
    %2989 = vmatprep.subr.bf16.mxu0 %v2701
    %2990 = vmatpush1.bf16.msra.mxu0 %v2700
    %2991 = vmatprep.mubr.bf16.mxu0 %v2015
    %2992 = vmatmul.mubr.bf16.gmra.mrb[0].mxu0 %v2014
    %v2993 = vpop.f32.mrb[0].mxu0
    %v2994 = vadd.f32 %v2951, %v2993
    %v2995 = vpop.f32.mrb[0].mxu0
    %v2996 = vadd.f32 %v2953, %v2995
    %v2997 = vpop.f32.mrb[0].mxu0
    %v2998 = vadd.f32 %v2955, %v2997
    %v2999 = vpop.f32.mrb[0].mxu0
    %v3000 = vadd.f32 %v2957, %v2999
    %3001 = vdwg.mxu0
    %v3002 = vmax.f32 %v2908, 0.0
    %v3003 = vmax.f32 %v2910, 0.0
    %v3004 = vmax.f32 %v2994, 0.0
    %v3005 = vmax.f32 %v2996, 0.0
    %v3006 = vmax.f32 %v2912, 0.0
    %v3007 = vmax.f32 %v2914, 0.0
    %v3008 = vmax.f32 %v2998, 0.0
    %v3009 = vmax.f32 %v3000, 0.0
    %v3010 = vpack.c.bf16 %v3006, %v3002
    %v3011 = vpack.c.bf16 %v3007, %v3003
    %v3012 = vpack.c.bf16 %v3008, %v3004
    %v3013 = vpack.c.bf16 %v3009, %v3005
    %v3014 = vld [vmem:[#allocation8] sm:$0xf]
    %v3015 = vld [vmem:[#allocation8 + $0x4] sm:$0xf]
    %v3016 = vld [vmem:[#allocation8 + $0x8] sm:$0xf]
    %v3017 = vld [vmem:[#allocation8 + $0xc] sm:$0xf]
    %v3018 = vld [vmem:[#allocation8 + $0x10] sm:$0xf]
    %v3019 = vld [vmem:[#allocation8 + $0x14] sm:$0xf]
    %v3020 = vld [vmem:[#allocation8 + $0x18] sm:$0xf]
    %v3021 = vld [vmem:[#allocation8 + $0x1c] sm:$0xf]
    %v3022 = vld [vmem:[#allocation8 + $0x20] sm:$0xf]
    %v3023 = vld [vmem:[#allocation8 + $0x24] sm:$0xf]
    %v3024 = vld [vmem:[#allocation8 + $0x28] sm:$0xf]
    %v3025 = vld [vmem:[#allocation8 + $0x2c] sm:$0xf]
    %v3026 = vld [vmem:[#allocation8 + $0x30] sm:$0xf]
    %v3027 = vld [vmem:[#allocation8 + $0x34] sm:$0xf]
    %v3028 = vld [vmem:[#allocation8 + $0x38] sm:$0xf]
    %v3029 = vld [vmem:[#allocation8 + $0x3c] sm:$0xf]
    %v3030 = vld [vmem:[#allocation8 + $0x40] sm:$0xf]
    %v3031 = vld [vmem:[#allocation8 + $0x44] sm:$0xf]
    %v3032 = vld [vmem:[#allocation8 + $0x48] sm:$0xf]
    %v3033 = vld [vmem:[#allocation8 + $0x4c] sm:$0xf]
    %v3034 = vld [vmem:[#allocation8 + $0x50] sm:$0xf]
    %v3035 = vld [vmem:[#allocation8 + $0x54] sm:$0xf]
    %v3036 = vld [vmem:[#allocation8 + $0x58] sm:$0xf]
    %v3037 = vld [vmem:[#allocation8 + $0x5c] sm:$0xf]
    %v3038 = vld [vmem:[#allocation8 + $0x60] sm:$0xf]
    %v3039 = vld [vmem:[#allocation8 + $0x64] sm:$0xf]
    %v3040 = vld [vmem:[#allocation8 + $0x68] sm:$0xf]
    %v3041 = vld [vmem:[#allocation8 + $0x6c] sm:$0xf]
    %v3042 = vld [vmem:[#allocation8 + $0x70] sm:$0xf]
    %v3043 = vld [vmem:[#allocation8 + $0x74] sm:$0xf]
    %v3044 = vld [vmem:[#allocation8 + $0x78] sm:$0xf]
    %v3045 = vld [vmem:[#allocation8 + $0x7c] sm:$0xf]
    %v3046 = vld [vmem:[#allocation8 + $0x80] sm:$0xf]
    %v3047 = vld [vmem:[#allocation8 + $0x84] sm:$0xf]
    %v3048 = vld [vmem:[#allocation8 + $0x88] sm:$0xf]
    %v3049 = vld [vmem:[#allocation8 + $0x8c] sm:$0xf]
    %v3050 = vld [vmem:[#allocation8 + $0x90] sm:$0xf]
    %v3051 = vld [vmem:[#allocation8 + $0x94] sm:$0xf]
    %v3052 = vld [vmem:[#allocation8 + $0x98] sm:$0xf]
    %v3053 = vld [vmem:[#allocation8 + $0x9c] sm:$0xf]
    %v3054 = vld [vmem:[#allocation8 + $0xa0] sm:$0xf]
    %v3055 = vld [vmem:[#allocation8 + $0xa4] sm:$0xf]
    %v3056 = vld [vmem:[#allocation8 + $0xa8] sm:$0xf]
    %v3057 = vld [vmem:[#allocation8 + $0xac] sm:$0xf]
    %v3058 = vld [vmem:[#allocation8 + $0xb0] sm:$0xf]
    %v3059 = vld [vmem:[#allocation8 + $0xb4] sm:$0xf]
    %v3060 = vld [vmem:[#allocation8 + $0xb8] sm:$0xf]
    %v3061 = vld [vmem:[#allocation8 + $0xbc] sm:$0xf]
    %v3062 = vld [vmem:[#allocation8 + $0xc0] sm:$0xf]
    %v3063 = vld [vmem:[#allocation8 + $0xc4] sm:$0xf]
    %v3064 = vld [vmem:[#allocation8 + $0xc8] sm:$0xf]
    %v3065 = vld [vmem:[#allocation8 + $0xcc] sm:$0xf]
    %v3066 = vld [vmem:[#allocation8 + $0xd0] sm:$0xf]
    %v3067 = vld [vmem:[#allocation8 + $0xd4] sm:$0xf]
    %v3068 = vld [vmem:[#allocation8 + $0xd8] sm:$0xf]
    %v3069 = vld [vmem:[#allocation8 + $0xdc] sm:$0xf]
    %v3070 = vld [vmem:[#allocation8 + $0xe0] sm:$0xf]
    %v3071 = vld [vmem:[#allocation8 + $0xe4] sm:$0xf]
    %v3072 = vld [vmem:[#allocation8 + $0xe8] sm:$0xf]
    %v3073 = vld [vmem:[#allocation8 + $0xec] sm:$0xf]
    %v3074 = vld [vmem:[#allocation8 + $0xf0] sm:$0xf]
    %v3075 = vld [vmem:[#allocation8 + $0xf4] sm:$0xf]
    %v3076 = vld [vmem:[#allocation8 + $0xf8] sm:$0xf]
    %v3077 = vld [vmem:[#allocation8 + $0xfc] sm:$0xf]
    %v3078 = vld [vmem:[%s6] sm:$0x1]
    %v3080 = vlaneseq
    %v3081 = vshrl.u32 %v3080, 7
    %v3082 = vsub.s32 0, %v3081
    %v3083 = vrot.slane %v3078, %v3082
    %v3149 = vunpack.c.l.b16 %v3014
    %v3150 = vunpack.c.l.b16 %v3015
    %v3151 = vunpack.c.l.b16 %v3016
    %v3152 = vunpack.c.l.b16 %v3017
    %v3153 = vunpack.c.l.b16 %v3018
    %v3154 = vunpack.c.l.b16 %v3019
    %v3155 = vunpack.c.l.b16 %v3020
    %v3156 = vunpack.c.l.b16 %v3021
    %v3157 = vunpack.c.l.b16 %v3022
    %v3158 = vunpack.c.l.b16 %v3023
    %v3159 = vunpack.c.l.b16 %v3024
    %v3160 = vunpack.c.l.b16 %v3025
    %v3161 = vunpack.c.l.b16 %v3026
    %v3162 = vunpack.c.l.b16 %v3027
    %v3163 = vunpack.c.l.b16 %v3028
    %v3164 = vunpack.c.l.b16 %v3029
    %v3165 = vunpack.c.l.b16 %v3030
    %v3166 = vunpack.c.l.b16 %v3031
    %v3167 = vunpack.c.l.b16 %v3032
    %v3168 = vunpack.c.l.b16 %v3033
    %v3169 = vunpack.c.l.b16 %v3034
    %v3170 = vunpack.c.l.b16 %v3035
    %v3171 = vunpack.c.l.b16 %v3036
    %v3172 = vunpack.c.l.b16 %v3037
    %v3173 = vunpack.c.l.b16 %v3038
    %v3174 = vunpack.c.l.b16 %v3039
    %v3175 = vunpack.c.l.b16 %v3040
    %v3176 = vunpack.c.l.b16 %v3041
    %v3177 = vunpack.c.l.b16 %v3042
    %v3178 = vunpack.c.l.b16 %v3043
    %v3179 = vunpack.c.l.b16 %v3044
    %v3180 = vunpack.c.l.b16 %v3045
    %v3181 = vunpack.c.l.b16 %v3046
    %v3182 = vunpack.c.l.b16 %v3047
    %v3183 = vunpack.c.l.b16 %v3048
    %v3184 = vunpack.c.l.b16 %v3049
    %v3185 = vunpack.c.l.b16 %v3050
    %v3186 = vunpack.c.l.b16 %v3051
    %v3187 = vunpack.c.l.b16 %v3052
    %v3188 = vunpack.c.l.b16 %v3053
    %v3189 = vunpack.c.l.b16 %v3054
    %v3190 = vunpack.c.l.b16 %v3055
    %v3191 = vunpack.c.l.b16 %v3056
    %v3192 = vunpack.c.l.b16 %v3057
    %v3193 = vunpack.c.l.b16 %v3058
    %v3194 = vunpack.c.l.b16 %v3059
    %v3195 = vunpack.c.l.b16 %v3060
    %v3196 = vunpack.c.l.b16 %v3061
    %v3197 = vunpack.c.l.b16 %v3062
    %v3198 = vunpack.c.l.b16 %v3063
    %v3199 = vunpack.c.l.b16 %v3064
    %v3200 = vunpack.c.l.b16 %v3065
    %v3201 = vunpack.c.l.b16 %v3066
    %v3202 = vunpack.c.l.b16 %v3067
    %v3203 = vunpack.c.l.b16 %v3068
    %v3204 = vunpack.c.l.b16 %v3069
    %v3205 = vunpack.c.l.b16 %v3070
    %v3206 = vunpack.c.l.b16 %v3071
    %v3207 = vunpack.c.l.b16 %v3072
    %v3208 = vunpack.c.l.b16 %v3073
    %v3209 = vunpack.c.l.b16 %v3074
    %v3210 = vunpack.c.l.b16 %v3075
    %v3211 = vunpack.c.l.b16 %v3076
    %v3212 = vunpack.c.l.b16 %v3077
    %v3213 = vpack.c.b16 %v3150, %v3149
    %v3214 = vpack.c.b16 %v3152, %v3151
    %v3215 = vpack.c.b16 %v3154, %v3153
    %v3216 = vpack.c.b16 %v3156, %v3155
    %v3217 = vpack.c.b16 %v3158, %v3157
    %v3218 = vpack.c.b16 %v3160, %v3159
    %v3219 = vpack.c.b16 %v3162, %v3161
    %v3220 = vpack.c.b16 %v3164, %v3163
    %v3221 = vpack.c.b16 %v3166, %v3165
    %v3222 = vpack.c.b16 %v3168, %v3167
    %v3223 = vpack.c.b16 %v3170, %v3169
    %v3224 = vpack.c.b16 %v3172, %v3171
    %v3225 = vpack.c.b16 %v3174, %v3173
    %v3226 = vpack.c.b16 %v3176, %v3175
    %v3227 = vpack.c.b16 %v3178, %v3177
    %v3228 = vpack.c.b16 %v3180, %v3179
    %v3229 = vpack.c.b16 %v3182, %v3181
    %v3230 = vpack.c.b16 %v3184, %v3183
    %v3231 = vpack.c.b16 %v3186, %v3185
    %v3232 = vpack.c.b16 %v3188, %v3187
    %v3233 = vpack.c.b16 %v3190, %v3189
    %v3234 = vpack.c.b16 %v3192, %v3191
    %v3235 = vpack.c.b16 %v3194, %v3193
    %v3236 = vpack.c.b16 %v3196, %v3195
    %v3237 = vpack.c.b16 %v3198, %v3197
    %v3238 = vpack.c.b16 %v3200, %v3199
    %v3239 = vpack.c.b16 %v3202, %v3201
    %v3240 = vpack.c.b16 %v3204, %v3203
    %v3241 = vpack.c.b16 %v3206, %v3205
    %v3242 = vpack.c.b16 %v3208, %v3207
    %v3243 = vpack.c.b16 %v3210, %v3209
    %v3244 = vpack.c.b16 %v3212, %v3211
    %3277 = vmatprep.subr.bf16.mxu0 0
    %3278 = vmatpush1.bf16.msra.mxu0 %v3213
    %3279 = vmatprep.subr.bf16.mxu0 0
    %3280 = vmatpush1.bf16.msra.mxu0 %v3214
    %3281 = vmatprep.subr.bf16.mxu0 0
    %3282 = vmatpush1.bf16.msra.mxu0 %v3215
    %3283 = vmatprep.subr.bf16.mxu0 0
    %3284 = vmatpush1.bf16.msra.mxu0 %v3216
    %3285 = vmatprep.subr.bf16.mxu0 0
    %3286 = vmatpush1.bf16.msra.mxu0 %v3217
    %3287 = vmatprep.subr.bf16.mxu0 0
    %3288 = vmatpush1.bf16.msra.mxu0 %v3218
    %3289 = vmatprep.subr.bf16.mxu0 0
    %3290 = vmatpush1.bf16.msra.mxu0 %v3219
    %3291 = vmatprep.subr.bf16.mxu0 0
    %3292 = vmatpush1.bf16.msra.mxu0 %v3220
    %3293 = vmatprep.subr.bf16.mxu0 0
    %3294 = vmatpush1.bf16.msra.mxu0 %v3221
    %3295 = vmatprep.subr.bf16.mxu0 0
    %3296 = vmatpush1.bf16.msra.mxu0 %v3222
    %3297 = vmatprep.subr.bf16.mxu0 0
    %3298 = vmatpush1.bf16.msra.mxu0 %v3223
    %3299 = vmatprep.subr.bf16.mxu0 0
    %3300 = vmatpush1.bf16.msra.mxu0 %v3224
    %3301 = vmatprep.subr.bf16.mxu0 0
    %3302 = vmatpush1.bf16.msra.mxu0 %v3225
    %3303 = vmatprep.subr.bf16.mxu0 0
    %3304 = vmatpush1.bf16.msra.mxu0 %v3226
    %3305 = vmatprep.subr.bf16.mxu0 0
    %3306 = vmatpush1.bf16.msra.mxu0 %v3227
    %3307 = vmatprep.subr.bf16.mxu0 0
    %3308 = vmatpush1.bf16.msra.mxu0 %v3228
    %3309 = vmatprep.mubr.bf16.mxu0 %v3011
    %3310 = vmatmul.mubr.bf16.gmra.mrb[0].mxu0 %v3010
    %v3311 = vpop.f32.mrb[0].mxu0
    %v3312 = vadd.f32 %v3083, %v3311
    %v3313 = vpop.f32.mrb[0].mxu0
    %v3314 = vpop.f32.mrb[0].mxu0
    %v3315 = vadd.f32 %v3083, %v3314
    %v3316 = vpop.f32.mrb[0].mxu0
    %3317 = vdwg.mxu0
    %3318 = vmatprep.subr.bf16.mxu0 0
    %3319 = vmatpush1.bf16.msra.mxu0 %v3229
    %3320 = vmatprep.subr.bf16.mxu0 0
    %3321 = vmatpush1.bf16.msra.mxu0 %v3230
    %3322 = vmatprep.subr.bf16.mxu0 0
    %3323 = vmatpush1.bf16.msra.mxu0 %v3231
    %3324 = vmatprep.subr.bf16.mxu0 0
    %3325 = vmatpush1.bf16.msra.mxu0 %v3232
    %3326 = vmatprep.subr.bf16.mxu0 0
    %3327 = vmatpush1.bf16.msra.mxu0 %v3233
    %3328 = vmatprep.subr.bf16.mxu0 0
    %3329 = vmatpush1.bf16.msra.mxu0 %v3234
    %3330 = vmatprep.subr.bf16.mxu0 0
    %3331 = vmatpush1.bf16.msra.mxu0 %v3235
    %3332 = vmatprep.subr.bf16.mxu0 0
    %3333 = vmatpush1.bf16.msra.mxu0 %v3236
    %3334 = vmatprep.subr.bf16.mxu0 0
    %3335 = vmatpush1.bf16.msra.mxu0 %v3237
    %3336 = vmatprep.subr.bf16.mxu0 0
    %3337 = vmatpush1.bf16.msra.mxu0 %v3238
    %3338 = vmatprep.subr.bf16.mxu0 0
    %3339 = vmatpush1.bf16.msra.mxu0 %v3239
    %3340 = vmatprep.subr.bf16.mxu0 0
    %3341 = vmatpush1.bf16.msra.mxu0 %v3240
    %3342 = vmatprep.subr.bf16.mxu0 0
    %3343 = vmatpush1.bf16.msra.mxu0 %v3241
    %3344 = vmatprep.subr.bf16.mxu0 0
    %3345 = vmatpush1.bf16.msra.mxu0 %v3242
    %3346 = vmatprep.subr.bf16.mxu0 0
    %3347 = vmatpush1.bf16.msra.mxu0 %v3243
    %3348 = vmatprep.subr.bf16.mxu0 0
    %3349 = vmatpush1.bf16.msra.mxu0 %v3244
    %3350 = vmatprep.mubr.bf16.mxu0 %v3013
    %3351 = vmatmul.mubr.bf16.gmra.mrb[0].mxu0 %v3012
    %v3352 = vpop.f32.mrb[0].mxu0
    %v3353 = vadd.f32 %v3312, %v3352
    %v3354 = vpop.f32.mrb[0].mxu0
    %v3355 = vpop.f32.mrb[0].mxu0
    %v3356 = vadd.f32 %v3315, %v3355
    %v3357 = vpop.f32.mrb[0].mxu0
    %3358 = vdwg.mxu0
    %3359 = vst [vmem:[#allocation11] sm:$0xff] %v3353
    %3360 = vst [vmem:[#allocation11 + $0x8] sm:$0xff] %v3356
    // Predicated region
    $region46: #{tpu_custom_call.1} parent=1 // pred_check
      _
    $region47: #{tpu_custom_call.1} parent=1 // pred_check_branch
      %3362 = sbr.rel (0) target = $region49
    $region48: #{tpu_custom_call.1} parent=1 // pred_region
      %s3364 = ssub.s32 512, 512
      %3365 = vsyncadd [#allocation4], %s3364
      %s3366 = sshll.u32 [#allocation10], 4
      %s3367 = int_to_ptr.vmem [resolvable:$true] %s3366
      %3372 = dma.vmem_to_hbm [thread:$0]  %s3367, 512, %s7, [#allocation4], 256, 256, 16
    $region49: #{tpu_custom_call.1} parent=1 // pred_fallthru
      _
    // Predicated region
    $region50: #{tpu_custom_call.1} parent=1 // pred_check
      _
    $region51: #{tpu_custom_call.1} parent=1 // pred_check_branch
      %3374 = sbr.rel (0) target = $region53
    $region52: #{tpu_custom_call.1} parent=1 // pred_region
      %s3376 = ssub.s32 256, 256
      %3377 = vsyncadd [#allocation12], %s3376
      %s3378 = sshll.u32 [#allocation11], 4
      %s3379 = int_to_ptr.vmem [resolvable:$true] %s3378
      %3384 = dma.vmem_to_hbm [thread:$0]  %s3379, 256, %s8, [#allocation12], 128, 128, 8
    $region53: #{tpu_custom_call.1} parent=1 // pred_fallthru
      _
    // Predicated region
    $region54: #{tpu_custom_call.1} parent=1 // pred_check
      _
    $region55: #{tpu_custom_call.1} parent=1 // pred_check_branch
      %3386 = sbr.rel (0) target = $region57
    $region56: #{tpu_custom_call.1} parent=1 // pred_region
      %3387 = dma.done [#allocation4], 512
    $region57: #{tpu_custom_call.1} parent=1 // pred_fallthru
      _
    // Predicated region
    $region58: #{tpu_custom_call.1} parent=1 // pred_check
      _
    $region59: #{tpu_custom_call.1} parent=1 // pred_check_branch
      %3389 = sbr.rel (0) target = $region61
    $region60: #{tpu_custom_call.1} parent=1 // pred_region
      %3390 = dma.done [#allocation12], 256
    $region61: #{tpu_custom_call.1} parent=1 // pred_fallthru
      _
    %3391 = vsyncpa [#allocation3], 1
    %3392 = vsyncpa [#allocation6], 1
    %3393 = vsyncpa [#allocation9], 1
    %3394 = vsyncpa [#allocation4], 1
    %3395 = vsyncpa [#allocation12], 1

// kernel: tpu_custom_call.1
$region0: #{tpu_custom_call.1}
  #allocation0 [shape = 'u32[]', space=smem, size = 0x4, offset = 0x4, fixed_abs, tag = 'smem constant byte address 0x4 - core index']
  #allocation1 [shape = 'u32[144,128]{1,0:T(1,128)}', space=vmem, size = 0x12000, scoped, tag = 'internal scratch']
  %s0 = inlined_call_operand.hbm [shape: f32[16,1024], index: 0, kind: input, shape index: {}]
  %s1 = inlined_call_operand.hbm [shape: bf16[1024,512], index: 1, kind: input, shape index: {}]
  %s2 = inlined_call_operand.vmem [shape: f32[1,512], index: 2, kind: input, shape index: {}]
  %s3 = inlined_call_operand.hbm [shape: bf16[512,512], index: 3, kind: input, shape index: {}]
  %s4 = inlined_call_operand.vmem [shape: f32[1,512], index: 4, kind: input, shape index: {}]
  %s5 = inlined_call_operand.hbm [shape: bf16[512,128], index: 5, kind: input, shape index: {}]
  %s6 = inlined_call_operand.vmem [shape: f32[1,128], index: 6, kind: input, shape index: {}]
  %s7 = inlined_call_operand.hbm [shape: bf16[16,512], index: 7, kind: output, shape index: {0}]
  %s8 = inlined_call_operand.hbm [shape: f32[16,128], index: 8, kind: output, shape index: {1}]
  %9 = xla_tuple %s7, %s8
  %s10 = sld [smem:[#allocation0]]
  $region62: #{tpu_custom_call.1} parent=0
    _
  %s12 = ssub.s32 1, %s10
  %s13 = scalar_select 0, %s12, %s10
  $region1: #{tpu_custom_call.1} parent=0
    #allocation2 [shape = 'u8[65536]{0}', space=vmem, size = 0x10000, scoped, tag = 'input window, operand 0, single buffered']
    #allocation3 [shape = 's32[1]{0}', space=sflag, size = 0x4, scoped, tag = 'scoped memory for tpu_custom_call.1']
    #allocation4 [shape = 's32[1]{0}', space=sflag, size = 0x4, scoped, tag = 'scoped memory for tpu_custom_call.1']
    #allocation5 [shape = 'u8[1048576]{0}', space=vmem, size = 0x100000, scoped, tag = 'input window, operand 1, single buffered']
    #allocation6 [shape = 's32[1]{0}', space=sflag, size = 0x4, scoped, tag = 'scoped memory for tpu_custom_call.1']
    #allocation7 [shape = 'u8[524288]{0}', space=vmem, size = 0x80000, scoped, tag = 'input window, operand 3, single buffered']
    #allocation8 [shape = 'u8[131072]{0}', space=vmem, size = 0x20000, scoped, tag = 'input window, operand 5, single buffered']
    #allocation9 [shape = 's32[1]{0}', space=sflag, size = 0x4, scoped, tag = 'scoped memory for tpu_custom_call.1']
    #allocation10 [shape = 'u8[16384]{0}', space=vmem, size = 0x4000, scoped, tag = 'output window, operand 0, single buffered']
    #allocation11 [shape = 'u8[8192]{0}', space=vmem, size = 0x2000, scoped, tag = 'output window, operand 1, single buffered']
    #allocation12 [shape = 's32[1]{0}', space=sflag, size = 0x4, scoped, tag = 'scoped memory for tpu_custom_call.1']
    %14 = vsyncpa [#allocation3], 0
    %15 = vsyncpa [#allocation6], 0
    %16 = vsyncpa [#allocation9], 0
    %17 = vsyncpa [#allocation4], 0
    %18 = vsyncpa [#allocation12], 0
    // Predicated region
    $region2: #{tpu_custom_call.1} parent=1 // pred_check
      _
    $region3: #{tpu_custom_call.1} parent=1 // pred_check_branch
      %20 = sbr.rel (0) target = $region5
    $region4: #{tpu_custom_call.1} parent=1 // pred_region
      %s22 = ssub.s32 2048, 2048
      %23 = vsyncadd [#allocation3], %s22
      %s24 = sshll.u32 [#allocation2], 4
      %s25 = int_to_ptr.vmem [resolvable:$true] %s24
      %30 = dma.hbm_to_vmem [thread:$0]  %s0, 2048, %s25, [#allocation3], 1024, 1024, 64
    $region5: #{tpu_custom_call.1} parent=1 // pred_fallthru
      _
    // Predicated region
    $region6: #{tpu_custom_call.1} parent=1 // pred_check
      _
    $region7: #{tpu_custom_call.1} parent=1 // pred_check_branch
      %32 = sbr.rel (0) target = $region9
    $region8: #{tpu_custom_call.1} parent=1 // pred_region
      %s34 = ssub.s32 32768, 32768
      %35 = vsyncadd [#allocation6], %s34
      %s36 = sshll.u32 [#allocation5], 4
      %s37 = int_to_ptr.vmem [resolvable:$true] %s36
      %42 = dma.hbm_to_vmem [thread:$0]  %s1, 32768, %s37, [#allocation6], 256, 256, 16
    $region9: #{tpu_custom_call.1} parent=1 // pred_fallthru
      _
    // Predicated region
    $region10: #{tpu_custom_call.1} parent=1 // pred_check
      _
    $region11: #{tpu_custom_call.1} parent=1 // pred_check_branch
      %44 = sbr.rel (0) target = $region13
    $region12: #{tpu_custom_call.1} parent=1 // pred_region
      _
    $region13: #{tpu_custom_call.1} parent=1 // pred_fallthru
      _
    // Predicated region
    $region14: #{tpu_custom_call.1} parent=1 // pred_check
      _
    $region15: #{tpu_custom_call.1} parent=1 // pred_check_branch
      %46 = sbr.rel (0) target = $region17
    $region16: #{tpu_custom_call.1} parent=1 // pred_region
      %s48 = ssub.s32 16384, 16384
      %49 = vsyncadd [#allocation6], %s48
      %s50 = sshll.u32 [#allocation7], 4
      %s51 = int_to_ptr.vmem [resolvable:$true] %s50
      %56 = dma.hbm_to_vmem [thread:$0]  %s3, 16384, %s51, [#allocation6], 256, 256, 16
    $region17: #{tpu_custom_call.1} parent=1 // pred_fallthru
      _
    // Predicated region
    $region18: #{tpu_custom_call.1} parent=1 // pred_check
      _
    $region19: #{tpu_custom_call.1} parent=1 // pred_check_branch
      %58 = sbr.rel (0) target = $region21
    $region20: #{tpu_custom_call.1} parent=1 // pred_region
      _
    $region21: #{tpu_custom_call.1} parent=1 // pred_fallthru
      _
    // Predicated region
    $region22: #{tpu_custom_call.1} parent=1 // pred_check
      _
    $region23: #{tpu_custom_call.1} parent=1 // pred_check_branch
      %60 = sbr.rel (0) target = $region25
    $region24: #{tpu_custom_call.1} parent=1 // pred_region
      %s62 = ssub.s32 4096, 4096
      %63 = vsyncadd [#allocation9], %s62
      %s64 = sshll.u32 [#allocation8], 4
      %s65 = int_to_ptr.vmem [resolvable:$true] %s64
      %70 = dma.hbm_to_vmem [thread:$0]  %s5, 4096, %s65, [#allocation9], 64, 64, 4
    $region25: #{tpu_custom_call.1} parent=1 // pred_fallthru
      _
    // Predicated region
    $region26: #{tpu_custom_call.1} parent=1 // pred_check
      _
    $region27: #{tpu_custom_call.1} parent=1 // pred_check_branch
      %72 = sbr.rel (0) target = $region29
    $region28: #{tpu_custom_call.1} parent=1 // pred_region
      _
    $region29: #{tpu_custom_call.1} parent=1 // pred_fallthru
      _
    // Predicated region
    $region30: #{tpu_custom_call.1} parent=1 // pred_check
      _
    $region31: #{tpu_custom_call.1} parent=1 // pred_check_branch
      %74 = sbr.rel (0) target = $region33
    $region32: #{tpu_custom_call.1} parent=1 // pred_region
      %75 = dma.done [#allocation3], 2048
    $region33: #{tpu_custom_call.1} parent=1 // pred_fallthru
      _
    // Predicated region
    $region34: #{tpu_custom_call.1} parent=1 // pred_check
      _
    $region35: #{tpu_custom_call.1} parent=1 // pred_check_branch
      %77 = sbr.rel (0) target = $region37
    $region36: #{tpu_custom_call.1} parent=1 // pred_region
      %78 = dma.done [#allocation6], 32768
    $region37: #{tpu_custom_call.1} parent=1 // pred_fallthru
      _
    // Predicated region
    $region38: #{tpu_custom_call.1} parent=1 // pred_check
      _
    $region39: #{tpu_custom_call.1} parent=1 // pred_check_branch
      %80 = sbr.rel (0) target = $region41
    $region40: #{tpu_custom_call.1} parent=1 // pred_region
      %81 = dma.done [#allocation6], 16384
    $region41: #{tpu_custom_call.1} parent=1 // pred_fallthru
      _
    // Predicated region
    $region42: #{tpu_custom_call.1} parent=1 // pred_check
      _
    $region43: #{tpu_custom_call.1} parent=1 // pred_check_branch
      %83 = sbr.rel (0) target = $region45
    $region44: #{tpu_custom_call.1} parent=1 // pred_region
      %84 = dma.done [#allocation9], 4096
    $region45: #{tpu_custom_call.1} parent=1 // pred_fallthru
      _
    %v86 = vld [vmem:[#allocation2] sm:$0xff]
    %v87 = vld [vmem:[#allocation2 + $0x8] sm:$0xff]
    %v88 = vld [vmem:[#allocation2 + $0x10] sm:$0xff]
    %v89 = vld [vmem:[#allocation2 + $0x18] sm:$0xff]
    %v90 = vld [vmem:[#allocation2 + $0x20] sm:$0xff]
    %v91 = vld [vmem:[#allocation2 + $0x28] sm:$0xff]
    %v92 = vld [vmem:[#allocation2 + $0x30] sm:$0xff]
    %v93 = vld [vmem:[#allocation2 + $0x38] sm:$0xff]
    %v94 = vld [vmem:[#allocation2 + $0x40] sm:$0xff]
    %v95 = vld [vmem:[#allocation2 + $0x48] sm:$0xff]
    %v96 = vld [vmem:[#allocation2 + $0x50] sm:$0xff]
    %v97 = vld [vmem:[#allocation2 + $0x58] sm:$0xff]
    %v98 = vld [vmem:[#allocation2 + $0x60] sm:$0xff]
    %v99 = vld [vmem:[#allocation2 + $0x68] sm:$0xff]
    %v100 = vld [vmem:[#allocation2 + $0x70] sm:$0xff]
    %v101 = vld [vmem:[#allocation2 + $0x78] sm:$0xff]
    %v102 = vpack.c.bf16 %v94, %v86
    %v103 = vpack.c.bf16 %v95, %v87
    %v104 = vpack.c.bf16 %v96, %v88
    %v105 = vpack.c.bf16 %v97, %v89
    %v106 = vpack.c.bf16 %v98, %v90
    %v107 = vpack.c.bf16 %v99, %v91
    %v108 = vpack.c.bf16 %v100, %v92
    %v109 = vpack.c.bf16 %v101, %v93
    %v110 = vld [vmem:[#allocation5] sm:$0xff]
    %v111 = vld [vmem:[#allocation5 + $0x8] sm:$0xff]
    %v112 = vld [vmem:[#allocation5 + $0x10] sm:$0xff]
    %v113 = vld [vmem:[#allocation5 + $0x18] sm:$0xff]
    %v114 = vld [vmem:[#allocation5 + $0x20] sm:$0xff]
    %v115 = vld [vmem:[#allocation5 + $0x28] sm:$0xff]
    %v116 = vld [vmem:[#allocation5 + $0x30] sm:$0xff]
    %v117 = vld [vmem:[#allocation5 + $0x38] sm:$0xff]
    %v118 = vld [vmem:[#allocation5 + $0x40] sm:$0xff]
    %v119 = vld [vmem:[#allocation5 + $0x48] sm:$0xff]
    %v120 = vld [vmem:[#allocation5 + $0x50] sm:$0xff]
    %v121 = vld [vmem:[#allocation5 + $0x58] sm:$0xff]
    %v122 = vld [vmem:[#allocation5 + $0x60] sm:$0xff]
    %v123 = vld [vmem:[#allocation5 + $0x68] sm:$0xff]
    %v124 = vld [vmem:[#allocation5 + $0x70] sm:$0xff]
    %v125 = vld [vmem:[#allocation5 + $0x78] sm:$0xff]
    %v126 = vld [vmem:[#allocation5 + $0x80] sm:$0xff]
    %v127 = vld [vmem:[#allocation5 + $0x88] sm:$0xff]
    %v128 = vld [vmem:[#allocation5 + $0x90] sm:$0xff]
    %v129 = vld [vmem:[#allocation5 + $0x98] sm:$0xff]
    %v130 = vld [vmem:[#allocation5 + $0xa0] sm:$0xff]
    %v131 = vld [vmem:[#allocation5 + $0xa8] sm:$0xff]
    %v132 = vld [vmem:[#allocation5 + $0xb0] sm:$0xff]
    %v133 = vld [vmem:[#allocation5 + $0xb8] sm:$0xff]
    %v134 = vld [vmem:[#allocation5 + $0xc0] sm:$0xff]
    %v135 = vld [vmem:[#allocation5 + $0xc8] sm:$0xff]
    %v136 = vld [vmem:[#allocation5 + $0xd0] sm:$0xff]
    %v137 = vld [vmem:[#allocation5 + $0xd8] sm:$0xff]
    %v138 = vld [vmem:[#allocation5 + $0xe0] sm:$0xff]
    %v139 = vld [vmem:[#allocation5 + $0xe8] sm:$0xff]
    %v140 = vld [vmem:[#allocation5 + $0xf0] sm:$0xff]
    %v141 = vld [vmem:[#allocation5 + $0xf8] sm:$0xff]
    %v142 = vld [vmem:[#allocation5 + $0x100] sm:$0xff]
    %v143 = vld [vmem:[#allocation5 + $0x108] sm:$0xff]
    %v144 = vld [vmem:[#allocation5 + $0x110] sm:$0xff]
    %v145 = vld [vmem:[#allocation5 + $0x118] sm:$0xff]
    %v146 = vld [vmem:[#allocation5 + $0x120] sm:$0xff]
    %v147 = vld [vmem:[#allocation5 + $0x128] sm:$0xff]
    %v148 = vld [vmem:[#allocation5 + $0x130] sm:$0xff]
    %v149 = vld [vmem:[#allocation5 + $0x138] sm:$0xff]
    %v150 = vld [vmem:[#allocation5 + $0x140] sm:$0xff]
    %v151 = vld [vmem:[#allocation5 + $0x148] sm:$0xff]
    %v152 = vld [vmem:[#allocation5 + $0x150] sm:$0xff]
    %v153 = vld [vmem:[#allocation5 + $0x158] sm:$0xff]
    %v154 = vld [vmem:[#allocation5 + $0x160] sm:$0xff]
    %v155 = vld [vmem:[#allocation5 + $0x168] sm:$0xff]
    %v156 = vld [vmem:[#allocation5 + $0x170] sm:$0xff]
    %v157 = vld [vmem:[#allocation5 + $0x178] sm:$0xff]
    %v158 = vld [vmem:[#allocation5 + $0x180] sm:$0xff]
    %v159 = vld [vmem:[#allocation5 + $0x188] sm:$0xff]
    %v160 = vld [vmem:[#allocation5 + $0x190] sm:$0xff]
    %v161 = vld [vmem:[#allocation5 + $0x198] sm:$0xff]
    %v162 = vld [vmem:[#allocation5 + $0x1a0] sm:$0xff]
    %v163 = vld [vmem:[#allocation5 + $0x1a8] sm:$0xff]
    %v164 = vld [vmem:[#allocation5 + $0x1b0] sm:$0xff]
    %v165 = vld [vmem:[#allocation5 + $0x1b8] sm:$0xff]
    %v166 = vld [vmem:[#allocation5 + $0x1c0] sm:$0xff]
    %v167 = vld [vmem:[#allocation5 + $0x1c8] sm:$0xff]
    %v168 = vld [vmem:[#allocation5 + $0x1d0] sm:$0xff]
    %v169 = vld [vmem:[#allocation5 + $0x1d8] sm:$0xff]
    %v170 = vld [vmem:[#allocation5 + $0x1e0] sm:$0xff]
    %v171 = vld [vmem:[#allocation5 + $0x1e8] sm:$0xff]
    %v172 = vld [vmem:[#allocation5 + $0x1f0] sm:$0xff]
    %v173 = vld [vmem:[#allocation5 + $0x1f8] sm:$0xff]
    %v174 = vld [vmem:[#allocation5 + $0x200] sm:$0xff]
    %v175 = vld [vmem:[#allocation5 + $0x208] sm:$0xff]
    %v176 = vld [vmem:[#allocation5 + $0x210] sm:$0xff]
    %v177 = vld [vmem:[#allocation5 + $0x218] sm:$0xff]
    %v178 = vld [vmem:[#allocation5 + $0x220] sm:$0xff]
    %v179 = vld [vmem:[#allocation5 + $0x228] sm:$0xff]
    %v180 = vld [vmem:[#allocation5 + $0x230] sm:$0xff]
    %v181 = vld [vmem:[#allocation5 + $0x238] sm:$0xff]
    %v182 = vld [vmem:[#allocation5 + $0x240] sm:$0xff]
    %v183 = vld [vmem:[#allocation5 + $0x248] sm:$0xff]
    %v184 = vld [vmem:[#allocation5 + $0x250] sm:$0xff]
    %v185 = vld [vmem:[#allocation5 + $0x258] sm:$0xff]
    %v186 = vld [vmem:[#allocation5 + $0x260] sm:$0xff]
    %v187 = vld [vmem:[#allocation5 + $0x268] sm:$0xff]
    %v188 = vld [vmem:[#allocation5 + $0x270] sm:$0xff]
    %v189 = vld [vmem:[#allocation5 + $0x278] sm:$0xff]
    %v190 = vld [vmem:[#allocation5 + $0x280] sm:$0xff]
    %v191 = vld [vmem:[#allocation5 + $0x288] sm:$0xff]
    %v192 = vld [vmem:[#allocation5 + $0x290] sm:$0xff]
    %v193 = vld [vmem:[#allocation5 + $0x298] sm:$0xff]
    %v194 = vld [vmem:[#allocation5 + $0x2a0] sm:$0xff]
    %v195 = vld [vmem:[#allocation5 + $0x2a8] sm:$0xff]
    %v196 = vld [vmem:[#allocation5 + $0x2b0] sm:$0xff]
    %v197 = vld [vmem:[#allocation5 + $0x2b8] sm:$0xff]
    %v198 = vld [vmem:[#allocation5 + $0x2c0] sm:$0xff]
    %v199 = vld [vmem:[#allocation5 + $0x2c8] sm:$0xff]
    %v200 = vld [vmem:[#allocation5 + $0x2d0] sm:$0xff]
    %v201 = vld [vmem:[#allocation5 + $0x2d8] sm:$0xff]
    %v202 = vld [vmem:[#allocation5 + $0x2e0] sm:$0xff]
    %v203 = vld [vmem:[#allocation5 + $0x2e8] sm:$0xff]
    %v204 = vld [vmem:[#allocation5 + $0x2f0] sm:$0xff]
    %v205 = vld [vmem:[#allocation5 + $0x2f8] sm:$0xff]
    %v206 = vld [vmem:[#allocation5 + $0x300] sm:$0xff]
    %v207 = vld [vmem:[#allocation5 + $0x308] sm:$0xff]
    %v208 = vld [vmem:[#allocation5 + $0x310] sm:$0xff]
    %v209 = vld [vmem:[#allocation5 + $0x318] sm:$0xff]
    %v210 = vld [vmem:[#allocation5 + $0x320] sm:$0xff]
    %v211 = vld [vmem:[#allocation5 + $0x328] sm:$0xff]
    %v212 = vld [vmem:[#allocation5 + $0x330] sm:$0xff]
    %v213 = vld [vmem:[#allocation5 + $0x338] sm:$0xff]
    %v214 = vld [vmem:[#allocation5 + $0x340] sm:$0xff]
    %v215 = vld [vmem:[#allocation5 + $0x348] sm:$0xff]
    %v216 = vld [vmem:[#allocation5 + $0x350] sm:$0xff]
    %v217 = vld [vmem:[#allocation5 + $0x358] sm:$0xff]
    %v218 = vld [vmem:[#allocation5 + $0x360] sm:$0xff]
    %v219 = vld [vmem:[#allocation5 + $0x368] sm:$0xff]
    %v220 = vld [vmem:[#allocation5 + $0x370] sm:$0xff]
    %v221 = vld [vmem:[#allocation5 + $0x378] sm:$0xff]
    %v222 = vld [vmem:[#allocation5 + $0x380] sm:$0xff]
    %v223 = vld [vmem:[#allocation5 + $0x388] sm:$0xff]
    %v224 = vld [vmem:[#allocation5 + $0x390] sm:$0xff]
    %v225 = vld [vmem:[#allocation5 + $0x398] sm:$0xff]
    %v226 = vld [vmem:[#allocation5 + $0x3a0] sm:$0xff]
    %v227 = vld [vmem:[#allocation5 + $0x3a8] sm:$0xff]
    %v228 = vld [vmem:[#allocation5 + $0x3b0] sm:$0xff]
    %v229 = vld [vmem:[#allocation5 + $0x3b8] sm:$0xff]
    %v230 = vld [vmem:[#allocation5 + $0x3c0] sm:$0xff]
    %v231 = vld [vmem:[#allocation5 + $0x3c8] sm:$0xff]
    %v232 = vld [vmem:[#allocation5 + $0x3d0] sm:$0xff]
    %v233 = vld [vmem:[#allocation5 + $0x3d8] sm:$0xff]
    %v234 = vld [vmem:[#allocation5 + $0x3e0] sm:$0xff]
    %v235 = vld [vmem:[#allocation5 + $0x3e8] sm:$0xff]
    %v236 = vld [vmem:[#allocation5 + $0x3f0] sm:$0xff]
    %v237 = vld [vmem:[#allocation5 + $0x3f8] sm:$0xff]
    %v238 = vld [vmem:[#allocation5 + $0x400] sm:$0xff]
    %v239 = vld [vmem:[#allocation5 + $0x408] sm:$0xff]
    %v240 = vld [vmem:[#allocation5 + $0x410] sm:$0xff]
    %v241 = vld [vmem:[#allocation5 + $0x418] sm:$0xff]
    %v242 = vld [vmem:[#allocation5 + $0x420] sm:$0xff]
    %v243 = vld [vmem:[#allocation5 + $0x428] sm:$0xff]
    %v244 = vld [vmem:[#allocation5 + $0x430] sm:$0xff]
    %v245 = vld [vmem:[#allocation5 + $0x438] sm:$0xff]
    %v246 = vld [vmem:[#allocation5 + $0x440] sm:$0xff]
    %v247 = vld [vmem:[#allocation5 + $0x448] sm:$0xff]
    %v248 = vld [vmem:[#allocation5 + $0x450] sm:$0xff]
    %v249 = vld [vmem:[#allocation5 + $0x458] sm:$0xff]
    %v250 = vld [vmem:[#allocation5 + $0x460] sm:$0xff]
    %v251 = vld [vmem:[#allocation5 + $0x468] sm:$0xff]
    %v252 = vld [vmem:[#allocation5 + $0x470] sm:$0xff]
    %v253 = vld [vmem:[#allocation5 + $0x478] sm:$0xff]
    %v254 = vld [vmem:[#allocation5 + $0x480] sm:$0xff]
    %v255 = vld [vmem:[#allocation5 + $0x488] sm:$0xff]
    %v256 = vld [vmem:[#allocation5 + $0x490] sm:$0xff]
    %v257 = vld [vmem:[#allocation5 + $0x498] sm:$0xff]
    %v258 = vld [vmem:[#allocation5 + $0x4a0] sm:$0xff]
    %v259 = vld [vmem:[#allocation5 + $0x4a8] sm:$0xff]
    %v260 = vld [vmem:[#allocation5 + $0x4b0] sm:$0xff]
    %v261 = vld [vmem:[#allocation5 + $0x4b8] sm:$0xff]
    %v262 = vld [vmem:[#allocation5 + $0x4c0] sm:$0xff]
    %v263 = vld [vmem:[#allocation5 + $0x4c8] sm:$0xff]
    %v264 = vld [vmem:[#allocation5 + $0x4d0] sm:$0xff]
    %v265 = vld [vmem:[#allocation5 + $0x4d8] sm:$0xff]
    %v266 = vld [vmem:[#allocation5 + $0x4e0] sm:$0xff]
    %v267 = vld [vmem:[#allocation5 + $0x4e8] sm:$0xff]
    %v268 = vld [vmem:[#allocation5 + $0x4f0] sm:$0xff]
    %v269 = vld [vmem:[#allocation5 + $0x4f8] sm:$0xff]
    %v270 = vld [vmem:[#allocation5 + $0x500] sm:$0xff]
    %v271 = vld [vmem:[#allocation5 + $0x508] sm:$0xff]
    %v272 = vld [vmem:[#allocation5 + $0x510] sm:$0xff]
    %v273 = vld [vmem:[#allocation5 + $0x518] sm:$0xff]
    %v274 = vld [vmem:[#allocation5 + $0x520] sm:$0xff]
    %v275 = vld [vmem:[#allocation5 + $0x528] sm:$0xff]
    %v276 = vld [vmem:[#allocation5 + $0x530] sm:$0xff]
    %v277 = vld [vmem:[#allocation5 + $0x538] sm:$0xff]
    %v278 = vld [vmem:[#allocation5 + $0x540] sm:$0xff]
    %v279 = vld [vmem:[#allocation5 + $0x548] sm:$0xff]
    %v280 = vld [vmem:[#allocation5 + $0x550] sm:$0xff]
    %v281 = vld [vmem:[#allocation5 + $0x558] sm:$0xff]
    %v282 = vld [vmem:[#allocation5 + $0x560] sm:$0xff]
    %v283 = vld [vmem:[#allocation5 + $0x568] sm:$0xff]
    %v284 = vld [vmem:[#allocation5 + $0x570] sm:$0xff]
    %v285 = vld [vmem:[#allocation5 + $0x578] sm:$0xff]
    %v286 = vld [vmem:[#allocation5 + $0x580] sm:$0xff]
    %v287 = vld [vmem:[#allocation5 + $0x588] sm:$0xff]
    %v288 = vld [vmem:[#allocation5 + $0x590] sm:$0xff]
    %v289 = vld [vmem:[#allocation5 + $0x598] sm:$0xff]
    %v290 = vld [vmem:[#allocation5 + $0x5a0] sm:$0xff]
    %v291 = vld [vmem:[#allocation5 + $0x5a8] sm:$0xff]
    %v292 = vld [vmem:[#allocation5 + $0x5b0] sm:$0xff]
    %v293 = vld [vmem:[#allocation5 + $0x5b8] sm:$0xff]
    %v294 = vld [vmem:[#allocation5 + $0x5c0] sm:$0xff]
    %v295 = vld [vmem:[#allocation5 + $0x5c8] sm:$0xff]
    %v296 = vld [vmem:[#allocation5 + $0x5d0] sm:$0xff]
    %v297 = vld [vmem:[#allocation5 + $0x5d8] sm:$0xff]
    %v298 = vld [vmem:[#allocation5 + $0x5e0] sm:$0xff]
    %v299 = vld [vmem:[#allocation5 + $0x5e8] sm:$0xff]
    %v300 = vld [vmem:[#allocation5 + $0x5f0] sm:$0xff]
    %v301 = vld [vmem:[#allocation5 + $0x5f8] sm:$0xff]
    %v302 = vld [vmem:[#allocation5 + $0x600] sm:$0xff]
    %v303 = vld [vmem:[#allocation5 + $0x608] sm:$0xff]
    %v304 = vld [vmem:[#allocation5 + $0x610] sm:$0xff]
    %v305 = vld [vmem:[#allocation5 + $0x618] sm:$0xff]
    %v306 = vld [vmem:[#allocation5 + $0x620] sm:$0xff]
    %v307 = vld [vmem:[#allocation5 + $0x628] sm:$0xff]
    %v308 = vld [vmem:[#allocation5 + $0x630] sm:$0xff]
    %v309 = vld [vmem:[#allocation5 + $0x638] sm:$0xff]
    %v310 = vld [vmem:[#allocation5 + $0x640] sm:$0xff]
    %v311 = vld [vmem:[#allocation5 + $0x648] sm:$0xff]
    %v312 = vld [vmem:[#allocation5 + $0x650] sm:$0xff]
    %v313 = vld [vmem:[#allocation5 + $0x658] sm:$0xff]
    %v314 = vld [vmem:[#allocation5 + $0x660] sm:$0xff]
    %v315 = vld [vmem:[#allocation5 + $0x668] sm:$0xff]
    %v316 = vld [vmem:[#allocation5 + $0x670] sm:$0xff]
    %v317 = vld [vmem:[#allocation5 + $0x678] sm:$0xff]
    %v318 = vld [vmem:[#allocation5 + $0x680] sm:$0xff]
    %v319 = vld [vmem:[#allocation5 + $0x688] sm:$0xff]
    %v320 = vld [vmem:[#allocation5 + $0x690] sm:$0xff]
    %v321 = vld [vmem:[#allocation5 + $0x698] sm:$0xff]
    %v322 = vld [vmem:[#allocation5 + $0x6a0] sm:$0xff]
    %v323 = vld [vmem:[#allocation5 + $0x6a8] sm:$0xff]
    %v324 = vld [vmem:[#allocation5 + $0x6b0] sm:$0xff]
    %v325 = vld [vmem:[#allocation5 + $0x6b8] sm:$0xff]
    %v326 = vld [vmem:[#allocation5 + $0x6c0] sm:$0xff]
    %v327 = vld [vmem:[#allocation5 + $0x6c8] sm:$0xff]
    %v328 = vld [vmem:[#allocation5 + $0x6d0] sm:$0xff]
    %v329 = vld [vmem:[#allocation5 + $0x6d8] sm:$0xff]
    %v330 = vld [vmem:[#allocation5 + $0x6e0] sm:$0xff]
    %v331 = vld [vmem:[#allocation5 + $0x6e8] sm:$0xff]
    %v332 = vld [vmem:[#allocation5 + $0x6f0] sm:$0xff]
    %v333 = vld [vmem:[#allocation5 + $0x6f8] sm:$0xff]
    %v334 = vld [vmem:[#allocation5 + $0x700] sm:$0xff]
    %v335 = vld [vmem:[#allocation5 + $0x708] sm:$0xff]
    %v336 = vld [vmem:[#allocation5 + $0x710] sm:$0xff]
    %v337 = vld [vmem:[#allocation5 + $0x718] sm:$0xff]
    %v338 = vld [vmem:[#allocation5 + $0x720] sm:$0xff]
    %v339 = vld [vmem:[#allocation5 + $0x728] sm:$0xff]
    %v340 = vld [vmem:[#allocation5 + $0x730] sm:$0xff]
    %v341 = vld [vmem:[#allocation5 + $0x738] sm:$0xff]
    %v342 = vld [vmem:[#allocation5 + $0x740] sm:$0xff]
    %v343 = vld [vmem:[#allocation5 + $0x748] sm:$0xff]
    %v344 = vld [vmem:[#allocation5 + $0x750] sm:$0xff]
    %v345 = vld [vmem:[#allocation5 + $0x758] sm:$0xff]
    %v346 = vld [vmem:[#allocation5 + $0x760] sm:$0xff]
    %v347 = vld [vmem:[#allocation5 + $0x768] sm:$0xff]
    %v348 = vld [vmem:[#allocation5 + $0x770] sm:$0xff]
    %v349 = vld [vmem:[#allocation5 + $0x778] sm:$0xff]
    %v350 = vld [vmem:[#allocation5 + $0x780] sm:$0xff]
    %v351 = vld [vmem:[#allocation5 + $0x788] sm:$0xff]
    %v352 = vld [vmem:[#allocation5 + $0x790] sm:$0xff]
    %v353 = vld [vmem:[#allocation5 + $0x798] sm:$0xff]
    %v354 = vld [vmem:[#allocation5 + $0x7a0] sm:$0xff]
    %v355 = vld [vmem:[#allocation5 + $0x7a8] sm:$0xff]
    %v356 = vld [vmem:[#allocation5 + $0x7b0] sm:$0xff]
    %v357 = vld [vmem:[#allocation5 + $0x7b8] sm:$0xff]
    %v358 = vld [vmem:[#allocation5 + $0x7c0] sm:$0xff]
    %v359 = vld [vmem:[#allocation5 + $0x7c8] sm:$0xff]
    %v360 = vld [vmem:[#allocation5 + $0x7d0] sm:$0xff]
    %v361 = vld [vmem:[#allocation5 + $0x7d8] sm:$0xff]
    %v362 = vld [vmem:[#allocation5 + $0x7e0] sm:$0xff]
    %v363 = vld [vmem:[#allocation5 + $0x7e8] sm:$0xff]
    %v364 = vld [vmem:[#allocation5 + $0x7f0] sm:$0xff]
    %v365 = vld [vmem:[#allocation5 + $0x7f8] sm:$0xff]
    %v366 = vld [vmem:[%s2] sm:$0xf]
    %v368 = vlaneseq
    %v369 = vshrl.u32 %v368, 7
    %v370 = vsub.s32 0, %v369
    %v371 = vrot.slane %v366, %v370
    %v372 = vlaneseq
    %v373 = vshrl.u32 %v372, 7
    %v374 = vsub.s32 1, %v373
    %v375 = vrot.slane %v366, %v374
    %v376 = vlaneseq
    %v377 = vshrl.u32 %v376, 7
    %v378 = vsub.s32 2, %v377
    %v379 = vrot.slane %v366, %v378
    %v380 = vlaneseq
    %v381 = vshrl.u32 %v380, 7
    %v382 = vsub.s32 3, %v381
    %v383 = vrot.slane %v366, %v382
    %v644 = vunpack.c.l.b16 %v110
    %v645 = vunpack.c.h.b16 %v110
    %v646 = vunpack.c.l.b16 %v111
    %v647 = vunpack.c.h.b16 %v111
    %v648 = vunpack.c.l.b16 %v112
    %v649 = vunpack.c.h.b16 %v112
    %v650 = vunpack.c.l.b16 %v113
    %v651 = vunpack.c.h.b16 %v113
    %v652 = vunpack.c.l.b16 %v114
    %v653 = vunpack.c.h.b16 %v114
    %v654 = vunpack.c.l.b16 %v115
    %v655 = vunpack.c.h.b16 %v115
    %v656 = vunpack.c.l.b16 %v116
    %v657 = vunpack.c.h.b16 %v116
    %v658 = vunpack.c.l.b16 %v117
    %v659 = vunpack.c.h.b16 %v117
    %v660 = vunpack.c.l.b16 %v118
    %v661 = vunpack.c.h.b16 %v118
    %v662 = vunpack.c.l.b16 %v119
    %v663 = vunpack.c.h.b16 %v119
    %v664 = vunpack.c.l.b16 %v120
    %v665 = vunpack.c.h.b16 %v120
    %v666 = vunpack.c.l.b16 %v121
    %v667 = vunpack.c.h.b16 %v121
    %v668 = vunpack.c.l.b16 %v122
    %v669 = vunpack.c.h.b16 %v122
    %v670 = vunpack.c.l.b16 %v123
    %v671 = vunpack.c.h.b16 %v123
    %v672 = vunpack.c.l.b16 %v124
    %v673 = vunpack.c.h.b16 %v124
    %v674 = vunpack.c.l.b16 %v125
    %v675 = vunpack.c.h.b16 %v125
    %v676 = vunpack.c.l.b16 %v126
    %v677 = vunpack.c.h.b16 %v126
    %v678 = vunpack.c.l.b16 %v127
    %v679 = vunpack.c.h.b16 %v127
    %v680 = vunpack.c.l.b16 %v128
    %v681 = vunpack.c.h.b16 %v128
    %v682 = vunpack.c.l.b16 %v129
    %v683 = vunpack.c.h.b16 %v129
    %v684 = vunpack.c.l.b16 %v130
    %v685 = vunpack.c.h.b16 %v130
    %v686 = vunpack.c.l.b16 %v131
    %v687 = vunpack.c.h.b16 %v131
    %v688 = vunpack.c.l.b16 %v132
    %v689 = vunpack.c.h.b16 %v132
    %v690 = vunpack.c.l.b16 %v133
    %v691 = vunpack.c.h.b16 %v133
    %v692 = vunpack.c.l.b16 %v134
    %v693 = vunpack.c.h.b16 %v134
    %v694 = vunpack.c.l.b16 %v135
    %v695 = vunpack.c.h.b16 %v135
    %v696 = vunpack.c.l.b16 %v136
    %v697 = vunpack.c.h.b16 %v136
    %v698 = vunpack.c.l.b16 %v137
    %v699 = vunpack.c.h.b16 %v137
    %v700 = vunpack.c.l.b16 %v138
    %v701 = vunpack.c.h.b16 %v138
    %v702 = vunpack.c.l.b16 %v139
    %v703 = vunpack.c.h.b16 %v139
    %v704 = vunpack.c.l.b16 %v140
    %v705 = vunpack.c.h.b16 %v140
    %v706 = vunpack.c.l.b16 %v141
    %v707 = vunpack.c.h.b16 %v141
    %v708 = vunpack.c.l.b16 %v142
    %v709 = vunpack.c.h.b16 %v142
    %v710 = vunpack.c.l.b16 %v143
    %v711 = vunpack.c.h.b16 %v143
    %v712 = vunpack.c.l.b16 %v144
    %v713 = vunpack.c.h.b16 %v144
    %v714 = vunpack.c.l.b16 %v145
    %v715 = vunpack.c.h.b16 %v145
    %v716 = vunpack.c.l.b16 %v146
    %v717 = vunpack.c.h.b16 %v146
    %v718 = vunpack.c.l.b16 %v147
    %v719 = vunpack.c.h.b16 %v147
    %v720 = vunpack.c.l.b16 %v148
    %v721 = vunpack.c.h.b16 %v148
    %v722 = vunpack.c.l.b16 %v149
    %v723 = vunpack.c.h.b16 %v149
    %v724 = vunpack.c.l.b16 %v150
    %v725 = vunpack.c.h.b16 %v150
    %v726 = vunpack.c.l.b16 %v151
    %v727 = vunpack.c.h.b16 %v151
    %v728 = vunpack.c.l.b16 %v152
    %v729 = vunpack.c.h.b16 %v152
    %v730 = vunpack.c.l.b16 %v153
    %v731 = vunpack.c.h.b16 %v153
    %v732 = vunpack.c.l.b16 %v154
    %v733 = vunpack.c.h.b16 %v154
    %v734 = vunpack.c.l.b16 %v155
    %v735 = vunpack.c.h.b16 %v155
    %v736 = vunpack.c.l.b16 %v156
    %v737 = vunpack.c.h.b16 %v156
    %v738 = vunpack.c.l.b16 %v157
    %v739 = vunpack.c.h.b16 %v157
    %v740 = vunpack.c.l.b16 %v158
    %v741 = vunpack.c.h.b16 %v158
    %v742 = vunpack.c.l.b16 %v159
    %v743 = vunpack.c.h.b16 %v159
    %v744 = vunpack.c.l.b16 %v160
    %v745 = vunpack.c.h.b16 %v160
    %v746 = vunpack.c.l.b16 %v161
    %v747 = vunpack.c.h.b16 %v161
    %v748 = vunpack.c.l.b16 %v162
    %v749 = vunpack.c.h.b16 %v162
    %v750 = vunpack.c.l.b16 %v163
    %v751 = vunpack.c.h.b16 %v163
    %v752 = vunpack.c.l.b16 %v164
    %v753 = vunpack.c.h.b16 %v164
    %v754 = vunpack.c.l.b16 %v165
    %v755 = vunpack.c.h.b16 %v165
    %v756 = vunpack.c.l.b16 %v166
    %v757 = vunpack.c.h.b16 %v166
    %v758 = vunpack.c.l.b16 %v167
    %v759 = vunpack.c.h.b16 %v167
    %v760 = vunpack.c.l.b16 %v168
    %v761 = vunpack.c.h.b16 %v168
    %v762 = vunpack.c.l.b16 %v169
    %v763 = vunpack.c.h.b16 %v169
    %v764 = vunpack.c.l.b16 %v170
    %v765 = vunpack.c.h.b16 %v170
    %v766 = vunpack.c.l.b16 %v171
    %v767 = vunpack.c.h.b16 %v171
    %v768 = vunpack.c.l.b16 %v172
    %v769 = vunpack.c.h.b16 %v172
    %v770 = vunpack.c.l.b16 %v173
    %v771 = vunpack.c.h.b16 %v173
    %v772 = vunpack.c.l.b16 %v174
    %v773 = vunpack.c.h.b16 %v174
    %v774 = vunpack.c.l.b16 %v175
    %v775 = vunpack.c.h.b16 %v175
    %v776 = vunpack.c.l.b16 %v176
    %v777 = vunpack.c.h.b16 %v176
    %v778 = vunpack.c.l.b16 %v177
    %v779 = vunpack.c.h.b16 %v177
    %v780 = vunpack.c.l.b16 %v178
    %v781 = vunpack.c.h.b16 %v178
    %v782 = vunpack.c.l.b16 %v179
    %v783 = vunpack.c.h.b16 %v179
    %v784 = vunpack.c.l.b16 %v180
    %v785 = vunpack.c.h.b16 %v180
    %v786 = vunpack.c.l.b16 %v181
    %v787 = vunpack.c.h.b16 %v181
    %v788 = vunpack.c.l.b16 %v182
    %v789 = vunpack.c.h.b16 %v182
    %v790 = vunpack.c.l.b16 %v183
    %v791 = vunpack.c.h.b16 %v183
    %v792 = vunpack.c.l.b16 %v184
    %v793 = vunpack.c.h.b16 %v184
    %v794 = vunpack.c.l.b16 %v185
    %v795 = vunpack.c.h.b16 %v185
    %v796 = vunpack.c.l.b16 %v186
    %v797 = vunpack.c.h.b16 %v186
    %v798 = vunpack.c.l.b16 %v187
    %v799 = vunpack.c.h.b16 %v187
    %v800 = vunpack.c.l.b16 %v188
    %v801 = vunpack.c.h.b16 %v188
    %v802 = vunpack.c.l.b16 %v189
    %v803 = vunpack.c.h.b16 %v189
    %v804 = vunpack.c.l.b16 %v190
    %v805 = vunpack.c.h.b16 %v190
    %v806 = vunpack.c.l.b16 %v191
    %v807 = vunpack.c.h.b16 %v191
    %v808 = vunpack.c.l.b16 %v192
    %v809 = vunpack.c.h.b16 %v192
    %v810 = vunpack.c.l.b16 %v193
    %v811 = vunpack.c.h.b16 %v193
    %v812 = vunpack.c.l.b16 %v194
    %v813 = vunpack.c.h.b16 %v194
    %v814 = vunpack.c.l.b16 %v195
    %v815 = vunpack.c.h.b16 %v195
    %v816 = vunpack.c.l.b16 %v196
    %v817 = vunpack.c.h.b16 %v196
    %v818 = vunpack.c.l.b16 %v197
    %v819 = vunpack.c.h.b16 %v197
    %v820 = vunpack.c.l.b16 %v198
    %v821 = vunpack.c.h.b16 %v198
    %v822 = vunpack.c.l.b16 %v199
    %v823 = vunpack.c.h.b16 %v199
    %v824 = vunpack.c.l.b16 %v200
    %v825 = vunpack.c.h.b16 %v200
    %v826 = vunpack.c.l.b16 %v201
    %v827 = vunpack.c.h.b16 %v201
    %v828 = vunpack.c.l.b16 %v202
    %v829 = vunpack.c.h.b16 %v202
    %v830 = vunpack.c.l.b16 %v203
    %v831 = vunpack.c.h.b16 %v203
    %v832 = vunpack.c.l.b16 %v204
    %v833 = vunpack.c.h.b16 %v204
    %v834 = vunpack.c.l.b16 %v205
    %v835 = vunpack.c.h.b16 %v205
    %v836 = vunpack.c.l.b16 %v206
    %v837 = vunpack.c.h.b16 %v206
    %v838 = vunpack.c.l.b16 %v207
    %v839 = vunpack.c.h.b16 %v207
    %v840 = vunpack.c.l.b16 %v208
    %v841 = vunpack.c.h.b16 %v208
    %v842 = vunpack.c.l.b16 %v209
    %v843 = vunpack.c.h.b16 %v209
    %v844 = vunpack.c.l.b16 %v210
    %v845 = vunpack.c.h.b16 %v210
    %v846 = vunpack.c.l.b16 %v211
    %v847 = vunpack.c.h.b16 %v211
    %v848 = vunpack.c.l.b16 %v212
    %v849 = vunpack.c.h.b16 %v212
    %v850 = vunpack.c.l.b16 %v213
    %v851 = vunpack.c.h.b16 %v213
    %v852 = vunpack.c.l.b16 %v214
    %v853 = vunpack.c.h.b16 %v214
    %v854 = vunpack.c.l.b16 %v215
    %v855 = vunpack.c.h.b16 %v215
    %v856 = vunpack.c.l.b16 %v216
    %v857 = vunpack.c.h.b16 %v216
    %v858 = vunpack.c.l.b16 %v217
    %v859 = vunpack.c.h.b16 %v217
    %v860 = vunpack.c.l.b16 %v218
    %v861 = vunpack.c.h.b16 %v218
    %v862 = vunpack.c.l.b16 %v219
    %v863 = vunpack.c.h.b16 %v219
    %v864 = vunpack.c.l.b16 %v220
    %v865 = vunpack.c.h.b16 %v220
    %v866 = vunpack.c.l.b16 %v221
    %v867 = vunpack.c.h.b16 %v221
    %v868 = vunpack.c.l.b16 %v222
    %v869 = vunpack.c.h.b16 %v222
    %v870 = vunpack.c.l.b16 %v223
    %v871 = vunpack.c.h.b16 %v223
    %v872 = vunpack.c.l.b16 %v224
    %v873 = vunpack.c.h.b16 %v224
    %v874 = vunpack.c.l.b16 %v225
    %v875 = vunpack.c.h.b16 %v225
    %v876 = vunpack.c.l.b16 %v226
    %v877 = vunpack.c.h.b16 %v226
    %v878 = vunpack.c.l.b16 %v227
    %v879 = vunpack.c.h.b16 %v227
    %v880 = vunpack.c.l.b16 %v228
    %v881 = vunpack.c.h.b16 %v228
    %v882 = vunpack.c.l.b16 %v229
    %v883 = vunpack.c.h.b16 %v229
    %v884 = vunpack.c.l.b16 %v230
    %v885 = vunpack.c.h.b16 %v230
    %v886 = vunpack.c.l.b16 %v231
    %v887 = vunpack.c.h.b16 %v231
    %v888 = vunpack.c.l.b16 %v232
    %v889 = vunpack.c.h.b16 %v232
    %v890 = vunpack.c.l.b16 %v233
    %v891 = vunpack.c.h.b16 %v233
    %v892 = vunpack.c.l.b16 %v234
    %v893 = vunpack.c.h.b16 %v234
    %v894 = vunpack.c.l.b16 %v235
    %v895 = vunpack.c.h.b16 %v235
    %v896 = vunpack.c.l.b16 %v236
    %v897 = vunpack.c.h.b16 %v236
    %v898 = vunpack.c.l.b16 %v237
    %v899 = vunpack.c.h.b16 %v237
    %v900 = vunpack.c.l.b16 %v238
    %v901 = vunpack.c.h.b16 %v238
    %v902 = vunpack.c.l.b16 %v239
    %v903 = vunpack.c.h.b16 %v239
    %v904 = vunpack.c.l.b16 %v240
    %v905 = vunpack.c.h.b16 %v240
    %v906 = vunpack.c.l.b16 %v241
    %v907 = vunpack.c.h.b16 %v241
    %v908 = vunpack.c.l.b16 %v242
    %v909 = vunpack.c.h.b16 %v242
    %v910 = vunpack.c.l.b16 %v243
    %v911 = vunpack.c.h.b16 %v243
    %v912 = vunpack.c.l.b16 %v244
    %v913 = vunpack.c.h.b16 %v244
    %v914 = vunpack.c.l.b16 %v245
    %v915 = vunpack.c.h.b16 %v245
    %v916 = vunpack.c.l.b16 %v246
    %v917 = vunpack.c.h.b16 %v246
    %v918 = vunpack.c.l.b16 %v247
    %v919 = vunpack.c.h.b16 %v247
    %v920 = vunpack.c.l.b16 %v248
    %v921 = vunpack.c.h.b16 %v248
    %v922 = vunpack.c.l.b16 %v249
    %v923 = vunpack.c.h.b16 %v249
    %v924 = vunpack.c.l.b16 %v250
    %v925 = vunpack.c.h.b16 %v250
    %v926 = vunpack.c.l.b16 %v251
    %v927 = vunpack.c.h.b16 %v251
    %v928 = vunpack.c.l.b16 %v252
    %v929 = vunpack.c.h.b16 %v252
    %v930 = vunpack.c.l.b16 %v253
    %v931 = vunpack.c.h.b16 %v253
    %v932 = vunpack.c.l.b16 %v254
    %v933 = vunpack.c.h.b16 %v254
    %v934 = vunpack.c.l.b16 %v255
    %v935 = vunpack.c.h.b16 %v255
    %v936 = vunpack.c.l.b16 %v256
    %v937 = vunpack.c.h.b16 %v256
    %v938 = vunpack.c.l.b16 %v257
    %v939 = vunpack.c.h.b16 %v257
    %v940 = vunpack.c.l.b16 %v258
    %v941 = vunpack.c.h.b16 %v258
    %v942 = vunpack.c.l.b16 %v259
    %v943 = vunpack.c.h.b16 %v259
    %v944 = vunpack.c.l.b16 %v260
    %v945 = vunpack.c.h.b16 %v260
    %v946 = vunpack.c.l.b16 %v261
    %v947 = vunpack.c.h.b16 %v261
    %v948 = vunpack.c.l.b16 %v262
    %v949 = vunpack.c.h.b16 %v262
    %v950 = vunpack.c.l.b16 %v263
    %v951 = vunpack.c.h.b16 %v263
    %v952 = vunpack.c.l.b16 %v264
    %v953 = vunpack.c.h.b16 %v264
    %v954 = vunpack.c.l.b16 %v265
    %v955 = vunpack.c.h.b16 %v265
    %v956 = vunpack.c.l.b16 %v266
    %v957 = vunpack.c.h.b16 %v266
    %v958 = vunpack.c.l.b16 %v267
    %v959 = vunpack.c.h.b16 %v267
    %v960 = vunpack.c.l.b16 %v268
    %v961 = vunpack.c.h.b16 %v268
    %v962 = vunpack.c.l.b16 %v269
    %v963 = vunpack.c.h.b16 %v269
    %v964 = vunpack.c.l.b16 %v270
    %v965 = vunpack.c.h.b16 %v270
    %v966 = vunpack.c.l.b16 %v271
    %v967 = vunpack.c.h.b16 %v271
    %v968 = vunpack.c.l.b16 %v272
    %v969 = vunpack.c.h.b16 %v272
    %v970 = vunpack.c.l.b16 %v273
    %v971 = vunpack.c.h.b16 %v273
    %v972 = vunpack.c.l.b16 %v274
    %v973 = vunpack.c.h.b16 %v274
    %v974 = vunpack.c.l.b16 %v275
    %v975 = vunpack.c.h.b16 %v275
    %v976 = vunpack.c.l.b16 %v276
    %v977 = vunpack.c.h.b16 %v276
    %v978 = vunpack.c.l.b16 %v277
    %v979 = vunpack.c.h.b16 %v277
    %v980 = vunpack.c.l.b16 %v278
    %v981 = vunpack.c.h.b16 %v278
    %v982 = vunpack.c.l.b16 %v279
    %v983 = vunpack.c.h.b16 %v279
    %v984 = vunpack.c.l.b16 %v280
    %v985 = vunpack.c.h.b16 %v280
    %v986 = vunpack.c.l.b16 %v281
    %v987 = vunpack.c.h.b16 %v281
    %v988 = vunpack.c.l.b16 %v282
    %v989 = vunpack.c.h.b16 %v282
    %v990 = vunpack.c.l.b16 %v283
    %v991 = vunpack.c.h.b16 %v283
    %v992 = vunpack.c.l.b16 %v284
    %v993 = vunpack.c.h.b16 %v284
    %v994 = vunpack.c.l.b16 %v285
    %v995 = vunpack.c.h.b16 %v285
    %v996 = vunpack.c.l.b16 %v286
    %v997 = vunpack.c.h.b16 %v286
    %v998 = vunpack.c.l.b16 %v287
    %v999 = vunpack.c.h.b16 %v287
    %v1000 = vunpack.c.l.b16 %v288
    %v1001 = vunpack.c.h.b16 %v288
    %v1002 = vunpack.c.l.b16 %v289
    %v1003 = vunpack.c.h.b16 %v289
    %v1004 = vunpack.c.l.b16 %v290
    %v1005 = vunpack.c.h.b16 %v290
    %v1006 = vunpack.c.l.b16 %v291
    %v1007 = vunpack.c.h.b16 %v291
    %v1008 = vunpack.c.l.b16 %v292
    %v1009 = vunpack.c.h.b16 %v292
    %v1010 = vunpack.c.l.b16 %v293
    %v1011 = vunpack.c.h.b16 %v293
    %v1012 = vunpack.c.l.b16 %v294
    %v1013 = vunpack.c.h.b16 %v294
    %v1014 = vunpack.c.l.b16 %v295
    %v1015 = vunpack.c.h.b16 %v295
    %v1016 = vunpack.c.l.b16 %v296
    %v1017 = vunpack.c.h.b16 %v296
    %v1018 = vunpack.c.l.b16 %v297
    %v1019 = vunpack.c.h.b16 %v297
    %v1020 = vunpack.c.l.b16 %v298
    %v1021 = vunpack.c.h.b16 %v298
    %v1022 = vunpack.c.l.b16 %v299
    %v1023 = vunpack.c.h.b16 %v299
    %v1024 = vunpack.c.l.b16 %v300
    %v1025 = vunpack.c.h.b16 %v300
    %v1026 = vunpack.c.l.b16 %v301
    %v1027 = vunpack.c.h.b16 %v301
    %v1028 = vunpack.c.l.b16 %v302
    %v1029 = vunpack.c.h.b16 %v302
    %v1030 = vunpack.c.l.b16 %v303
    %v1031 = vunpack.c.h.b16 %v303
    %v1032 = vunpack.c.l.b16 %v304
    %v1033 = vunpack.c.h.b16 %v304
    %v1034 = vunpack.c.l.b16 %v305
    %v1035 = vunpack.c.h.b16 %v305
    %v1036 = vunpack.c.l.b16 %v306
    %v1037 = vunpack.c.h.b16 %v306
    %v1038 = vunpack.c.l.b16 %v307
    %v1039 = vunpack.c.h.b16 %v307
    %v1040 = vunpack.c.l.b16 %v308
    %v1041 = vunpack.c.h.b16 %v308
    %v1042 = vunpack.c.l.b16 %v309
    %v1043 = vunpack.c.h.b16 %v309
    %v1044 = vunpack.c.l.b16 %v310
    %v1045 = vunpack.c.h.b16 %v310
    %v1046 = vunpack.c.l.b16 %v311
    %v1047 = vunpack.c.h.b16 %v311
    %v1048 = vunpack.c.l.b16 %v312
    %v1049 = vunpack.c.h.b16 %v312
    %v1050 = vunpack.c.l.b16 %v313
    %v1051 = vunpack.c.h.b16 %v313
    %v1052 = vunpack.c.l.b16 %v314
    %v1053 = vunpack.c.h.b16 %v314
    %v1054 = vunpack.c.l.b16 %v315
    %v1055 = vunpack.c.h.b16 %v315
    %v1056 = vunpack.c.l.b16 %v316
    %v1057 = vunpack.c.h.b16 %v316
    %v1058 = vunpack.c.l.b16 %v317
    %v1059 = vunpack.c.h.b16 %v317
    %v1060 = vunpack.c.l.b16 %v318
    %v1061 = vunpack.c.h.b16 %v318
    %v1062 = vunpack.c.l.b16 %v319
    %v1063 = vunpack.c.h.b16 %v319
    %v1064 = vunpack.c.l.b16 %v320
    %v1065 = vunpack.c.h.b16 %v320
    %v1066 = vunpack.c.l.b16 %v321
    %v1067 = vunpack.c.h.b16 %v321
    %v1068 = vunpack.c.l.b16 %v322
    %v1069 = vunpack.c.h.b16 %v322
    %v1070 = vunpack.c.l.b16 %v323
    %v1071 = vunpack.c.h.b16 %v323
    %v1072 = vunpack.c.l.b16 %v324
    %v1073 = vunpack.c.h.b16 %v324
    %v1074 = vunpack.c.l.b16 %v325
    %v1075 = vunpack.c.h.b16 %v325
    %v1076 = vunpack.c.l.b16 %v326
    %v1077 = vunpack.c.h.b16 %v326
    %v1078 = vunpack.c.l.b16 %v327
    %v1079 = vunpack.c.h.b16 %v327
    %v1080 = vunpack.c.l.b16 %v328
    %v1081 = vunpack.c.h.b16 %v328
    %v1082 = vunpack.c.l.b16 %v329
    %v1083 = vunpack.c.h.b16 %v329
    %v1084 = vunpack.c.l.b16 %v330
    %v1085 = vunpack.c.h.b16 %v330
    %v1086 = vunpack.c.l.b16 %v331
    %v1087 = vunpack.c.h.b16 %v331
    %v1088 = vunpack.c.l.b16 %v332
    %v1089 = vunpack.c.h.b16 %v332
    %v1090 = vunpack.c.l.b16 %v333
    %v1091 = vunpack.c.h.b16 %v333
    %v1092 = vunpack.c.l.b16 %v334
    %v1093 = vunpack.c.h.b16 %v334
    %v1094 = vunpack.c.l.b16 %v335
    %v1095 = vunpack.c.h.b16 %v335
    %v1096 = vunpack.c.l.b16 %v336
    %v1097 = vunpack.c.h.b16 %v336
    %v1098 = vunpack.c.l.b16 %v337
    %v1099 = vunpack.c.h.b16 %v337
    %v1100 = vunpack.c.l.b16 %v338
    %v1101 = vunpack.c.h.b16 %v338
    %v1102 = vunpack.c.l.b16 %v339
    %v1103 = vunpack.c.h.b16 %v339
    %v1104 = vunpack.c.l.b16 %v340
    %v1105 = vunpack.c.h.b16 %v340
    %v1106 = vunpack.c.l.b16 %v341
    %v1107 = vunpack.c.h.b16 %v341
    %v1108 = vunpack.c.l.b16 %v342
    %v1109 = vunpack.c.h.b16 %v342
    %v1110 = vunpack.c.l.b16 %v343
    %v1111 = vunpack.c.h.b16 %v343
    %v1112 = vunpack.c.l.b16 %v344
    %v1113 = vunpack.c.h.b16 %v344
    %v1114 = vunpack.c.l.b16 %v345
    %v1115 = vunpack.c.h.b16 %v345
    %v1116 = vunpack.c.l.b16 %v346
    %v1117 = vunpack.c.h.b16 %v346
    %v1118 = vunpack.c.l.b16 %v347
    %v1119 = vunpack.c.h.b16 %v347
    %v1120 = vunpack.c.l.b16 %v348
    %v1121 = vunpack.c.h.b16 %v348
    %v1122 = vunpack.c.l.b16 %v349
    %v1123 = vunpack.c.h.b16 %v349
    %v1124 = vunpack.c.l.b16 %v350
    %v1125 = vunpack.c.h.b16 %v350
    %v1126 = vunpack.c.l.b16 %v351
    %v1127 = vunpack.c.h.b16 %v351
    %v1128 = vunpack.c.l.b16 %v352
    %v1129 = vunpack.c.h.b16 %v352
    %v1130 = vunpack.c.l.b16 %v353
    %v1131 = vunpack.c.h.b16 %v353
    %v1132 = vunpack.c.l.b16 %v354
    %v1133 = vunpack.c.h.b16 %v354
    %v1134 = vunpack.c.l.b16 %v355
    %v1135 = vunpack.c.h.b16 %v355
    %v1136 = vunpack.c.l.b16 %v356
    %v1137 = vunpack.c.h.b16 %v356
    %v1138 = vunpack.c.l.b16 %v357
    %v1139 = vunpack.c.h.b16 %v357
    %v1140 = vunpack.c.l.b16 %v358
    %v1141 = vunpack.c.h.b16 %v358
    %v1142 = vunpack.c.l.b16 %v359
    %v1143 = vunpack.c.h.b16 %v359
    %v1144 = vunpack.c.l.b16 %v360
    %v1145 = vunpack.c.h.b16 %v360
    %v1146 = vunpack.c.l.b16 %v361
    %v1147 = vunpack.c.h.b16 %v361
    %v1148 = vunpack.c.l.b16 %v362
    %v1149 = vunpack.c.h.b16 %v362
    %v1150 = vunpack.c.l.b16 %v363
    %v1151 = vunpack.c.h.b16 %v363
    %v1152 = vunpack.c.l.b16 %v364
    %v1153 = vunpack.c.h.b16 %v364
    %v1154 = vunpack.c.l.b16 %v365
    %v1155 = vunpack.c.h.b16 %v365
    %v1156 = vpack.c.b16 %v648, %v644
    %v1157 = vpack.c.b16 %v649, %v645
    %v1158 = vpack.c.b16 %v650, %v646
    %v1159 = vpack.c.b16 %v651, %v647
    %v1160 = vpack.c.b16 %v656, %v652
    %v1161 = vpack.c.b16 %v657, %v653
    %v1162 = vpack.c.b16 %v658, %v654
    %v1163 = vpack.c.b16 %v659, %v655
    %v1164 = vpack.c.b16 %v664, %v660
    %v1165 = vpack.c.b16 %v665, %v661
    %v1166 = vpack.c.b16 %v666, %v662
    %v1167 = vpack.c.b16 %v667, %v663
    %v1168 = vpack.c.b16 %v672, %v668
    %v1169 = vpack.c.b16 %v673, %v669
    %v1170 = vpack.c.b16 %v674, %v670
    %v1171 = vpack.c.b16 %v675, %v671
    %v1172 = vpack.c.b16 %v680, %v676
    %v1173 = vpack.c.b16 %v681, %v677
    %v1174 = vpack.c.b16 %v682, %v678
    %v1175 = vpack.c.b16 %v683, %v679
    %v1176 = vpack.c.b16 %v688, %v684
    %v1177 = vpack.c.b16 %v689, %v685
    %v1178 = vpack.c.b16 %v690, %v686
    %v1179 = vpack.c.b16 %v691, %v687
    %v1180 = vpack.c.b16 %v696, %v692
    %v1181 = vpack.c.b16 %v697, %v693
    %v1182 = vpack.c.b16 %v698, %v694
    %v1183 = vpack.c.b16 %v699, %v695
    %v1184 = vpack.c.b16 %v704, %v700
    %v1185 = vpack.c.b16 %v705, %v701
    %v1186 = vpack.c.b16 %v706, %v702
    %v1187 = vpack.c.b16 %v707, %v703
    %v1188 = vpack.c.b16 %v712, %v708
    %v1189 = vpack.c.b16 %v713, %v709
    %v1190 = vpack.c.b16 %v714, %v710
    %v1191 = vpack.c.b16 %v715, %v711
    %v1192 = vpack.c.b16 %v720, %v716
    %v1193 = vpack.c.b16 %v721, %v717
    %v1194 = vpack.c.b16 %v722, %v718
    %v1195 = vpack.c.b16 %v723, %v719
    %v1196 = vpack.c.b16 %v728, %v724
    %v1197 = vpack.c.b16 %v729, %v725
    %v1198 = vpack.c.b16 %v730, %v726
    %v1199 = vpack.c.b16 %v731, %v727
    %v1200 = vpack.c.b16 %v736, %v732
    %v1201 = vpack.c.b16 %v737, %v733
    %v1202 = vpack.c.b16 %v738, %v734
    %v1203 = vpack.c.b16 %v739, %v735
    %v1204 = vpack.c.b16 %v744, %v740
    %v1205 = vpack.c.b16 %v745, %v741
    %v1206 = vpack.c.b16 %v746, %v742
    %v1207 = vpack.c.b16 %v747, %v743
    %v1208 = vpack.c.b16 %v752, %v748
    %v1209 = vpack.c.b16 %v753, %v749
    %v1210 = vpack.c.b16 %v754, %v750
    %v1211 = vpack.c.b16 %v755, %v751
    %v1212 = vpack.c.b16 %v760, %v756
    %v1213 = vpack.c.b16 %v761, %v757
    %v1214 = vpack.c.b16 %v762, %v758
    %v1215 = vpack.c.b16 %v763, %v759
    %v1216 = vpack.c.b16 %v768, %v764
    %v1217 = vpack.c.b16 %v769, %v765
    %v1218 = vpack.c.b16 %v770, %v766
    %v1219 = vpack.c.b16 %v771, %v767
    %v1220 = vpack.c.b16 %v776, %v772
    %v1221 = vpack.c.b16 %v777, %v773
    %v1222 = vpack.c.b16 %v778, %v774
    %v1223 = vpack.c.b16 %v779, %v775
    %v1224 = vpack.c.b16 %v784, %v780
    %v1225 = vpack.c.b16 %v785, %v781
    %v1226 = vpack.c.b16 %v786, %v782
    %v1227 = vpack.c.b16 %v787, %v783
    %v1228 = vpack.c.b16 %v792, %v788
    %v1229 = vpack.c.b16 %v793, %v789
    %v1230 = vpack.c.b16 %v794, %v790
    %v1231 = vpack.c.b16 %v795, %v791
    %v1232 = vpack.c.b16 %v800, %v796
    %v1233 = vpack.c.b16 %v801, %v797
    %v1234 = vpack.c.b16 %v802, %v798
    %v1235 = vpack.c.b16 %v803, %v799
    %v1236 = vpack.c.b16 %v808, %v804
    %v1237 = vpack.c.b16 %v809, %v805
    %v1238 = vpack.c.b16 %v810, %v806
    %v1239 = vpack.c.b16 %v811, %v807
    %v1240 = vpack.c.b16 %v816, %v812
    %v1241 = vpack.c.b16 %v817, %v813
    %v1242 = vpack.c.b16 %v818, %v814
    %v1243 = vpack.c.b16 %v819, %v815
    %v1244 = vpack.c.b16 %v824, %v820
    %v1245 = vpack.c.b16 %v825, %v821
    %v1246 = vpack.c.b16 %v826, %v822
    %v1247 = vpack.c.b16 %v827, %v823
    %v1248 = vpack.c.b16 %v832, %v828
    %v1249 = vpack.c.b16 %v833, %v829
    %v1250 = vpack.c.b16 %v834, %v830
    %v1251 = vpack.c.b16 %v835, %v831
    %v1252 = vpack.c.b16 %v840, %v836
    %v1253 = vpack.c.b16 %v841, %v837
    %v1254 = vpack.c.b16 %v842, %v838
    %v1255 = vpack.c.b16 %v843, %v839
    %v1256 = vpack.c.b16 %v848, %v844
    %v1257 = vpack.c.b16 %v849, %v845
    %v1258 = vpack.c.b16 %v850, %v846
    %v1259 = vpack.c.b16 %v851, %v847
    %v1260 = vpack.c.b16 %v856, %v852
    %v1261 = vpack.c.b16 %v857, %v853
    %v1262 = vpack.c.b16 %v858, %v854
    %v1263 = vpack.c.b16 %v859, %v855
    %v1264 = vpack.c.b16 %v864, %v860
    %v1265 = vpack.c.b16 %v865, %v861
    %v1266 = vpack.c.b16 %v866, %v862
    %v1267 = vpack.c.b16 %v867, %v863
    %v1268 = vpack.c.b16 %v872, %v868
    %v1269 = vpack.c.b16 %v873, %v869
    %v1270 = vpack.c.b16 %v874, %v870
    %v1271 = vpack.c.b16 %v875, %v871
    %v1272 = vpack.c.b16 %v880, %v876
    %v1273 = vpack.c.b16 %v881, %v877
    %v1274 = vpack.c.b16 %v882, %v878
    %v1275 = vpack.c.b16 %v883, %v879
    %v1276 = vpack.c.b16 %v888, %v884
    %v1277 = vpack.c.b16 %v889, %v885
    %v1278 = vpack.c.b16 %v890, %v886
    %v1279 = vpack.c.b16 %v891, %v887
    %v1280 = vpack.c.b16 %v896, %v892
    %v1281 = vpack.c.b16 %v897, %v893
    %v1282 = vpack.c.b16 %v898, %v894
    %v1283 = vpack.c.b16 %v899, %v895
    %v1284 = vpack.c.b16 %v904, %v900
    %v1285 = vpack.c.b16 %v905, %v901
    %v1286 = vpack.c.b16 %v906, %v902
    %v1287 = vpack.c.b16 %v907, %v903
    %v1288 = vpack.c.b16 %v912, %v908
    %v1289 = vpack.c.b16 %v913, %v909
    %v1290 = vpack.c.b16 %v914, %v910
    %v1291 = vpack.c.b16 %v915, %v911
    %v1292 = vpack.c.b16 %v920, %v916
    %v1293 = vpack.c.b16 %v921, %v917
    %v1294 = vpack.c.b16 %v922, %v918
    %v1295 = vpack.c.b16 %v923, %v919
    %v1296 = vpack.c.b16 %v928, %v924
    %v1297 = vpack.c.b16 %v929, %v925
    %v1298 = vpack.c.b16 %v930, %v926
    %v1299 = vpack.c.b16 %v931, %v927
    %v1300 = vpack.c.b16 %v936, %v932
    %v1301 = vpack.c.b16 %v937, %v933
    %v1302 = vpack.c.b16 %v938, %v934
    %v1303 = vpack.c.b16 %v939, %v935
    %v1304 = vpack.c.b16 %v944, %v940
    %v1305 = vpack.c.b16 %v945, %v941
    %v1306 = vpack.c.b16 %v946, %v942
    %v1307 = vpack.c.b16 %v947, %v943
    %v1308 = vpack.c.b16 %v952, %v948
    %v1309 = vpack.c.b16 %v953, %v949
    %v1310 = vpack.c.b16 %v954, %v950
    %v1311 = vpack.c.b16 %v955, %v951
    %v1312 = vpack.c.b16 %v960, %v956
    %v1313 = vpack.c.b16 %v961, %v957
    %v1314 = vpack.c.b16 %v962, %v958
    %v1315 = vpack.c.b16 %v963, %v959
    %v1316 = vpack.c.b16 %v968, %v964
    %v1317 = vpack.c.b16 %v969, %v965
    %v1318 = vpack.c.b16 %v970, %v966
    %v1319 = vpack.c.b16 %v971, %v967
    %v1320 = vpack.c.b16 %v976, %v972
    %v1321 = vpack.c.b16 %v977, %v973
    %v1322 = vpack.c.b16 %v978, %v974
    %v1323 = vpack.c.b16 %v979, %v975
    %v1324 = vpack.c.b16 %v984, %v980
    %v1325 = vpack.c.b16 %v985, %v981
    %v1326 = vpack.c.b16 %v986, %v982
    %v1327 = vpack.c.b16 %v987, %v983
    %v1328 = vpack.c.b16 %v992, %v988
    %v1329 = vpack.c.b16 %v993, %v989
    %v1330 = vpack.c.b16 %v994, %v990
    %v1331 = vpack.c.b16 %v995, %v991
    %v1332 = vpack.c.b16 %v1000, %v996
    %v1333 = vpack.c.b16 %v1001, %v997
    %v1334 = vpack.c.b16 %v1002, %v998
    %v1335 = vpack.c.b16 %v1003, %v999
    %v1336 = vpack.c.b16 %v1008, %v1004
    %v1337 = vpack.c.b16 %v1009, %v1005
    %v1338 = vpack.c.b16 %v1010, %v1006
    %v1339 = vpack.c.b16 %v1011, %v1007
    %v1340 = vpack.c.b16 %v1016, %v1012
    %v1341 = vpack.c.b16 %v1017, %v1013
    %v1342 = vpack.c.b16 %v1018, %v1014
    %v1343 = vpack.c.b16 %v1019, %v1015
    %v1344 = vpack.c.b16 %v1024, %v1020
    %v1345 = vpack.c.b16 %v1025, %v1021
    %v1346 = vpack.c.b16 %v1026, %v1022
    %v1347 = vpack.c.b16 %v1027, %v1023
    %v1348 = vpack.c.b16 %v1032, %v1028
    %v1349 = vpack.c.b16 %v1033, %v1029
    %v1350 = vpack.c.b16 %v1034, %v1030
    %v1351 = vpack.c.b16 %v1035, %v1031
    %v1352 = vpack.c.b16 %v1040, %v1036
    %v1353 = vpack.c.b16 %v1041, %v1037
    %v1354 = vpack.c.b16 %v1042, %v1038
    %v1355 = vpack.c.b16 %v1043, %v1039
    %v1356 = vpack.c.b16 %v1048, %v1044
    %v1357 = vpack.c.b16 %v1049, %v1045
    %v1358 = vpack.c.b16 %v1050, %v1046
    %v1359 = vpack.c.b16 %v1051, %v1047
    %v1360 = vpack.c.b16 %v1056, %v1052
    %v1361 = vpack.c.b16 %v1057, %v1053
    %v1362 = vpack.c.b16 %v1058, %v1054
    %v1363 = vpack.c.b16 %v1059, %v1055
    %v1364 = vpack.c.b16 %v1064, %v1060
    %v1365 = vpack.c.b16 %v1065, %v1061
    %v1366 = vpack.c.b16 %v1066, %v1062
    %v1367 = vpack.c.b16 %v1067, %v1063
    %v1368 = vpack.c.b16 %v1072, %v1068
    %v1369 = vpack.c.b16 %v1073, %v1069
    %v1370 = vpack.c.b16 %v1074, %v1070
    %v1371 = vpack.c.b16 %v1075, %v1071
    %v1372 = vpack.c.b16 %v1080, %v1076
    %v1373 = vpack.c.b16 %v1081, %v1077
    %v1374 = vpack.c.b16 %v1082, %v1078
    %v1375 = vpack.c.b16 %v1083, %v1079
    %v1376 = vpack.c.b16 %v1088, %v1084
    %v1377 = vpack.c.b16 %v1089, %v1085
    %v1378 = vpack.c.b16 %v1090, %v1086
    %v1379 = vpack.c.b16 %v1091, %v1087
    %v1380 = vpack.c.b16 %v1096, %v1092
    %v1381 = vpack.c.b16 %v1097, %v1093
    %v1382 = vpack.c.b16 %v1098, %v1094
    %v1383 = vpack.c.b16 %v1099, %v1095
    %v1384 = vpack.c.b16 %v1104, %v1100
    %v1385 = vpack.c.b16 %v1105, %v1101
    %v1386 = vpack.c.b16 %v1106, %v1102
    %v1387 = vpack.c.b16 %v1107, %v1103
    %v1388 = vpack.c.b16 %v1112, %v1108
    %v1389 = vpack.c.b16 %v1113, %v1109
    %v1390 = vpack.c.b16 %v1114, %v1110
    %v1391 = vpack.c.b16 %v1115, %v1111
    %v1392 = vpack.c.b16 %v1120, %v1116
    %v1393 = vpack.c.b16 %v1121, %v1117
    %v1394 = vpack.c.b16 %v1122, %v1118
    %v1395 = vpack.c.b16 %v1123, %v1119
    %v1396 = vpack.c.b16 %v1128, %v1124
    %v1397 = vpack.c.b16 %v1129, %v1125
    %v1398 = vpack.c.b16 %v1130, %v1126
    %v1399 = vpack.c.b16 %v1131, %v1127
    %v1400 = vpack.c.b16 %v1136, %v1132
    %v1401 = vpack.c.b16 %v1137, %v1133
    %v1402 = vpack.c.b16 %v1138, %v1134
    %v1403 = vpack.c.b16 %v1139, %v1135
    %v1404 = vpack.c.b16 %v1144, %v1140
    %v1405 = vpack.c.b16 %v1145, %v1141
    %v1406 = vpack.c.b16 %v1146, %v1142
    %v1407 = vpack.c.b16 %v1147, %v1143
    %v1408 = vpack.c.b16 %v1152, %v1148
    %v1409 = vpack.c.b16 %v1153, %v1149
    %v1410 = vpack.c.b16 %v1154, %v1150
    %v1411 = vpack.c.b16 %v1155, %v1151
    %1668 = vmatprep.subr.bf16.mxu0 %v1157
    %1669 = vmatpush1.bf16.msra.mxu0 %v1156
    %1670 = vmatprep.subr.bf16.mxu0 %v1161
    %1671 = vmatpush1.bf16.msra.mxu0 %v1160
    %1672 = vmatprep.subr.bf16.mxu0 %v1165
    %1673 = vmatpush1.bf16.msra.mxu0 %v1164
    %1674 = vmatprep.subr.bf16.mxu0 %v1169
    %1675 = vmatpush1.bf16.msra.mxu0 %v1168
    %1676 = vmatprep.subr.bf16.mxu0 %v1173
    %1677 = vmatpush1.bf16.msra.mxu0 %v1172
    %1678 = vmatprep.subr.bf16.mxu0 %v1177
    %1679 = vmatpush1.bf16.msra.mxu0 %v1176
    %1680 = vmatprep.subr.bf16.mxu0 %v1181
    %1681 = vmatpush1.bf16.msra.mxu0 %v1180
    %1682 = vmatprep.subr.bf16.mxu0 %v1185
    %1683 = vmatpush1.bf16.msra.mxu0 %v1184
    %1684 = vmatprep.subr.bf16.mxu0 %v1189
    %1685 = vmatpush1.bf16.msra.mxu0 %v1188
    %1686 = vmatprep.subr.bf16.mxu0 %v1193
    %1687 = vmatpush1.bf16.msra.mxu0 %v1192
    %1688 = vmatprep.subr.bf16.mxu0 %v1197
    %1689 = vmatpush1.bf16.msra.mxu0 %v1196
    %1690 = vmatprep.subr.bf16.mxu0 %v1201
    %1691 = vmatpush1.bf16.msra.mxu0 %v1200
    %1692 = vmatprep.subr.bf16.mxu0 %v1205
    %1693 = vmatpush1.bf16.msra.mxu0 %v1204
    %1694 = vmatprep.subr.bf16.mxu0 %v1209
    %1695 = vmatpush1.bf16.msra.mxu0 %v1208
    %1696 = vmatprep.subr.bf16.mxu0 %v1213
    %1697 = vmatpush1.bf16.msra.mxu0 %v1212
    %1698 = vmatprep.subr.bf16.mxu0 %v1217
    %1699 = vmatpush1.bf16.msra.mxu0 %v1216
    %1700 = vmatprep.mubr.bf16.mxu0 %v103
    %1701 = vmatmul.mubr.bf16.gmra.mrb[0].mxu0 %v102
    %v1702 = vpop.f32.mrb[0].mxu0
    %v1703 = vadd.f32 %v371, %v1702
    %v1704 = vpop.f32.mrb[0].mxu0
    %v1705 = vadd.f32 %v375, %v1704
    %v1706 = vpop.f32.mrb[0].mxu0
    %v1707 = vadd.f32 %v371, %v1706
    %v1708 = vpop.f32.mrb[0].mxu0
    %v1709 = vadd.f32 %v375, %v1708
    %1710 = vdwg.mxu0
    %1711 = vmatprep.subr.bf16.mxu0 %v1221
    %1712 = vmatpush1.bf16.msra.mxu0 %v1220
    %1713 = vmatprep.subr.bf16.mxu0 %v1225
    %1714 = vmatpush1.bf16.msra.mxu0 %v1224
    %1715 = vmatprep.subr.bf16.mxu0 %v1229
    %1716 = vmatpush1.bf16.msra.mxu0 %v1228
    %1717 = vmatprep.subr.bf16.mxu0 %v1233
    %1718 = vmatpush1.bf16.msra.mxu0 %v1232
    %1719 = vmatprep.subr.bf16.mxu0 %v1237
    %1720 = vmatpush1.bf16.msra.mxu0 %v1236
    %1721 = vmatprep.subr.bf16.mxu0 %v1241
    %1722 = vmatpush1.bf16.msra.mxu0 %v1240
    %1723 = vmatprep.subr.bf16.mxu0 %v1245
    %1724 = vmatpush1.bf16.msra.mxu0 %v1244
    %1725 = vmatprep.subr.bf16.mxu0 %v1249
    %1726 = vmatpush1.bf16.msra.mxu0 %v1248
    %1727 = vmatprep.subr.bf16.mxu0 %v1253
    %1728 = vmatpush1.bf16.msra.mxu0 %v1252
    %1729 = vmatprep.subr.bf16.mxu0 %v1257
    %1730 = vmatpush1.bf16.msra.mxu0 %v1256
    %1731 = vmatprep.subr.bf16.mxu0 %v1261
    %1732 = vmatpush1.bf16.msra.mxu0 %v1260
    %1733 = vmatprep.subr.bf16.mxu0 %v1265
    %1734 = vmatpush1.bf16.msra.mxu0 %v1264
    %1735 = vmatprep.subr.bf16.mxu0 %v1269
    %1736 = vmatpush1.bf16.msra.mxu0 %v1268
    %1737 = vmatprep.subr.bf16.mxu0 %v1273
    %1738 = vmatpush1.bf16.msra.mxu0 %v1272
    %1739 = vmatprep.subr.bf16.mxu0 %v1277
    %1740 = vmatpush1.bf16.msra.mxu0 %v1276
    %1741 = vmatprep.subr.bf16.mxu0 %v1281
    %1742 = vmatpush1.bf16.msra.mxu0 %v1280
    %1743 = vmatprep.mubr.bf16.mxu0 %v105
    %1744 = vmatmul.mubr.bf16.gmra.mrb[0].mxu0 %v104
    %v1745 = vpop.f32.mrb[0].mxu0
    %v1746 = vadd.f32 %v1703, %v1745
    %v1747 = vpop.f32.mrb[0].mxu0
    %v1748 = vadd.f32 %v1705, %v1747
    %v1749 = vpop.f32.mrb[0].mxu0
    %v1750 = vadd.f32 %v1707, %v1749
    %v1751 = vpop.f32.mrb[0].mxu0
    %v1752 = vadd.f32 %v1709, %v1751
    %1753 = vdwg.mxu0
    %1754 = vmatprep.subr.bf16.mxu0 %v1285
    %1755 = vmatpush1.bf16.msra.mxu0 %v1284
    %1756 = vmatprep.subr.bf16.mxu0 %v1289
    %1757 = vmatpush1.bf16.msra.mxu0 %v1288
    %1758 = vmatprep.subr.bf16.mxu0 %v1293
    %1759 = vmatpush1.bf16.msra.mxu0 %v1292
    %1760 = vmatprep.subr.bf16.mxu0 %v1297
    %1761 = vmatpush1.bf16.msra.mxu0 %v1296
    %1762 = vmatprep.subr.bf16.mxu0 %v1301
    %1763 = vmatpush1.bf16.msra.mxu0 %v1300
    %1764 = vmatprep.subr.bf16.mxu0 %v1305
    %1765 = vmatpush1.bf16.msra.mxu0 %v1304
    %1766 = vmatprep.subr.bf16.mxu0 %v1309
    %1767 = vmatpush1.bf16.msra.mxu0 %v1308
    %1768 = vmatprep.subr.bf16.mxu0 %v1313
    %1769 = vmatpush1.bf16.msra.mxu0 %v1312
    %1770 = vmatprep.subr.bf16.mxu0 %v1317
    %1771 = vmatpush1.bf16.msra.mxu0 %v1316
    %1772 = vmatprep.subr.bf16.mxu0 %v1321
    %1773 = vmatpush1.bf16.msra.mxu0 %v1320
    %1774 = vmatprep.subr.bf16.mxu0 %v1325
    %1775 = vmatpush1.bf16.msra.mxu0 %v1324
    %1776 = vmatprep.subr.bf16.mxu0 %v1329
    %1777 = vmatpush1.bf16.msra.mxu0 %v1328
    %1778 = vmatprep.subr.bf16.mxu0 %v1333
    %1779 = vmatpush1.bf16.msra.mxu0 %v1332
    %1780 = vmatprep.subr.bf16.mxu0 %v1337
    %1781 = vmatpush1.bf16.msra.mxu0 %v1336
    %1782 = vmatprep.subr.bf16.mxu0 %v1341
    %1783 = vmatpush1.bf16.msra.mxu0 %v1340
    %1784 = vmatprep.subr.bf16.mxu0 %v1345
    %1785 = vmatpush1.bf16.msra.mxu0 %v1344
    %1786 = vmatprep.mubr.bf16.mxu0 %v107
    %1787 = vmatmul.mubr.bf16.gmra.mrb[0].mxu0 %v106
    %v1788 = vpop.f32.mrb[0].mxu0
    %v1789 = vadd.f32 %v1746, %v1788
    %v1790 = vpop.f32.mrb[0].mxu0
    %v1791 = vadd.f32 %v1748, %v1790
    %v1792 = vpop.f32.mrb[0].mxu0
    %v1793 = vadd.f32 %v1750, %v1792
    %v1794 = vpop.f32.mrb[0].mxu0
    %v1795 = vadd.f32 %v1752, %v1794
    %1796 = vdwg.mxu0
    %1797 = vmatprep.subr.bf16.mxu0 %v1349
    %1798 = vmatpush1.bf16.msra.mxu0 %v1348
    %1799 = vmatprep.subr.bf16.mxu0 %v1353
    %1800 = vmatpush1.bf16.msra.mxu0 %v1352
    %1801 = vmatprep.subr.bf16.mxu0 %v1357
    %1802 = vmatpush1.bf16.msra.mxu0 %v1356
    %1803 = vmatprep.subr.bf16.mxu0 %v1361
    %1804 = vmatpush1.bf16.msra.mxu0 %v1360
    %1805 = vmatprep.subr.bf16.mxu0 %v1365
    %1806 = vmatpush1.bf16.msra.mxu0 %v1364
    %1807 = vmatprep.subr.bf16.mxu0 %v1369
    %1808 = vmatpush1.bf16.msra.mxu0 %v1368
    %1809 = vmatprep.subr.bf16.mxu0 %v1373
    %1810 = vmatpush1.bf16.msra.mxu0 %v1372
    %1811 = vmatprep.subr.bf16.mxu0 %v1377
    %1812 = vmatpush1.bf16.msra.mxu0 %v1376
    %1813 = vmatprep.subr.bf16.mxu0 %v1381
    %1814 = vmatpush1.bf16.msra.mxu0 %v1380
    %1815 = vmatprep.subr.bf16.mxu0 %v1385
    %1816 = vmatpush1.bf16.msra.mxu0 %v1384
    %1817 = vmatprep.subr.bf16.mxu0 %v1389
    %1818 = vmatpush1.bf16.msra.mxu0 %v1388
    %1819 = vmatprep.subr.bf16.mxu0 %v1393
    %1820 = vmatpush1.bf16.msra.mxu0 %v1392
    %1821 = vmatprep.subr.bf16.mxu0 %v1397
    %1822 = vmatpush1.bf16.msra.mxu0 %v1396
    %1823 = vmatprep.subr.bf16.mxu0 %v1401
    %1824 = vmatpush1.bf16.msra.mxu0 %v1400
    %1825 = vmatprep.subr.bf16.mxu0 %v1405
    %1826 = vmatpush1.bf16.msra.mxu0 %v1404
    %1827 = vmatprep.subr.bf16.mxu0 %v1409
    %1828 = vmatpush1.bf16.msra.mxu0 %v1408
    %1829 = vmatprep.mubr.bf16.mxu0 %v109
    %1830 = vmatmul.mubr.bf16.gmra.mrb[0].mxu0 %v108
    %v1831 = vpop.f32.mrb[0].mxu0
    %v1832 = vadd.f32 %v1789, %v1831
    %v1833 = vpop.f32.mrb[0].mxu0
    %v1834 = vadd.f32 %v1791, %v1833
    %v1835 = vpop.f32.mrb[0].mxu0
    %v1836 = vadd.f32 %v1793, %v1835
    %v1837 = vpop.f32.mrb[0].mxu0
    %v1838 = vadd.f32 %v1795, %v1837
    %1839 = vdwg.mxu0
    %1840 = vmatprep.subr.bf16.mxu0 %v1159
    %1841 = vmatpush1.bf16.msra.mxu0 %v1158
    %1842 = vmatprep.subr.bf16.mxu0 %v1163
    %1843 = vmatpush1.bf16.msra.mxu0 %v1162
    %1844 = vmatprep.subr.bf16.mxu0 %v1167
    %1845 = vmatpush1.bf16.msra.mxu0 %v1166
    %1846 = vmatprep.subr.bf16.mxu0 %v1171
    %1847 = vmatpush1.bf16.msra.mxu0 %v1170
    %1848 = vmatprep.subr.bf16.mxu0 %v1175
    %1849 = vmatpush1.bf16.msra.mxu0 %v1174
    %1850 = vmatprep.subr.bf16.mxu0 %v1179
    %1851 = vmatpush1.bf16.msra.mxu0 %v1178
    %1852 = vmatprep.subr.bf16.mxu0 %v1183
    %1853 = vmatpush1.bf16.msra.mxu0 %v1182
    %1854 = vmatprep.subr.bf16.mxu0 %v1187
    %1855 = vmatpush1.bf16.msra.mxu0 %v1186
    %1856 = vmatprep.subr.bf16.mxu0 %v1191
    %1857 = vmatpush1.bf16.msra.mxu0 %v1190
    %1858 = vmatprep.subr.bf16.mxu0 %v1195
    %1859 = vmatpush1.bf16.msra.mxu0 %v1194
    %1860 = vmatprep.subr.bf16.mxu0 %v1199
    %1861 = vmatpush1.bf16.msra.mxu0 %v1198
    %1862 = vmatprep.subr.bf16.mxu0 %v1203
    %1863 = vmatpush1.bf16.msra.mxu0 %v1202
    %1864 = vmatprep.subr.bf16.mxu0 %v1207
    %1865 = vmatpush1.bf16.msra.mxu0 %v1206
    %1866 = vmatprep.subr.bf16.mxu0 %v1211
    %1867 = vmatpush1.bf16.msra.mxu0 %v1210
    %1868 = vmatprep.subr.bf16.mxu0 %v1215
    %1869 = vmatpush1.bf16.msra.mxu0 %v1214
    %1870 = vmatprep.subr.bf16.mxu0 %v1219
    %1871 = vmatpush1.bf16.msra.mxu0 %v1218
    %1872 = vmatprep.mubr.bf16.mxu0 %v103
    %1873 = vmatmul.mubr.bf16.gmra.mrb[0].mxu0 %v102
    %v1874 = vpop.f32.mrb[0].mxu0
    %v1875 = vadd.f32 %v379, %v1874
    %v1876 = vpop.f32.mrb[0].mxu0
    %v1877 = vadd.f32 %v383, %v1876
    %v1878 = vpop.f32.mrb[0].mxu0
    %v1879 = vadd.f32 %v379, %v1878
    %v1880 = vpop.f32.mrb[0].mxu0
    %v1881 = vadd.f32 %v383, %v1880
    %1882 = vdwg.mxu0
    %1883 = vmatprep.subr.bf16.mxu0 %v1223
    %1884 = vmatpush1.bf16.msra.mxu0 %v1222
    %1885 = vmatprep.subr.bf16.mxu0 %v1227
    %1886 = vmatpush1.bf16.msra.mxu0 %v1226
    %1887 = vmatprep.subr.bf16.mxu0 %v1231
    %1888 = vmatpush1.bf16.msra.mxu0 %v1230
    %1889 = vmatprep.subr.bf16.mxu0 %v1235
    %1890 = vmatpush1.bf16.msra.mxu0 %v1234
    %1891 = vmatprep.subr.bf16.mxu0 %v1239
    %1892 = vmatpush1.bf16.msra.mxu0 %v1238
    %1893 = vmatprep.subr.bf16.mxu0 %v1243
    %1894 = vmatpush1.bf16.msra.mxu0 %v1242
    %1895 = vmatprep.subr.bf16.mxu0 %v1247
    %1896 = vmatpush1.bf16.msra.mxu0 %v1246
    %1897 = vmatprep.subr.bf16.mxu0 %v1251
    %1898 = vmatpush1.bf16.msra.mxu0 %v1250
    %1899 = vmatprep.subr.bf16.mxu0 %v1255
    %1900 = vmatpush1.bf16.msra.mxu0 %v1254
    %1901 = vmatprep.subr.bf16.mxu0 %v1259
    %1902 = vmatpush1.bf16.msra.mxu0 %v1258
    %1903 = vmatprep.subr.bf16.mxu0 %v1263
    %1904 = vmatpush1.bf16.msra.mxu0 %v1262
    %1905 = vmatprep.subr.bf16.mxu0 %v1267
    %1906 = vmatpush1.bf16.msra.mxu0 %v1266
    %1907 = vmatprep.subr.bf16.mxu0 %v1271
    %1908 = vmatpush1.bf16.msra.mxu0 %v1270
    %1909 = vmatprep.subr.bf16.mxu0 %v1275
    %1910 = vmatpush1.bf16.msra.mxu0 %v1274
    %1911 = vmatprep.subr.bf16.mxu0 %v1279
    %1912 = vmatpush1.bf16.msra.mxu0 %v1278
    %1913 = vmatprep.subr.bf16.mxu0 %v1283
    %1914 = vmatpush1.bf16.msra.mxu0 %v1282
    %1915 = vmatprep.mubr.bf16.mxu0 %v105
    %1916 = vmatmul.mubr.bf16.gmra.mrb[0].mxu0 %v104
    %v1917 = vpop.f32.mrb[0].mxu0
    %v1918 = vadd.f32 %v1875, %v1917
    %v1919 = vpop.f32.mrb[0].mxu0
    %v1920 = vadd.f32 %v1877, %v1919
    %v1921 = vpop.f32.mrb[0].mxu0
    %v1922 = vadd.f32 %v1879, %v1921
    %v1923 = vpop.f32.mrb[0].mxu0
    %v1924 = vadd.f32 %v1881, %v1923
    %1925 = vdwg.mxu0
    %1926 = vmatprep.subr.bf16.mxu0 %v1287
    %1927 = vmatpush1.bf16.msra.mxu0 %v1286
    %1928 = vmatprep.subr.bf16.mxu0 %v1291
    %1929 = vmatpush1.bf16.msra.mxu0 %v1290
    %1930 = vmatprep.subr.bf16.mxu0 %v1295
    %1931 = vmatpush1.bf16.msra.mxu0 %v1294
    %1932 = vmatprep.subr.bf16.mxu0 %v1299
    %1933 = vmatpush1.bf16.msra.mxu0 %v1298
    %1934 = vmatprep.subr.bf16.mxu0 %v1303
    %1935 = vmatpush1.bf16.msra.mxu0 %v1302
    %1936 = vmatprep.subr.bf16.mxu0 %v1307
    %1937 = vmatpush1.bf16.msra.mxu0 %v1306
    %1938 = vmatprep.subr.bf16.mxu0 %v1311
    %1939 = vmatpush1.bf16.msra.mxu0 %v1310
    %1940 = vmatprep.subr.bf16.mxu0 %v1315
    %1941 = vmatpush1.bf16.msra.mxu0 %v1314
    %1942 = vmatprep.subr.bf16.mxu0 %v1319
    %1943 = vmatpush1.bf16.msra.mxu0 %v1318
    %1944 = vmatprep.subr.bf16.mxu0 %v1323
    %1945 = vmatpush1.bf16.msra.mxu0 %v1322
    %1946 = vmatprep.subr.bf16.mxu0 %v1327
    %1947 = vmatpush1.bf16.msra.mxu0 %v1326
    %1948 = vmatprep.subr.bf16.mxu0 %v1331
    %1949 = vmatpush1.bf16.msra.mxu0 %v1330
    %1950 = vmatprep.subr.bf16.mxu0 %v1335
    %1951 = vmatpush1.bf16.msra.mxu0 %v1334
    %1952 = vmatprep.subr.bf16.mxu0 %v1339
    %1953 = vmatpush1.bf16.msra.mxu0 %v1338
    %1954 = vmatprep.subr.bf16.mxu0 %v1343
    %1955 = vmatpush1.bf16.msra.mxu0 %v1342
    %1956 = vmatprep.subr.bf16.mxu0 %v1347
    %1957 = vmatpush1.bf16.msra.mxu0 %v1346
    %1958 = vmatprep.mubr.bf16.mxu0 %v107
    %1959 = vmatmul.mubr.bf16.gmra.mrb[0].mxu0 %v106
    %v1960 = vpop.f32.mrb[0].mxu0
    %v1961 = vadd.f32 %v1918, %v1960
    %v1962 = vpop.f32.mrb[0].mxu0
    %v1963 = vadd.f32 %v1920, %v1962
    %v1964 = vpop.f32.mrb[0].mxu0
    %v1965 = vadd.f32 %v1922, %v1964
    %v1966 = vpop.f32.mrb[0].mxu0
    %v1967 = vadd.f32 %v1924, %v1966
    %1968 = vdwg.mxu0
    %1969 = vmatprep.subr.bf16.mxu0 %v1351
    %1970 = vmatpush1.bf16.msra.mxu0 %v1350
    %1971 = vmatprep.subr.bf16.mxu0 %v1355
    %1972 = vmatpush1.bf16.msra.mxu0 %v1354
    %1973 = vmatprep.subr.bf16.mxu0 %v1359
    %1974 = vmatpush1.bf16.msra.mxu0 %v1358
    %1975 = vmatprep.subr.bf16.mxu0 %v1363
    %1976 = vmatpush1.bf16.msra.mxu0 %v1362
    %1977 = vmatprep.subr.bf16.mxu0 %v1367
    %1978 = vmatpush1.bf16.msra.mxu0 %v1366
    %1979 = vmatprep.subr.bf16.mxu0 %v1371
    %1980 = vmatpush1.bf16.msra.mxu0 %v1370
    %1981 = vmatprep.subr.bf16.mxu0 %v1375
    %1982 = vmatpush1.bf16.msra.mxu0 %v1374
    %1983 = vmatprep.subr.bf16.mxu0 %v1379
    %1984 = vmatpush1.bf16.msra.mxu0 %v1378
    %1985 = vmatprep.subr.bf16.mxu0 %v1383
    %1986 = vmatpush1.bf16.msra.mxu0 %v1382
    %1987 = vmatprep.subr.bf16.mxu0 %v1387
    %1988 = vmatpush1.bf16.msra.mxu0 %v1386
    %1989 = vmatprep.subr.bf16.mxu0 %v1391
    %1990 = vmatpush1.bf16.msra.mxu0 %v1390
    %1991 = vmatprep.subr.bf16.mxu0 %v1395
    %1992 = vmatpush1.bf16.msra.mxu0 %v1394
    %1993 = vmatprep.subr.bf16.mxu0 %v1399
    %1994 = vmatpush1.bf16.msra.mxu0 %v1398
    %1995 = vmatprep.subr.bf16.mxu0 %v1403
    %1996 = vmatpush1.bf16.msra.mxu0 %v1402
    %1997 = vmatprep.subr.bf16.mxu0 %v1407
    %1998 = vmatpush1.bf16.msra.mxu0 %v1406
    %1999 = vmatprep.subr.bf16.mxu0 %v1411
    %2000 = vmatpush1.bf16.msra.mxu0 %v1410
    %2001 = vmatprep.mubr.bf16.mxu0 %v109
    %2002 = vmatmul.mubr.bf16.gmra.mrb[0].mxu0 %v108
    %v2003 = vpop.f32.mrb[0].mxu0
    %v2004 = vadd.f32 %v1961, %v2003
    %v2005 = vpop.f32.mrb[0].mxu0
    %v2006 = vadd.f32 %v1963, %v2005
    %v2007 = vpop.f32.mrb[0].mxu0
    %v2008 = vadd.f32 %v1965, %v2007
    %v2009 = vpop.f32.mrb[0].mxu0
    %v2010 = vadd.f32 %v1967, %v2009
    %2011 = vdwg.mxu0
    %v2012 = vpack.c.bf16 %v1836, %v1832
    %v2013 = vpack.c.bf16 %v1838, %v1834
    %v2014 = vpack.c.bf16 %v2008, %v2004
    %v2015 = vpack.c.bf16 %v2010, %v2006
    %v2020 = vunpack.c.l.b16 %v2012
    %v2021 = vunpack.c.l.b16 %v2013
    %v2022 = vunpack.c.l.b16 %v2014
    %v2023 = vunpack.c.l.b16 %v2015
    %v2024 = vunpack.c.h.b16 %v2012
    %v2025 = vunpack.c.h.b16 %v2013
    %v2026 = vunpack.c.h.b16 %v2014
    %v2027 = vunpack.c.h.b16 %v2015
    %v2028 = vpack.c.b16 %v2021, %v2020
    %v2029 = vpack.c.b16 %v2023, %v2022
    %v2030 = vpack.c.b16 %v2025, %v2024
    %v2031 = vpack.c.b16 %v2027, %v2026
    %2036 = vst [vmem:[#allocation10] sm:$0xff] %v2028
    %2037 = vst [vmem:[#allocation10 + $0x8] sm:$0xff] %v2029
    %2038 = vst [vmem:[#allocation10 + $0x10] sm:$0xff] %v2030
    %2039 = vst [vmem:[#allocation10 + $0x18] sm:$0xff] %v2031
    %v2040 = vld [vmem:[#allocation7] sm:$0xff]
    %v2041 = vld [vmem:[#allocation7 + $0x8] sm:$0xff]
    %v2042 = vld [vmem:[#allocation7 + $0x10] sm:$0xff]
    %v2043 = vld [vmem:[#allocation7 + $0x18] sm:$0xff]
    %v2044 = vld [vmem:[#allocation7 + $0x20] sm:$0xff]
    %v2045 = vld [vmem:[#allocation7 + $0x28] sm:$0xff]
    %v2046 = vld [vmem:[#allocation7 + $0x30] sm:$0xff]
    %v2047 = vld [vmem:[#allocation7 + $0x38] sm:$0xff]
    %v2048 = vld [vmem:[#allocation7 + $0x40] sm:$0xff]
    %v2049 = vld [vmem:[#allocation7 + $0x48] sm:$0xff]
    %v2050 = vld [vmem:[#allocation7 + $0x50] sm:$0xff]
    %v2051 = vld [vmem:[#allocation7 + $0x58] sm:$0xff]
    %v2052 = vld [vmem:[#allocation7 + $0x60] sm:$0xff]
    %v2053 = vld [vmem:[#allocation7 + $0x68] sm:$0xff]
    %v2054 = vld [vmem:[#allocation7 + $0x70] sm:$0xff]
    %v2055 = vld [vmem:[#allocation7 + $0x78] sm:$0xff]
    %v2056 = vld [vmem:[#allocation7 + $0x80] sm:$0xff]
    %v2057 = vld [vmem:[#allocation7 + $0x88] sm:$0xff]
    %v2058 = vld [vmem:[#allocation7 + $0x90] sm:$0xff]
    %v2059 = vld [vmem:[#allocation7 + $0x98] sm:$0xff]
    %v2060 = vld [vmem:[#allocation7 + $0xa0] sm:$0xff]
    %v2061 = vld [vmem:[#allocation7 + $0xa8] sm:$0xff]
    %v2062 = vld [vmem:[#allocation7 + $0xb0] sm:$0xff]
    %v2063 = vld [vmem:[#allocation7 + $0xb8] sm:$0xff]
    %v2064 = vld [vmem:[#allocation7 + $0xc0] sm:$0xff]
    %v2065 = vld [vmem:[#allocation7 + $0xc8] sm:$0xff]
    %v2066 = vld [vmem:[#allocation7 + $0xd0] sm:$0xff]
    %v2067 = vld [vmem:[#allocation7 + $0xd8] sm:$0xff]
    %v2068 = vld [vmem:[#allocation7 + $0xe0] sm:$0xff]
    %v2069 = vld [vmem:[#allocation7 + $0xe8] sm:$0xff]
    %v2070 = vld [vmem:[#allocation7 + $0xf0] sm:$0xff]
    %v2071 = vld [vmem:[#allocation7 + $0xf8] sm:$0xff]
    %v2072 = vld [vmem:[#allocation7 + $0x100] sm:$0xff]
    %v2073 = vld [vmem:[#allocation7 + $0x108] sm:$0xff]
    %v2074 = vld [vmem:[#allocation7 + $0x110] sm:$0xff]
    %v2075 = vld [vmem:[#allocation7 + $0x118] sm:$0xff]
    %v2076 = vld [vmem:[#allocation7 + $0x120] sm:$0xff]
    %v2077 = vld [vmem:[#allocation7 + $0x128] sm:$0xff]
    %v2078 = vld [vmem:[#allocation7 + $0x130] sm:$0xff]
    %v2079 = vld [vmem:[#allocation7 + $0x138] sm:$0xff]
    %v2080 = vld [vmem:[#allocation7 + $0x140] sm:$0xff]
    %v2081 = vld [vmem:[#allocation7 + $0x148] sm:$0xff]
    %v2082 = vld [vmem:[#allocation7 + $0x150] sm:$0xff]
    %v2083 = vld [vmem:[#allocation7 + $0x158] sm:$0xff]
    %v2084 = vld [vmem:[#allocation7 + $0x160] sm:$0xff]
    %v2085 = vld [vmem:[#allocation7 + $0x168] sm:$0xff]
    %v2086 = vld [vmem:[#allocation7 + $0x170] sm:$0xff]
    %v2087 = vld [vmem:[#allocation7 + $0x178] sm:$0xff]
    %v2088 = vld [vmem:[#allocation7 + $0x180] sm:$0xff]
    %v2089 = vld [vmem:[#allocation7 + $0x188] sm:$0xff]
    %v2090 = vld [vmem:[#allocation7 + $0x190] sm:$0xff]
    %v2091 = vld [vmem:[#allocation7 + $0x198] sm:$0xff]
    %v2092 = vld [vmem:[#allocation7 + $0x1a0] sm:$0xff]
    %v2093 = vld [vmem:[#allocation7 + $0x1a8] sm:$0xff]
    %v2094 = vld [vmem:[#allocation7 + $0x1b0] sm:$0xff]
    %v2095 = vld [vmem:[#allocation7 + $0x1b8] sm:$0xff]
    %v2096 = vld [vmem:[#allocation7 + $0x1c0] sm:$0xff]
    %v2097 = vld [vmem:[#allocation7 + $0x1c8] sm:$0xff]
    %v2098 = vld [vmem:[#allocation7 + $0x1d0] sm:$0xff]
    %v2099 = vld [vmem:[#allocation7 + $0x1d8] sm:$0xff]
    %v2100 = vld [vmem:[#allocation7 + $0x1e0] sm:$0xff]
    %v2101 = vld [vmem:[#allocation7 + $0x1e8] sm:$0xff]
    %v2102 = vld [vmem:[#allocation7 + $0x1f0] sm:$0xff]
    %v2103 = vld [vmem:[#allocation7 + $0x1f8] sm:$0xff]
    %v2104 = vld [vmem:[#allocation7 + $0x200] sm:$0xff]
    %v2105 = vld [vmem:[#allocation7 + $0x208] sm:$0xff]
    %v2106 = vld [vmem:[#allocation7 + $0x210] sm:$0xff]
    %v2107 = vld [vmem:[#allocation7 + $0x218] sm:$0xff]
    %v2108 = vld [vmem:[#allocation7 + $0x220] sm:$0xff]
    %v2109 = vld [vmem:[#allocation7 + $0x228] sm:$0xff]
    %v2110 = vld [vmem:[#allocation7 + $0x230] sm:$0xff]
    %v2111 = vld [vmem:[#allocation7 + $0x238] sm:$0xff]
    %v2112 = vld [vmem:[#allocation7 + $0x240] sm:$0xff]
    %v2113 = vld [vmem:[#allocation7 + $0x248] sm:$0xff]
    %v2114 = vld [vmem:[#allocation7 + $0x250] sm:$0xff]
    %v2115 = vld [vmem:[#allocation7 + $0x258] sm:$0xff]
    %v2116 = vld [vmem:[#allocation7 + $0x260] sm:$0xff]
    %v2117 = vld [vmem:[#allocation7 + $0x268] sm:$0xff]
    %v2118 = vld [vmem:[#allocation7 + $0x270] sm:$0xff]
    %v2119 = vld [vmem:[#allocation7 + $0x278] sm:$0xff]
    %v2120 = vld [vmem:[#allocation7 + $0x280] sm:$0xff]
    %v2121 = vld [vmem:[#allocation7 + $0x288] sm:$0xff]
    %v2122 = vld [vmem:[#allocation7 + $0x290] sm:$0xff]
    %v2123 = vld [vmem:[#allocation7 + $0x298] sm:$0xff]
    %v2124 = vld [vmem:[#allocation7 + $0x2a0] sm:$0xff]
    %v2125 = vld [vmem:[#allocation7 + $0x2a8] sm:$0xff]
    %v2126 = vld [vmem:[#allocation7 + $0x2b0] sm:$0xff]
    %v2127 = vld [vmem:[#allocation7 + $0x2b8] sm:$0xff]
    %v2128 = vld [vmem:[#allocation7 + $0x2c0] sm:$0xff]
    %v2129 = vld [vmem:[#allocation7 + $0x2c8] sm:$0xff]
    %v2130 = vld [vmem:[#allocation7 + $0x2d0] sm:$0xff]
    %v2131 = vld [vmem:[#allocation7 + $0x2d8] sm:$0xff]
    %v2132 = vld [vmem:[#allocation7 + $0x2e0] sm:$0xff]
    %v2133 = vld [vmem:[#allocation7 + $0x2e8] sm:$0xff]
    %v2134 = vld [vmem:[#allocation7 + $0x2f0] sm:$0xff]
    %v2135 = vld [vmem:[#allocation7 + $0x2f8] sm:$0xff]
    %v2136 = vld [vmem:[#allocation7 + $0x300] sm:$0xff]
    %v2137 = vld [vmem:[#allocation7 + $0x308] sm:$0xff]
    %v2138 = vld [vmem:[#allocation7 + $0x310] sm:$0xff]
    %v2139 = vld [vmem:[#allocation7 + $0x318] sm:$0xff]
    %v2140 = vld [vmem:[#allocation7 + $0x320] sm:$0xff]
    %v2141 = vld [vmem:[#allocation7 + $0x328] sm:$0xff]
    %v2142 = vld [vmem:[#allocation7 + $0x330] sm:$0xff]
    %v2143 = vld [vmem:[#allocation7 + $0x338] sm:$0xff]
    %v2144 = vld [vmem:[#allocation7 + $0x340] sm:$0xff]
    %v2145 = vld [vmem:[#allocation7 + $0x348] sm:$0xff]
    %v2146 = vld [vmem:[#allocation7 + $0x350] sm:$0xff]
    %v2147 = vld [vmem:[#allocation7 + $0x358] sm:$0xff]
    %v2148 = vld [vmem:[#allocation7 + $0x360] sm:$0xff]
    %v2149 = vld [vmem:[#allocation7 + $0x368] sm:$0xff]
    %v2150 = vld [vmem:[#allocation7 + $0x370] sm:$0xff]
    %v2151 = vld [vmem:[#allocation7 + $0x378] sm:$0xff]
    %v2152 = vld [vmem:[#allocation7 + $0x380] sm:$0xff]
    %v2153 = vld [vmem:[#allocation7 + $0x388] sm:$0xff]
    %v2154 = vld [vmem:[#allocation7 + $0x390] sm:$0xff]
    %v2155 = vld [vmem:[#allocation7 + $0x398] sm:$0xff]
    %v2156 = vld [vmem:[#allocation7 + $0x3a0] sm:$0xff]
    %v2157 = vld [vmem:[#allocation7 + $0x3a8] sm:$0xff]
    %v2158 = vld [vmem:[#allocation7 + $0x3b0] sm:$0xff]
    %v2159 = vld [vmem:[#allocation7 + $0x3b8] sm:$0xff]
    %v2160 = vld [vmem:[#allocation7 + $0x3c0] sm:$0xff]
    %v2161 = vld [vmem:[#allocation7 + $0x3c8] sm:$0xff]
    %v2162 = vld [vmem:[#allocation7 + $0x3d0] sm:$0xff]
    %v2163 = vld [vmem:[#allocation7 + $0x3d8] sm:$0xff]
    %v2164 = vld [vmem:[#allocation7 + $0x3e0] sm:$0xff]
    %v2165 = vld [vmem:[#allocation7 + $0x3e8] sm:$0xff]
    %v2166 = vld [vmem:[#allocation7 + $0x3f0] sm:$0xff]
    %v2167 = vld [vmem:[#allocation7 + $0x3f8] sm:$0xff]
    %v2168 = vld [vmem:[%s4] sm:$0xf]
    %v2170 = vlaneseq
    %v2171 = vshrl.u32 %v2170, 7
    %v2172 = vsub.s32 0, %v2171
    %v2173 = vrot.slane %v2168, %v2172
    %v2174 = vlaneseq
    %v2175 = vshrl.u32 %v2174, 7
    %v2176 = vsub.s32 1, %v2175
    %v2177 = vrot.slane %v2168, %v2176
    %v2178 = vlaneseq
    %v2179 = vshrl.u32 %v2178, 7
    %v2180 = vsub.s32 2, %v2179
    %v2181 = vrot.slane %v2168, %v2180
    %v2182 = vlaneseq
    %v2183 = vshrl.u32 %v2182, 7
    %v2184 = vsub.s32 3, %v2183
    %v2185 = vrot.slane %v2168, %v2184
    %v2318 = vunpack.c.l.b16 %v2040
    %v2319 = vunpack.c.h.b16 %v2040
    %v2320 = vunpack.c.l.b16 %v2041
    %v2321 = vunpack.c.h.b16 %v2041
    %v2322 = vunpack.c.l.b16 %v2042
    %v2323 = vunpack.c.h.b16 %v2042
    %v2324 = vunpack.c.l.b16 %v2043
    %v2325 = vunpack.c.h.b16 %v2043
    %v2326 = vunpack.c.l.b16 %v2044
    %v2327 = vunpack.c.h.b16 %v2044
    %v2328 = vunpack.c.l.b16 %v2045
    %v2329 = vunpack.c.h.b16 %v2045
    %v2330 = vunpack.c.l.b16 %v2046
    %v2331 = vunpack.c.h.b16 %v2046
    %v2332 = vunpack.c.l.b16 %v2047
    %v2333 = vunpack.c.h.b16 %v2047
    %v2334 = vunpack.c.l.b16 %v2048
    %v2335 = vunpack.c.h.b16 %v2048
    %v2336 = vunpack.c.l.b16 %v2049
    %v2337 = vunpack.c.h.b16 %v2049
    %v2338 = vunpack.c.l.b16 %v2050
    %v2339 = vunpack.c.h.b16 %v2050
    %v2340 = vunpack.c.l.b16 %v2051
    %v2341 = vunpack.c.h.b16 %v2051
    %v2342 = vunpack.c.l.b16 %v2052
    %v2343 = vunpack.c.h.b16 %v2052
    %v2344 = vunpack.c.l.b16 %v2053
    %v2345 = vunpack.c.h.b16 %v2053
    %v2346 = vunpack.c.l.b16 %v2054
    %v2347 = vunpack.c.h.b16 %v2054
    %v2348 = vunpack.c.l.b16 %v2055
    %v2349 = vunpack.c.h.b16 %v2055
    %v2350 = vunpack.c.l.b16 %v2056
    %v2351 = vunpack.c.h.b16 %v2056
    %v2352 = vunpack.c.l.b16 %v2057
    %v2353 = vunpack.c.h.b16 %v2057
    %v2354 = vunpack.c.l.b16 %v2058
    %v2355 = vunpack.c.h.b16 %v2058
    %v2356 = vunpack.c.l.b16 %v2059
    %v2357 = vunpack.c.h.b16 %v2059
    %v2358 = vunpack.c.l.b16 %v2060
    %v2359 = vunpack.c.h.b16 %v2060
    %v2360 = vunpack.c.l.b16 %v2061
    %v2361 = vunpack.c.h.b16 %v2061
    %v2362 = vunpack.c.l.b16 %v2062
    %v2363 = vunpack.c.h.b16 %v2062
    %v2364 = vunpack.c.l.b16 %v2063
    %v2365 = vunpack.c.h.b16 %v2063
    %v2366 = vunpack.c.l.b16 %v2064
    %v2367 = vunpack.c.h.b16 %v2064
    %v2368 = vunpack.c.l.b16 %v2065
    %v2369 = vunpack.c.h.b16 %v2065
    %v2370 = vunpack.c.l.b16 %v2066
    %v2371 = vunpack.c.h.b16 %v2066
    %v2372 = vunpack.c.l.b16 %v2067
    %v2373 = vunpack.c.h.b16 %v2067
    %v2374 = vunpack.c.l.b16 %v2068
    %v2375 = vunpack.c.h.b16 %v2068
    %v2376 = vunpack.c.l.b16 %v2069
    %v2377 = vunpack.c.h.b16 %v2069
    %v2378 = vunpack.c.l.b16 %v2070
    %v2379 = vunpack.c.h.b16 %v2070
    %v2380 = vunpack.c.l.b16 %v2071
    %v2381 = vunpack.c.h.b16 %v2071
    %v2382 = vunpack.c.l.b16 %v2072
    %v2383 = vunpack.c.h.b16 %v2072
    %v2384 = vunpack.c.l.b16 %v2073
    %v2385 = vunpack.c.h.b16 %v2073
    %v2386 = vunpack.c.l.b16 %v2074
    %v2387 = vunpack.c.h.b16 %v2074
    %v2388 = vunpack.c.l.b16 %v2075
    %v2389 = vunpack.c.h.b16 %v2075
    %v2390 = vunpack.c.l.b16 %v2076
    %v2391 = vunpack.c.h.b16 %v2076
    %v2392 = vunpack.c.l.b16 %v2077
    %v2393 = vunpack.c.h.b16 %v2077
    %v2394 = vunpack.c.l.b16 %v2078
    %v2395 = vunpack.c.h.b16 %v2078
    %v2396 = vunpack.c.l.b16 %v2079
    %v2397 = vunpack.c.h.b16 %v2079
    %v2398 = vunpack.c.l.b16 %v2080
    %v2399 = vunpack.c.h.b16 %v2080
    %v2400 = vunpack.c.l.b16 %v2081
    %v2401 = vunpack.c.h.b16 %v2081
    %v2402 = vunpack.c.l.b16 %v2082
    %v2403 = vunpack.c.h.b16 %v2082
    %v2404 = vunpack.c.l.b16 %v2083
    %v2405 = vunpack.c.h.b16 %v2083
    %v2406 = vunpack.c.l.b16 %v2084
    %v2407 = vunpack.c.h.b16 %v2084
    %v2408 = vunpack.c.l.b16 %v2085
    %v2409 = vunpack.c.h.b16 %v2085
    %v2410 = vunpack.c.l.b16 %v2086
    %v2411 = vunpack.c.h.b16 %v2086
    %v2412 = vunpack.c.l.b16 %v2087
    %v2413 = vunpack.c.h.b16 %v2087
    %v2414 = vunpack.c.l.b16 %v2088
    %v2415 = vunpack.c.h.b16 %v2088
    %v2416 = vunpack.c.l.b16 %v2089
    %v2417 = vunpack.c.h.b16 %v2089
    %v2418 = vunpack.c.l.b16 %v2090
    %v2419 = vunpack.c.h.b16 %v2090
    %v2420 = vunpack.c.l.b16 %v2091
    %v2421 = vunpack.c.h.b16 %v2091
    %v2422 = vunpack.c.l.b16 %v2092
    %v2423 = vunpack.c.h.b16 %v2092
    %v2424 = vunpack.c.l.b16 %v2093
    %v2425 = vunpack.c.h.b16 %v2093
    %v2426 = vunpack.c.l.b16 %v2094
    %v2427 = vunpack.c.h.b16 %v2094
    %v2428 = vunpack.c.l.b16 %v2095
    %v2429 = vunpack.c.h.b16 %v2095
    %v2430 = vunpack.c.l.b16 %v2096
    %v2431 = vunpack.c.h.b16 %v2096
    %v2432 = vunpack.c.l.b16 %v2097
    %v2433 = vunpack.c.h.b16 %v2097
    %v2434 = vunpack.c.l.b16 %v2098
    %v2435 = vunpack.c.h.b16 %v2098
    %v2436 = vunpack.c.l.b16 %v2099
    %v2437 = vunpack.c.h.b16 %v2099
    %v2438 = vunpack.c.l.b16 %v2100
    %v2439 = vunpack.c.h.b16 %v2100
    %v2440 = vunpack.c.l.b16 %v2101
    %v2441 = vunpack.c.h.b16 %v2101
    %v2442 = vunpack.c.l.b16 %v2102
    %v2443 = vunpack.c.h.b16 %v2102
    %v2444 = vunpack.c.l.b16 %v2103
    %v2445 = vunpack.c.h.b16 %v2103
    %v2446 = vunpack.c.l.b16 %v2104
    %v2447 = vunpack.c.h.b16 %v2104
    %v2448 = vunpack.c.l.b16 %v2105
    %v2449 = vunpack.c.h.b16 %v2105
    %v2450 = vunpack.c.l.b16 %v2106
    %v2451 = vunpack.c.h.b16 %v2106
    %v2452 = vunpack.c.l.b16 %v2107
    %v2453 = vunpack.c.h.b16 %v2107
    %v2454 = vunpack.c.l.b16 %v2108
    %v2455 = vunpack.c.h.b16 %v2108
    %v2456 = vunpack.c.l.b16 %v2109
    %v2457 = vunpack.c.h.b16 %v2109
    %v2458 = vunpack.c.l.b16 %v2110
    %v2459 = vunpack.c.h.b16 %v2110
    %v2460 = vunpack.c.l.b16 %v2111
    %v2461 = vunpack.c.h.b16 %v2111
    %v2462 = vunpack.c.l.b16 %v2112
    %v2463 = vunpack.c.h.b16 %v2112
    %v2464 = vunpack.c.l.b16 %v2113
    %v2465 = vunpack.c.h.b16 %v2113
    %v2466 = vunpack.c.l.b16 %v2114
    %v2467 = vunpack.c.h.b16 %v2114
    %v2468 = vunpack.c.l.b16 %v2115
    %v2469 = vunpack.c.h.b16 %v2115
    %v2470 = vunpack.c.l.b16 %v2116
    %v2471 = vunpack.c.h.b16 %v2116
    %v2472 = vunpack.c.l.b16 %v2117
    %v2473 = vunpack.c.h.b16 %v2117
    %v2474 = vunpack.c.l.b16 %v2118
    %v2475 = vunpack.c.h.b16 %v2118
    %v2476 = vunpack.c.l.b16 %v2119
    %v2477 = vunpack.c.h.b16 %v2119
    %v2478 = vunpack.c.l.b16 %v2120
    %v2479 = vunpack.c.h.b16 %v2120
    %v2480 = vunpack.c.l.b16 %v2121
    %v2481 = vunpack.c.h.b16 %v2121
    %v2482 = vunpack.c.l.b16 %v2122
    %v2483 = vunpack.c.h.b16 %v2122
    %v2484 = vunpack.c.l.b16 %v2123
    %v2485 = vunpack.c.h.b16 %v2123
    %v2486 = vunpack.c.l.b16 %v2124
    %v2487 = vunpack.c.h.b16 %v2124
    %v2488 = vunpack.c.l.b16 %v2125
    %v2489 = vunpack.c.h.b16 %v2125
    %v2490 = vunpack.c.l.b16 %v2126
    %v2491 = vunpack.c.h.b16 %v2126
    %v2492 = vunpack.c.l.b16 %v2127
    %v2493 = vunpack.c.h.b16 %v2127
    %v2494 = vunpack.c.l.b16 %v2128
    %v2495 = vunpack.c.h.b16 %v2128
    %v2496 = vunpack.c.l.b16 %v2129
    %v2497 = vunpack.c.h.b16 %v2129
    %v2498 = vunpack.c.l.b16 %v2130
    %v2499 = vunpack.c.h.b16 %v2130
    %v2500 = vunpack.c.l.b16 %v2131
    %v2501 = vunpack.c.h.b16 %v2131
    %v2502 = vunpack.c.l.b16 %v2132
    %v2503 = vunpack.c.h.b16 %v2132
    %v2504 = vunpack.c.l.b16 %v2133
    %v2505 = vunpack.c.h.b16 %v2133
    %v2506 = vunpack.c.l.b16 %v2134
    %v2507 = vunpack.c.h.b16 %v2134
    %v2508 = vunpack.c.l.b16 %v2135
    %v2509 = vunpack.c.h.b16 %v2135
    %v2510 = vunpack.c.l.b16 %v2136
    %v2511 = vunpack.c.h.b16 %v2136
    %v2512 = vunpack.c.l.b16 %v2137
    %v2513 = vunpack.c.h.b16 %v2137
    %v2514 = vunpack.c.l.b16 %v2138
    %v2515 = vunpack.c.h.b16 %v2138
    %v2516 = vunpack.c.l.b16 %v2139
    %v2517 = vunpack.c.h.b16 %v2139
    %v2518 = vunpack.c.l.b16 %v2140
    %v2519 = vunpack.c.h.b16 %v2140
    %v2520 = vunpack.c.l.b16 %v2141
    %v2521 = vunpack.c.h.b16 %v2141
    %v2522 = vunpack.c.l.b16 %v2142
    %v2523 = vunpack.c.h.b16 %v2142
    %v2524 = vunpack.c.l.b16 %v2143
    %v2525 = vunpack.c.h.b16 %v2143
    %v2526 = vunpack.c.l.b16 %v2144
    %v2527 = vunpack.c.h.b16 %v2144
    %v2528 = vunpack.c.l.b16 %v2145
    %v2529 = vunpack.c.h.b16 %v2145
    %v2530 = vunpack.c.l.b16 %v2146
    %v2531 = vunpack.c.h.b16 %v2146
    %v2532 = vunpack.c.l.b16 %v2147
    %v2533 = vunpack.c.h.b16 %v2147
    %v2534 = vunpack.c.l.b16 %v2148
    %v2535 = vunpack.c.h.b16 %v2148
    %v2536 = vunpack.c.l.b16 %v2149
    %v2537 = vunpack.c.h.b16 %v2149
    %v2538 = vunpack.c.l.b16 %v2150
    %v2539 = vunpack.c.h.b16 %v2150
    %v2540 = vunpack.c.l.b16 %v2151
    %v2541 = vunpack.c.h.b16 %v2151
    %v2542 = vunpack.c.l.b16 %v2152
    %v2543 = vunpack.c.h.b16 %v2152
    %v2544 = vunpack.c.l.b16 %v2153
    %v2545 = vunpack.c.h.b16 %v2153
    %v2546 = vunpack.c.l.b16 %v2154
    %v2547 = vunpack.c.h.b16 %v2154
    %v2548 = vunpack.c.l.b16 %v2155
    %v2549 = vunpack.c.h.b16 %v2155
    %v2550 = vunpack.c.l.b16 %v2156
    %v2551 = vunpack.c.h.b16 %v2156
    %v2552 = vunpack.c.l.b16 %v2157
    %v2553 = vunpack.c.h.b16 %v2157
    %v2554 = vunpack.c.l.b16 %v2158
    %v2555 = vunpack.c.h.b16 %v2158
    %v2556 = vunpack.c.l.b16 %v2159
    %v2557 = vunpack.c.h.b16 %v2159
    %v2558 = vunpack.c.l.b16 %v2160
    %v2559 = vunpack.c.h.b16 %v2160
    %v2560 = vunpack.c.l.b16 %v2161
    %v2561 = vunpack.c.h.b16 %v2161
    %v2562 = vunpack.c.l.b16 %v2162
    %v2563 = vunpack.c.h.b16 %v2162
    %v2564 = vunpack.c.l.b16 %v2163
    %v2565 = vunpack.c.h.b16 %v2163
    %v2566 = vunpack.c.l.b16 %v2164
    %v2567 = vunpack.c.h.b16 %v2164
    %v2568 = vunpack.c.l.b16 %v2165
    %v2569 = vunpack.c.h.b16 %v2165
    %v2570 = vunpack.c.l.b16 %v2166
    %v2571 = vunpack.c.h.b16 %v2166
    %v2572 = vunpack.c.l.b16 %v2167
    %v2573 = vunpack.c.h.b16 %v2167
    %v2574 = vpack.c.b16 %v2322, %v2318
    %v2575 = vpack.c.b16 %v2323, %v2319
    %v2576 = vpack.c.b16 %v2324, %v2320
    %v2577 = vpack.c.b16 %v2325, %v2321
    %v2578 = vpack.c.b16 %v2330, %v2326
    %v2579 = vpack.c.b16 %v2331, %v2327
    %v2580 = vpack.c.b16 %v2332, %v2328
    %v2581 = vpack.c.b16 %v2333, %v2329
    %v2582 = vpack.c.b16 %v2338, %v2334
    %v2583 = vpack.c.b16 %v2339, %v2335
    %v2584 = vpack.c.b16 %v2340, %v2336
    %v2585 = vpack.c.b16 %v2341, %v2337
    %v2586 = vpack.c.b16 %v2346, %v2342
    %v2587 = vpack.c.b16 %v2347, %v2343
    %v2588 = vpack.c.b16 %v2348, %v2344
    %v2589 = vpack.c.b16 %v2349, %v2345
    %v2590 = vpack.c.b16 %v2354, %v2350
    %v2591 = vpack.c.b16 %v2355, %v2351
    %v2592 = vpack.c.b16 %v2356, %v2352
    %v2593 = vpack.c.b16 %v2357, %v2353
    %v2594 = vpack.c.b16 %v2362, %v2358
    %v2595 = vpack.c.b16 %v2363, %v2359
    %v2596 = vpack.c.b16 %v2364, %v2360
    %v2597 = vpack.c.b16 %v2365, %v2361
    %v2598 = vpack.c.b16 %v2370, %v2366
    %v2599 = vpack.c.b16 %v2371, %v2367
    %v2600 = vpack.c.b16 %v2372, %v2368
    %v2601 = vpack.c.b16 %v2373, %v2369
    %v2602 = vpack.c.b16 %v2378, %v2374
    %v2603 = vpack.c.b16 %v2379, %v2375
    %v2604 = vpack.c.b16 %v2380, %v2376
    %v2605 = vpack.c.b16 %v2381, %v2377
    %v2606 = vpack.c.b16 %v2386, %v2382
    %v2607 = vpack.c.b16 %v2387, %v2383
    %v2608 = vpack.c.b16 %v2388, %v2384
    %v2609 = vpack.c.b16 %v2389, %v2385
    %v2610 = vpack.c.b16 %v2394, %v2390
    %v2611 = vpack.c.b16 %v2395, %v2391
    %v2612 = vpack.c.b16 %v2396, %v2392
    %v2613 = vpack.c.b16 %v2397, %v2393
    %v2614 = vpack.c.b16 %v2402, %v2398
    %v2615 = vpack.c.b16 %v2403, %v2399
    %v2616 = vpack.c.b16 %v2404, %v2400
    %v2617 = vpack.c.b16 %v2405, %v2401
    %v2618 = vpack.c.b16 %v2410, %v2406
    %v2619 = vpack.c.b16 %v2411, %v2407
    %v2620 = vpack.c.b16 %v2412, %v2408
    %v2621 = vpack.c.b16 %v2413, %v2409
    %v2622 = vpack.c.b16 %v2418, %v2414
    %v2623 = vpack.c.b16 %v2419, %v2415
    %v2624 = vpack.c.b16 %v2420, %v2416
    %v2625 = vpack.c.b16 %v2421, %v2417
    %v2626 = vpack.c.b16 %v2426, %v2422
    %v2627 = vpack.c.b16 %v2427, %v2423
    %v2628 = vpack.c.b16 %v2428, %v2424
    %v2629 = vpack.c.b16 %v2429, %v2425
    %v2630 = vpack.c.b16 %v2434, %v2430
    %v2631 = vpack.c.b16 %v2435, %v2431
    %v2632 = vpack.c.b16 %v2436, %v2432
    %v2633 = vpack.c.b16 %v2437, %v2433
    %v2634 = vpack.c.b16 %v2442, %v2438
    %v2635 = vpack.c.b16 %v2443, %v2439
    %v2636 = vpack.c.b16 %v2444, %v2440
    %v2637 = vpack.c.b16 %v2445, %v2441
    %v2638 = vpack.c.b16 %v2450, %v2446
    %v2639 = vpack.c.b16 %v2451, %v2447
    %v2640 = vpack.c.b16 %v2452, %v2448
    %v2641 = vpack.c.b16 %v2453, %v2449
    %v2642 = vpack.c.b16 %v2458, %v2454
    %v2643 = vpack.c.b16 %v2459, %v2455
    %v2644 = vpack.c.b16 %v2460, %v2456
    %v2645 = vpack.c.b16 %v2461, %v2457
    %v2646 = vpack.c.b16 %v2466, %v2462
    %v2647 = vpack.c.b16 %v2467, %v2463
    %v2648 = vpack.c.b16 %v2468, %v2464
    %v2649 = vpack.c.b16 %v2469, %v2465
    %v2650 = vpack.c.b16 %v2474, %v2470
    %v2651 = vpack.c.b16 %v2475, %v2471
    %v2652 = vpack.c.b16 %v2476, %v2472
    %v2653 = vpack.c.b16 %v2477, %v2473
    %v2654 = vpack.c.b16 %v2482, %v2478
    %v2655 = vpack.c.b16 %v2483, %v2479
    %v2656 = vpack.c.b16 %v2484, %v2480
    %v2657 = vpack.c.b16 %v2485, %v2481
    %v2658 = vpack.c.b16 %v2490, %v2486
    %v2659 = vpack.c.b16 %v2491, %v2487
    %v2660 = vpack.c.b16 %v2492, %v2488
    %v2661 = vpack.c.b16 %v2493, %v2489
    %v2662 = vpack.c.b16 %v2498, %v2494
    %v2663 = vpack.c.b16 %v2499, %v2495
    %v2664 = vpack.c.b16 %v2500, %v2496
    %v2665 = vpack.c.b16 %v2501, %v2497
    %v2666 = vpack.c.b16 %v2506, %v2502
    %v2667 = vpack.c.b16 %v2507, %v2503
    %v2668 = vpack.c.b16 %v2508, %v2504
    %v2669 = vpack.c.b16 %v2509, %v2505
    %v2670 = vpack.c.b16 %v2514, %v2510
    %v2671 = vpack.c.b16 %v2515, %v2511
    %v2672 = vpack.c.b16 %v2516, %v2512
    %v2673 = vpack.c.b16 %v2517, %v2513
    %v2674 = vpack.c.b16 %v2522, %v2518
    %v2675 = vpack.c.b16 %v2523, %v2519
    %v2676 = vpack.c.b16 %v2524, %v2520
    %v2677 = vpack.c.b16 %v2525, %v2521
    %v2678 = vpack.c.b16 %v2530, %v2526
    %v2679 = vpack.c.b16 %v2531, %v2527
    %v2680 = vpack.c.b16 %v2532, %v2528
    %v2681 = vpack.c.b16 %v2533, %v2529
    %v2682 = vpack.c.b16 %v2538, %v2534
    %v2683 = vpack.c.b16 %v2539, %v2535
    %v2684 = vpack.c.b16 %v2540, %v2536
    %v2685 = vpack.c.b16 %v2541, %v2537
    %v2686 = vpack.c.b16 %v2546, %v2542
    %v2687 = vpack.c.b16 %v2547, %v2543
    %v2688 = vpack.c.b16 %v2548, %v2544
    %v2689 = vpack.c.b16 %v2549, %v2545
    %v2690 = vpack.c.b16 %v2554, %v2550
    %v2691 = vpack.c.b16 %v2555, %v2551
    %v2692 = vpack.c.b16 %v2556, %v2552
    %v2693 = vpack.c.b16 %v2557, %v2553
    %v2694 = vpack.c.b16 %v2562, %v2558
    %v2695 = vpack.c.b16 %v2563, %v2559
    %v2696 = vpack.c.b16 %v2564, %v2560
    %v2697 = vpack.c.b16 %v2565, %v2561
    %v2698 = vpack.c.b16 %v2570, %v2566
    %v2699 = vpack.c.b16 %v2571, %v2567
    %v2700 = vpack.c.b16 %v2572, %v2568
    %v2701 = vpack.c.b16 %v2573, %v2569
    %2830 = vmatprep.subr.bf16.mxu0 %v2575
    %2831 = vmatpush1.bf16.msra.mxu0 %v2574
    %2832 = vmatprep.subr.bf16.mxu0 %v2579
    %2833 = vmatpush1.bf16.msra.mxu0 %v2578
    %2834 = vmatprep.subr.bf16.mxu0 %v2583
    %2835 = vmatpush1.bf16.msra.mxu0 %v2582
    %2836 = vmatprep.subr.bf16.mxu0 %v2587
    %2837 = vmatpush1.bf16.msra.mxu0 %v2586
    %2838 = vmatprep.subr.bf16.mxu0 %v2591
    %2839 = vmatpush1.bf16.msra.mxu0 %v2590
    %2840 = vmatprep.subr.bf16.mxu0 %v2595
    %2841 = vmatpush1.bf16.msra.mxu0 %v2594
    %2842 = vmatprep.subr.bf16.mxu0 %v2599
    %2843 = vmatpush1.bf16.msra.mxu0 %v2598
    %2844 = vmatprep.subr.bf16.mxu0 %v2603
    %2845 = vmatpush1.bf16.msra.mxu0 %v2602
    %2846 = vmatprep.subr.bf16.mxu0 %v2607
    %2847 = vmatpush1.bf16.msra.mxu0 %v2606
    %2848 = vmatprep.subr.bf16.mxu0 %v2611
    %2849 = vmatpush1.bf16.msra.mxu0 %v2610
    %2850 = vmatprep.subr.bf16.mxu0 %v2615
    %2851 = vmatpush1.bf16.msra.mxu0 %v2614
    %2852 = vmatprep.subr.bf16.mxu0 %v2619
    %2853 = vmatpush1.bf16.msra.mxu0 %v2618
    %2854 = vmatprep.subr.bf16.mxu0 %v2623
    %2855 = vmatpush1.bf16.msra.mxu0 %v2622
    %2856 = vmatprep.subr.bf16.mxu0 %v2627
    %2857 = vmatpush1.bf16.msra.mxu0 %v2626
    %2858 = vmatprep.subr.bf16.mxu0 %v2631
    %2859 = vmatpush1.bf16.msra.mxu0 %v2630
    %2860 = vmatprep.subr.bf16.mxu0 %v2635
    %2861 = vmatpush1.bf16.msra.mxu0 %v2634
    %2862 = vmatprep.mubr.bf16.mxu0 %v2013
    %2863 = vmatmul.mubr.bf16.gmra.mrb[0].mxu0 %v2012
    %v2864 = vpop.f32.mrb[0].mxu0
    %v2865 = vadd.f32 %v2173, %v2864
    %v2866 = vpop.f32.mrb[0].mxu0
    %v2867 = vadd.f32 %v2177, %v2866
    %v2868 = vpop.f32.mrb[0].mxu0
    %v2869 = vadd.f32 %v2173, %v2868
    %v2870 = vpop.f32.mrb[0].mxu0
    %v2871 = vadd.f32 %v2177, %v2870
    %2872 = vdwg.mxu0
    %2873 = vmatprep.subr.bf16.mxu0 %v2639
    %2874 = vmatpush1.bf16.msra.mxu0 %v2638
    %2875 = vmatprep.subr.bf16.mxu0 %v2643
    %2876 = vmatpush1.bf16.msra.mxu0 %v2642
    %2877 = vmatprep.subr.bf16.mxu0 %v2647
    %2878 = vmatpush1.bf16.msra.mxu0 %v2646
    %2879 = vmatprep.subr.bf16.mxu0 %v2651
    %2880 = vmatpush1.bf16.msra.mxu0 %v2650
    %2881 = vmatprep.subr.bf16.mxu0 %v2655
    %2882 = vmatpush1.bf16.msra.mxu0 %v2654
    %2883 = vmatprep.subr.bf16.mxu0 %v2659
    %2884 = vmatpush1.bf16.msra.mxu0 %v2658
    %2885 = vmatprep.subr.bf16.mxu0 %v2663
    %2886 = vmatpush1.bf16.msra.mxu0 %v2662
    %2887 = vmatprep.subr.bf16.mxu0 %v2667
    %2888 = vmatpush1.bf16.msra.mxu0 %v2666
    %2889 = vmatprep.subr.bf16.mxu0 %v2671
    %2890 = vmatpush1.bf16.msra.mxu0 %v2670
    %2891 = vmatprep.subr.bf16.mxu0 %v2675
    %2892 = vmatpush1.bf16.msra.mxu0 %v2674
    %2893 = vmatprep.subr.bf16.mxu0 %v2679
    %2894 = vmatpush1.bf16.msra.mxu0 %v2678
    %2895 = vmatprep.subr.bf16.mxu0 %v2683
    %2896 = vmatpush1.bf16.msra.mxu0 %v2682
    %2897 = vmatprep.subr.bf16.mxu0 %v2687
    %2898 = vmatpush1.bf16.msra.mxu0 %v2686
    %2899 = vmatprep.subr.bf16.mxu0 %v2691
    %2900 = vmatpush1.bf16.msra.mxu0 %v2690
    %2901 = vmatprep.subr.bf16.mxu0 %v2695
    %2902 = vmatpush1.bf16.msra.mxu0 %v2694
    %2903 = vmatprep.subr.bf16.mxu0 %v2699
    %2904 = vmatpush1.bf16.msra.mxu0 %v2698
    %2905 = vmatprep.mubr.bf16.mxu0 %v2015
    %2906 = vmatmul.mubr.bf16.gmra.mrb[0].mxu0 %v2014
    %v2907 = vpop.f32.mrb[0].mxu0
    %v2908 = vadd.f32 %v2865, %v2907
    %v2909 = vpop.f32.mrb[0].mxu0
    %v2910 = vadd.f32 %v2867, %v2909
    %v2911 = vpop.f32.mrb[0].mxu0
    %v2912 = vadd.f32 %v2869, %v2911
    %v2913 = vpop.f32.mrb[0].mxu0
    %v2914 = vadd.f32 %v2871, %v2913
    %2915 = vdwg.mxu0
    %2916 = vmatprep.subr.bf16.mxu0 %v2577
    %2917 = vmatpush1.bf16.msra.mxu0 %v2576
    %2918 = vmatprep.subr.bf16.mxu0 %v2581
    %2919 = vmatpush1.bf16.msra.mxu0 %v2580
    %2920 = vmatprep.subr.bf16.mxu0 %v2585
    %2921 = vmatpush1.bf16.msra.mxu0 %v2584
    %2922 = vmatprep.subr.bf16.mxu0 %v2589
    %2923 = vmatpush1.bf16.msra.mxu0 %v2588
    %2924 = vmatprep.subr.bf16.mxu0 %v2593
    %2925 = vmatpush1.bf16.msra.mxu0 %v2592
    %2926 = vmatprep.subr.bf16.mxu0 %v2597
    %2927 = vmatpush1.bf16.msra.mxu0 %v2596
    %2928 = vmatprep.subr.bf16.mxu0 %v2601
    %2929 = vmatpush1.bf16.msra.mxu0 %v2600
    %2930 = vmatprep.subr.bf16.mxu0 %v2605
    %2931 = vmatpush1.bf16.msra.mxu0 %v2604
    %2932 = vmatprep.subr.bf16.mxu0 %v2609
    %2933 = vmatpush1.bf16.msra.mxu0 %v2608
    %2934 = vmatprep.subr.bf16.mxu0 %v2613
    %2935 = vmatpush1.bf16.msra.mxu0 %v2612
    %2936 = vmatprep.subr.bf16.mxu0 %v2617
    %2937 = vmatpush1.bf16.msra.mxu0 %v2616
    %2938 = vmatprep.subr.bf16.mxu0 %v2621
    %2939 = vmatpush1.bf16.msra.mxu0 %v2620
    %2940 = vmatprep.subr.bf16.mxu0 %v2625
    %2941 = vmatpush1.bf16.msra.mxu0 %v2624
    %2942 = vmatprep.subr.bf16.mxu0 %v2629
    %2943 = vmatpush1.bf16.msra.mxu0 %v2628
    %2944 = vmatprep.subr.bf16.mxu0 %v2633
    %2945 = vmatpush1.bf16.msra.mxu0 %v2632
    %2946 = vmatprep.subr.bf16.mxu0 %v2637
    %2947 = vmatpush1.bf16.msra.mxu0 %v2636
    %2948 = vmatprep.mubr.bf16.mxu0 %v2013
    %2949 = vmatmul.mubr.bf16.gmra.mrb[0].mxu0 %v2012
    %v2950 = vpop.f32.mrb[0].mxu0
    %v2951 = vadd.f32 %v2181, %v2950
    %v2952 = vpop.f32.mrb[0].mxu0
    %v2953 = vadd.f32 %v2185, %v2952
    %v2954 = vpop.f32.mrb[0].mxu0
    %v2955 = vadd.f32 %v2181, %v2954
    %v2956 = vpop.f32.mrb[0].mxu0
    %v2957 = vadd.f32 %v2185, %v2956
    %2958 = vdwg.mxu0
    %2959 = vmatprep.subr.bf16.mxu0 %v2641
    %2960 = vmatpush1.bf16.msra.mxu0 %v2640
    %2961 = vmatprep.subr.bf16.mxu0 %v2645
    %2962 = vmatpush1.bf16.msra.mxu0 %v2644
    %2963 = vmatprep.subr.bf16.mxu0 %v2649
    %2964 = vmatpush1.bf16.msra.mxu0 %v2648
    %2965 = vmatprep.subr.bf16.mxu0 %v2653
    %2966 = vmatpush1.bf16.msra.mxu0 %v2652
    %2967 = vmatprep.subr.bf16.mxu0 %v2657
    %2968 = vmatpush1.bf16.msra.mxu0 %v2656
    %2969 = vmatprep.subr.bf16.mxu0 %v2661
    %2970 = vmatpush1.bf16.msra.mxu0 %v2660
    %2971 = vmatprep.subr.bf16.mxu0 %v2665
    %2972 = vmatpush1.bf16.msra.mxu0 %v2664
    %2973 = vmatprep.subr.bf16.mxu0 %v2669
    %2974 = vmatpush1.bf16.msra.mxu0 %v2668
    %2975 = vmatprep.subr.bf16.mxu0 %v2673
    %2976 = vmatpush1.bf16.msra.mxu0 %v2672
    %2977 = vmatprep.subr.bf16.mxu0 %v2677
    %2978 = vmatpush1.bf16.msra.mxu0 %v2676
    %2979 = vmatprep.subr.bf16.mxu0 %v2681
    %2980 = vmatpush1.bf16.msra.mxu0 %v2680
    %2981 = vmatprep.subr.bf16.mxu0 %v2685
    %2982 = vmatpush1.bf16.msra.mxu0 %v2684
    %2983 = vmatprep.subr.bf16.mxu0 %v2689
    %2984 = vmatpush1.bf16.msra.mxu0 %v2688
    %2985 = vmatprep.subr.bf16.mxu0 %v2693
    %2986 = vmatpush1.bf16.msra.mxu0 %v2692
    %2987 = vmatprep.subr.bf16.mxu0 %v2697
    %2988 = vmatpush1.bf16.msra.mxu0 %v2696
    %2989 = vmatprep.subr.bf16.mxu0 %v2701
    %2990 = vmatpush1.bf16.msra.mxu0 %v2700
    %2991 = vmatprep.mubr.bf16.mxu0 %v2015
    %2992 = vmatmul.mubr.bf16.gmra.mrb[0].mxu0 %v2014
    %v2993 = vpop.f32.mrb[0].mxu0
    %v2994 = vadd.f32 %v2951, %v2993
    %v2995 = vpop.f32.mrb[0].mxu0
    %v2996 = vadd.f32 %v2953, %v2995
    %v2997 = vpop.f32.mrb[0].mxu0
    %v2998 = vadd.f32 %v2955, %v2997
    %v2999 = vpop.f32.mrb[0].mxu0
    %v3000 = vadd.f32 %v2957, %v2999
    %3001 = vdwg.mxu0
    %v3002 = vmax.f32 %v2908, 0.0
    %v3003 = vmax.f32 %v2910, 0.0
    %v3004 = vmax.f32 %v2994, 0.0
    %v3005 = vmax.f32 %v2996, 0.0
    %v3006 = vmax.f32 %v2912, 0.0
    %v3007 = vmax.f32 %v2914, 0.0
    %v3008 = vmax.f32 %v2998, 0.0
    %v3009 = vmax.f32 %v3000, 0.0
    %v3010 = vpack.c.bf16 %v3006, %v3002
    %v3011 = vpack.c.bf16 %v3007, %v3003
    %v3012 = vpack.c.bf16 %v3008, %v3004
    %v3013 = vpack.c.bf16 %v3009, %v3005
    %v3014 = vld [vmem:[#allocation8] sm:$0xf]
    %v3015 = vld [vmem:[#allocation8 + $0x4] sm:$0xf]
    %v3016 = vld [vmem:[#allocation8 + $0x8] sm:$0xf]
    %v3017 = vld [vmem:[#allocation8 + $0xc] sm:$0xf]
    %v3018 = vld [vmem:[#allocation8 + $0x10] sm:$0xf]
    %v3019 = vld [vmem:[#allocation8 + $0x14] sm:$0xf]
    %v3020 = vld [vmem:[#allocation8 + $0x18] sm:$0xf]
    %v3021 = vld [vmem:[#allocation8 + $0x1c] sm:$0xf]
    %v3022 = vld [vmem:[#allocation8 + $0x20] sm:$0xf]
    %v3023 = vld [vmem:[#allocation8 + $0x24] sm:$0xf]
    %v3024 = vld [vmem:[#allocation8 + $0x28] sm:$0xf]
    %v3025 = vld [vmem:[#allocation8 + $0x2c] sm:$0xf]
    %v3026 = vld [vmem:[#allocation8 + $0x30] sm:$0xf]
    %v3027 = vld [vmem:[#allocation8 + $0x34] sm:$0xf]
    %v3028 = vld [vmem:[#allocation8 + $0x38] sm:$0xf]
    %v3029 = vld [vmem:[#allocation8 + $0x3c] sm:$0xf]
    %v3030 = vld [vmem:[#allocation8 + $0x40] sm:$0xf]
    %v3031 = vld [vmem:[#allocation8 + $0x44] sm:$0xf]
    %v3032 = vld [vmem:[#allocation8 + $0x48] sm:$0xf]
    %v3033 = vld [vmem:[#allocation8 + $0x4c] sm:$0xf]
    %v3034 = vld [vmem:[#allocation8 + $0x50] sm:$0xf]
    %v3035 = vld [vmem:[#allocation8 + $0x54] sm:$0xf]
    %v3036 = vld [vmem:[#allocation8 + $0x58] sm:$0xf]
    %v3037 = vld [vmem:[#allocation8 + $0x5c] sm:$0xf]
    %v3038 = vld [vmem:[#allocation8 + $0x60] sm:$0xf]
    %v3039 = vld [vmem:[#allocation8 + $0x64] sm:$0xf]
    %v3040 = vld [vmem:[#allocation8 + $0x68] sm:$0xf]
    %v3041 = vld [vmem:[#allocation8 + $0x6c] sm:$0xf]
    %v3042 = vld [vmem:[#allocation8 + $0x70] sm:$0xf]
    %v3043 = vld [vmem:[#allocation8 + $0x74] sm:$0xf]
    %v3044 = vld [vmem:[#allocation8 + $0x78] sm:$0xf]
    %v3045 = vld [vmem:[#allocation8 + $0x7c] sm:$0xf]
    %v3046 = vld [vmem:[#allocation8 + $0x80] sm:$0xf]
    %v3047 = vld [vmem:[#allocation8 + $0x84] sm:$0xf]
    %v3048 = vld [vmem:[#allocation8 + $0x88] sm:$0xf]
    %v3049 = vld [vmem:[#allocation8 + $0x8c] sm:$0xf]
    %v3050 = vld [vmem:[#allocation8 + $0x90] sm:$0xf]
    %v3051 = vld [vmem:[#allocation8 + $0x94] sm:$0xf]
    %v3052 = vld [vmem:[#allocation8 + $0x98] sm:$0xf]
    %v3053 = vld [vmem:[#allocation8 + $0x9c] sm:$0xf]
    %v3054 = vld [vmem:[#allocation8 + $0xa0] sm:$0xf]
    %v3055 = vld [vmem:[#allocation8 + $0xa4] sm:$0xf]
    %v3056 = vld [vmem:[#allocation8 + $0xa8] sm:$0xf]
    %v3057 = vld [vmem:[#allocation8 + $0xac] sm:$0xf]
    %v3058 = vld [vmem:[#allocation8 + $0xb0] sm:$0xf]
    %v3059 = vld [vmem:[#allocation8 + $0xb4] sm:$0xf]
    %v3060 = vld [vmem:[#allocation8 + $0xb8] sm:$0xf]
    %v3061 = vld [vmem:[#allocation8 + $0xbc] sm:$0xf]
    %v3062 = vld [vmem:[#allocation8 + $0xc0] sm:$0xf]
    %v3063 = vld [vmem:[#allocation8 + $0xc4] sm:$0xf]
    %v3064 = vld [vmem:[#allocation8 + $0xc8] sm:$0xf]
    %v3065 = vld [vmem:[#allocation8 + $0xcc] sm:$0xf]
    %v3066 = vld [vmem:[#allocation8 + $0xd0] sm:$0xf]
    %v3067 = vld [vmem:[#allocation8 + $0xd4] sm:$0xf]
    %v3068 = vld [vmem:[#allocation8 + $0xd8] sm:$0xf]
    %v3069 = vld [vmem:[#allocation8 + $0xdc] sm:$0xf]
    %v3070 = vld [vmem:[#allocation8 + $0xe0] sm:$0xf]
    %v3071 = vld [vmem:[#allocation8 + $0xe4] sm:$0xf]
    %v3072 = vld [vmem:[#allocation8 + $0xe8] sm:$0xf]
    %v3073 = vld [vmem:[#allocation8 + $0xec] sm:$0xf]
    %v3074 = vld [vmem:[#allocation8 + $0xf0] sm:$0xf]
    %v3075 = vld [vmem:[#allocation8 + $0xf4] sm:$0xf]
    %v3076 = vld [vmem:[#allocation8 + $0xf8] sm:$0xf]
    %v3077 = vld [vmem:[#allocation8 + $0xfc] sm:$0xf]
    %v3078 = vld [vmem:[%s6] sm:$0x1]
    %v3080 = vlaneseq
    %v3081 = vshrl.u32 %v3080, 7
    %v3082 = vsub.s32 0, %v3081
    %v3083 = vrot.slane %v3078, %v3082
    %v3149 = vunpack.c.l.b16 %v3014
    %v3150 = vunpack.c.l.b16 %v3015
    %v3151 = vunpack.c.l.b16 %v3016
    %v3152 = vunpack.c.l.b16 %v3017
    %v3153 = vunpack.c.l.b16 %v3018
    %v3154 = vunpack.c.l.b16 %v3019
    %v3155 = vunpack.c.l.b16 %v3020
    %v3156 = vunpack.c.l.b16 %v3021
    %v3157 = vunpack.c.l.b16 %v3022
    %v3158 = vunpack.c.l.b16 %v3023
    %v3159 = vunpack.c.l.b16 %v3024
    %v3160 = vunpack.c.l.b16 %v3025
    %v3161 = vunpack.c.l.b16 %v3026
    %v3162 = vunpack.c.l.b16 %v3027
    %v3163 = vunpack.c.l.b16 %v3028
    %v3164 = vunpack.c.l.b16 %v3029
    %v3165 = vunpack.c.l.b16 %v3030
    %v3166 = vunpack.c.l.b16 %v3031
    %v3167 = vunpack.c.l.b16 %v3032
    %v3168 = vunpack.c.l.b16 %v3033
    %v3169 = vunpack.c.l.b16 %v3034
    %v3170 = vunpack.c.l.b16 %v3035
    %v3171 = vunpack.c.l.b16 %v3036
    %v3172 = vunpack.c.l.b16 %v3037
    %v3173 = vunpack.c.l.b16 %v3038
    %v3174 = vunpack.c.l.b16 %v3039
    %v3175 = vunpack.c.l.b16 %v3040
    %v3176 = vunpack.c.l.b16 %v3041
    %v3177 = vunpack.c.l.b16 %v3042
    %v3178 = vunpack.c.l.b16 %v3043
    %v3179 = vunpack.c.l.b16 %v3044
    %v3180 = vunpack.c.l.b16 %v3045
    %v3181 = vunpack.c.l.b16 %v3046
    %v3182 = vunpack.c.l.b16 %v3047
    %v3183 = vunpack.c.l.b16 %v3048
    %v3184 = vunpack.c.l.b16 %v3049
    %v3185 = vunpack.c.l.b16 %v3050
    %v3186 = vunpack.c.l.b16 %v3051
    %v3187 = vunpack.c.l.b16 %v3052
    %v3188 = vunpack.c.l.b16 %v3053
    %v3189 = vunpack.c.l.b16 %v3054
    %v3190 = vunpack.c.l.b16 %v3055
    %v3191 = vunpack.c.l.b16 %v3056
    %v3192 = vunpack.c.l.b16 %v3057
    %v3193 = vunpack.c.l.b16 %v3058
    %v3194 = vunpack.c.l.b16 %v3059
    %v3195 = vunpack.c.l.b16 %v3060
    %v3196 = vunpack.c.l.b16 %v3061
    %v3197 = vunpack.c.l.b16 %v3062
    %v3198 = vunpack.c.l.b16 %v3063
    %v3199 = vunpack.c.l.b16 %v3064
    %v3200 = vunpack.c.l.b16 %v3065
    %v3201 = vunpack.c.l.b16 %v3066
    %v3202 = vunpack.c.l.b16 %v3067
    %v3203 = vunpack.c.l.b16 %v3068
    %v3204 = vunpack.c.l.b16 %v3069
    %v3205 = vunpack.c.l.b16 %v3070
    %v3206 = vunpack.c.l.b16 %v3071
    %v3207 = vunpack.c.l.b16 %v3072
    %v3208 = vunpack.c.l.b16 %v3073
    %v3209 = vunpack.c.l.b16 %v3074
    %v3210 = vunpack.c.l.b16 %v3075
    %v3211 = vunpack.c.l.b16 %v3076
    %v3212 = vunpack.c.l.b16 %v3077
    %v3213 = vpack.c.b16 %v3150, %v3149
    %v3214 = vpack.c.b16 %v3152, %v3151
    %v3215 = vpack.c.b16 %v3154, %v3153
    %v3216 = vpack.c.b16 %v3156, %v3155
    %v3217 = vpack.c.b16 %v3158, %v3157
    %v3218 = vpack.c.b16 %v3160, %v3159
    %v3219 = vpack.c.b16 %v3162, %v3161
    %v3220 = vpack.c.b16 %v3164, %v3163
    %v3221 = vpack.c.b16 %v3166, %v3165
    %v3222 = vpack.c.b16 %v3168, %v3167
    %v3223 = vpack.c.b16 %v3170, %v3169
    %v3224 = vpack.c.b16 %v3172, %v3171
    %v3225 = vpack.c.b16 %v3174, %v3173
    %v3226 = vpack.c.b16 %v3176, %v3175
    %v3227 = vpack.c.b16 %v3178, %v3177
    %v3228 = vpack.c.b16 %v3180, %v3179
    %v3229 = vpack.c.b16 %v3182, %v3181
    %v3230 = vpack.c.b16 %v3184, %v3183
    %v3231 = vpack.c.b16 %v3186, %v3185
    %v3232 = vpack.c.b16 %v3188, %v3187
    %v3233 = vpack.c.b16 %v3190, %v3189
    %v3234 = vpack.c.b16 %v3192, %v3191
    %v3235 = vpack.c.b16 %v3194, %v3193
    %v3236 = vpack.c.b16 %v3196, %v3195
    %v3237 = vpack.c.b16 %v3198, %v3197
    %v3238 = vpack.c.b16 %v3200, %v3199
    %v3239 = vpack.c.b16 %v3202, %v3201
    %v3240 = vpack.c.b16 %v3204, %v3203
    %v3241 = vpack.c.b16 %v3206, %v3205
    %v3242 = vpack.c.b16 %v3208, %v3207
    %v3243 = vpack.c.b16 %v3210, %v3209
    %v3244 = vpack.c.b16 %v3212, %v3211
    %3277 = vmatprep.subr.bf16.mxu0 0
    %3278 = vmatpush1.bf16.msra.mxu0 %v3213
    %3279 = vmatprep.subr.bf16.mxu0 0
    %3280 = vmatpush1.bf16.msra.mxu0 %v3214
    %3281 = vmatprep.subr.bf16.mxu0 0
    %3282 = vmatpush1.bf16.msra.mxu0 %v3215
    %3283 = vmatprep.subr.bf16.mxu0 0
    %3284 = vmatpush1.bf16.msra.mxu0 %v3216
    %3285 = vmatprep.subr.bf16.mxu0 0
    %3286 = vmatpush1.bf16.msra.mxu0 %v3217
    %3287 = vmatprep.subr.bf16.mxu0 0
    %3288 = vmatpush1.bf16.msra.mxu0 %v3218
    %3289 = vmatprep.subr.bf16.mxu0 0
    %3290 = vmatpush1.bf16.msra.mxu0 %v3219
    %3291 = vmatprep.subr.bf16.mxu0 0
    %3292 = vmatpush1.bf16.msra.mxu0 %v3220
    %3293 = vmatprep.subr.bf16.mxu0 0
    %3294 = vmatpush1.bf16.msra.mxu0 %v3221
    %3295 = vmatprep.subr.bf16.mxu0 0
    %3296 = vmatpush1.bf16.msra.mxu0 %v3222
    %3297 = vmatprep.subr.bf16.mxu0 0
    %3298 = vmatpush1.bf16.msra.mxu0 %v3223
    %3299 = vmatprep.subr.bf16.mxu0 0
    %3300 = vmatpush1.bf16.msra.mxu0 %v3224
    %3301 = vmatprep.subr.bf16.mxu0 0
    %3302 = vmatpush1.bf16.msra.mxu0 %v3225
    %3303 = vmatprep.subr.bf16.mxu0 0
    %3304 = vmatpush1.bf16.msra.mxu0 %v3226
    %3305 = vmatprep.subr.bf16.mxu0 0
    %3306 = vmatpush1.bf16.msra.mxu0 %v3227
    %3307 = vmatprep.subr.bf16.mxu0 0
    %3308 = vmatpush1.bf16.msra.mxu0 %v3228
    %3309 = vmatprep.mubr.bf16.mxu0 %v3011
    %3310 = vmatmul.mubr.bf16.gmra.mrb[0].mxu0 %v3010
    %v3311 = vpop.f32.mrb[0].mxu0
    %v3312 = vadd.f32 %v3083, %v3311
    %v3313 = vpop.f32.mrb[0].mxu0
    %v3314 = vpop.f32.mrb[0].mxu0
    %v3315 = vadd.f32 %v3083, %v3314
    %v3316 = vpop.f32.mrb[0].mxu0
    %3317 = vdwg.mxu0
    %3318 = vmatprep.subr.bf16.mxu0 0
    %3319 = vmatpush1.bf16.msra.mxu0 %v3229
    %3320 = vmatprep.subr.bf16.mxu0 0
    %3321 = vmatpush1.bf16.msra.mxu0 %v3230
    %3322 = vmatprep.subr.bf16.mxu0 0
    %3323 = vmatpush1.bf16.msra.mxu0 %v3231
    %3324 = vmatprep.subr.bf16.mxu0 0
    %3325 = vmatpush1.bf16.msra.mxu0 %v3232
    %3326 = vmatprep.subr.bf16.mxu0 0
    %3327 = vmatpush1.bf16.msra.mxu0 %v3233
    %3328 = vmatprep.subr.bf16.mxu0 0
    %3329 = vmatpush1.bf16.msra.mxu0 %v3234
    %3330 = vmatprep.subr.bf16.mxu0 0
    %3331 = vmatpush1.bf16.msra.mxu0 %v3235
    %3332 = vmatprep.subr.bf16.mxu0 0
    %3333 = vmatpush1.bf16.msra.mxu0 %v3236
    %3334 = vmatprep.subr.bf16.mxu0 0
    %3335 = vmatpush1.bf16.msra.mxu0 %v3237
    %3336 = vmatprep.subr.bf16.mxu0 0
    %3337 = vmatpush1.bf16.msra.mxu0 %v3238
    %3338 = vmatprep.subr.bf16.mxu0 0
    %3339 = vmatpush1.bf16.msra.mxu0 %v3239
    %3340 = vmatprep.subr.bf16.mxu0 0
    %3341 = vmatpush1.bf16.msra.mxu0 %v3240
    %3342 = vmatprep.subr.bf16.mxu0 0
    %3343 = vmatpush1.bf16.msra.mxu0 %v3241
    %3344 = vmatprep.subr.bf16.mxu0 0
    %3345 = vmatpush1.bf16.msra.mxu0 %v3242
    %3346 = vmatprep.subr.bf16.mxu0 0
    %3347 = vmatpush1.bf16.msra.mxu0 %v3243
    %3348 = vmatprep.subr.bf16.mxu0 0
    %3349 = vmatpush1.bf16.msra.mxu0 %v3244
    %3350 = vmatprep.mubr.bf16.mxu0 %v3013
    %3351 = vmatmul.mubr.bf16.gmra.mrb[0].mxu0 %v3012
    %v3352 = vpop.f32.mrb[0].mxu0
    %v3353 = vadd.f32 %v3312, %v3352
    %v3354 = vpop.f32.mrb[0].mxu0
    %v3355 = vpop.f32.mrb[0].mxu0
    %v3356 = vadd.f32 %v3315, %v3355
    %v3357 = vpop.f32.mrb[0].mxu0
    %3358 = vdwg.mxu0
    %3359 = vst [vmem:[#allocation11] sm:$0xff] %v3353
    %3360 = vst [vmem:[#allocation11 + $0x8] sm:$0xff] %v3356
    // Predicated region
    $region46: #{tpu_custom_call.1} parent=1 // pred_check
      _
    $region47: #{tpu_custom_call.1} parent=1 // pred_check_branch
      %3362 = sbr.rel (0) target = $region49
    $region48: #{tpu_custom_call.1} parent=1 // pred_region
      %s3364 = ssub.s32 512, 512
      %3365 = vsyncadd [#allocation4], %s3364
      %s3366 = sshll.u32 [#allocation10], 4
      %s3367 = int_to_ptr.vmem [resolvable:$true] %s3366
      %3372 = dma.vmem_to_hbm [thread:$0]  %s3367, 512, %s7, [#allocation4], 256, 256, 16
    $region49: #{tpu_custom_call.1} parent=1 // pred_fallthru
      _
    // Predicated region
    $region50: #{tpu_custom_call.1} parent=1 // pred_check
      _
    $region51: #{tpu_custom_call.1} parent=1 // pred_check_branch
      %3374 = sbr.rel (0) target = $region53
    $region52: #{tpu_custom_call.1} parent=1 // pred_region
      %s3376 = ssub.s32 256, 256
      %3377 = vsyncadd [#allocation12], %s3376
      %s3378 = sshll.u32 [#allocation11], 4
      %s3379 = int_to_ptr.vmem [resolvable:$true] %s3378
      %3384 = dma.vmem_to_hbm [thread:$0]  %s3379, 256, %s8, [#allocation12], 128, 128, 8
    $region53: #{tpu_custom_call.1} parent=1 // pred_fallthru
      _
    // Predicated region
    $region54: #{tpu_custom_call.1} parent=1 // pred_check
      _
    $region55: #{tpu_custom_call.1} parent=1 // pred_check_branch
      %3386 = sbr.rel (0) target = $region57
    $region56: #{tpu_custom_call.1} parent=1 // pred_region
      %3387 = dma.done [#allocation4], 512
    $region57: #{tpu_custom_call.1} parent=1 // pred_fallthru
      _
    // Predicated region
    $region58: #{tpu_custom_call.1} parent=1 // pred_check
      _
    $region59: #{tpu_custom_call.1} parent=1 // pred_check_branch
      %3389 = sbr.rel (0) target = $region61
    $region60: #{tpu_custom_call.1} parent=1 // pred_region
      %3390 = dma.done [#allocation12], 256
    $region61: #{tpu_custom_call.1} parent=1 // pred_fallthru
      _
    %3391 = vsyncpa [#allocation3], 1
    %3392 = vsyncpa [#allocation6], 1
    %3393 = vsyncpa [#allocation9], 1
    %3394 = vsyncpa [#allocation4], 1
    %3395 = vsyncpa [#allocation12], 1

</llo_original>
